<compile_context>
chip_gen: v7x
topology: tpu7x:2x2x1
jax: 0.10.0
libtpu: 0.0.40
codegen_flags: <defaults>
</compile_context>

<pallas_src>
import functools
import math

import jax
import jax.numpy as jnp
import numpy as np
from jax.experimental import pallas as pl
from jax.experimental.pallas import tpu as pltpu

# ----------------------- small synthetic hyper-params -----------------------
NUM_ENCODERS = 4        # (64 in the original module)
IN_CHANNELS = 4         # (12)
PATCH = 4               # (16)
WIDTH = 32              # (256)
SEQ_LEN = 16            # (256)
NUM_HEADS = 4           # (8)
NUM_LAYERS = 2          # (8)
PROJ = 64               # (1024)
NUM_CLS_TOKENS = 2
HEAD_DIM = WIDTH // NUM_HEADS
BN_EPS = 1e-5
N_PATCH = SEQ_LEN // PATCH
OUT_LEN = N_PATCH + NUM_CLS_TOKENS           # padding=0 branch: T//P + n_cls
PROJ_PAD = ((PROJ + 127) // 128) * 128       # lane-dense output block (128)


# --------------------------- fused encoder kernel ---------------------------
def _encoder_layer_kernel(patches_ref, pos_ref,
                          conv_w_ref, conv_b_ref, tok_ref,
                          in_w_ref, in_b_ref, out_w_ref, out_b_ref,
                          fc_w_ref, fc_b_ref, cp_w_ref, cp_b_ref,
                          proj_w_ref, proj_b_ref,
                          o_ref, x_ref, *, num_heads):
    """Grid step (e, l) == transformer layer l of encoder e.

    The (B, L, W) activation lives in the VMEM scratch x_ref for the whole
    encoder; per-layer weights arrive as (1, 1, ...) blocks streamed by the
    BlockSpec pipeline.
    """
    layer = pl.program_id(1)
    n_layers = pl.num_programs(1)
    n_patch, width = pos_ref.shape
    batch = patches_ref.shape[0] // n_patch
    n_cls = tok_ref.shape[1]
    seq = n_cls + n_patch
    head_dim = width // num_heads
    scale = 1.0 / math.sqrt(head_dim)
    f32 = jnp.float32
    bf16 = jnp.bfloat16

    # ---- patch embed (prenorm folded) + cls/reg tokens + pos emb (l == 0) --
    @pl.when(layer == 0)
    def _embed():
        xw = jnp.dot(patches_ref[...].astype(bf16), conv_w_ref[0],
                     preferred_element_type=f32) + conv_b_ref[0]   # (B*Np, W)
        xw = xw.reshape(batch, n_patch, width) + pos_ref[...][None, :, :]
        # two vectorized stores instead of per-batch interleaved concats
        x_ref[:, :n_cls, :] = jnp.broadcast_to(
            tok_ref[0][None, :, :], (batch, n_cls, width))
        x_ref[:, n_cls:, :] = xw

    x2 = x_ref[...].reshape(batch * seq, width)                    # (B*L, W) f32

    # ---- multi-head self-attention (ln_1 folded into in_proj) --------------
    qkv = jnp.dot(x2.astype(bf16), in_w_ref[0, 0],
                  preferred_element_type=f32) + in_b_ref[0, 0]     # (B*L, 3W) f32
    qkv = qkv.reshape(batch, seq, 3 * width)
    head_outs = []
    # Batch dim fully batched via einsum (Mosaic dot_general: 1 batch dim);
    # heads are a short static unroll.
    # TODO(synk): at real scale pre-permute / pad head blocks to 128 lanes.
    for h in range(num_heads):
        c0 = h * head_dim
        qh = qkv[:, :, c0:c0 + head_dim].astype(bf16)
        kh = qkv[:, :, width + c0:width + c0 + head_dim].astype(bf16)
        vh = qkv[:, :, 2 * width + c0:2 * width + c0 + head_dim].astype(bf16)
        s = jnp.einsum('bqd,bkd->bqk', qh, kh,
                       preferred_element_type=f32) * scale         # (B, L, L) f32
        s = s - jnp.max(s, axis=-1, keepdims=True)
        p = jnp.exp(s)
        p = p * pl.reciprocal(jnp.sum(p, axis=-1, keepdims=True), approx=True)
        head_outs.append(jnp.einsum('bqk,bkd->bqd', p.astype(bf16), vh,
                                    preferred_element_type=f32))   # (B, L, Dh)
    attn = jnp.concatenate(head_outs, axis=-1).reshape(batch * seq, width)
    attn = jnp.dot(attn.astype(bf16), out_w_ref[0, 0],
                   preferred_element_type=f32) + out_b_ref[0, 0]
    x2 = x2 + attn                       # dropout1 is identity in eval mode

    # ---- MLP: c_fc (ln_2 folded) -> QuickGELU (f32) -> c_proj --------------
    h1 = jnp.dot(x2.astype(bf16), fc_w_ref[0, 0],
                 preferred_element_type=f32) + fc_b_ref[0, 0]
    h1 = h1 * jax.nn.sigmoid(1.702 * h1)
    h2 = jnp.dot(h1.astype(bf16), cp_w_ref[0, 0],
                 preferred_element_type=f32) + cp_b_ref[0, 0]
    x2 = x2 + h2                         # dropout2 is identity in eval mode

    x_ref[...] = x2.reshape(batch, seq, width)

    # ---- ln_post (folded) + projection of the consumed token (index 1) -----
    @pl.when(layer == n_layers - 1)
    def _project():
        tok1 = x2.reshape(batch, seq, width)[:, 1, :]               # (B, W)
        o_ref[0] = jnp.dot(tok1.astype(bf16), proj_w_ref[0],
                           preferred_element_type=f32) + proj_b_ref[0]


def combined_forward(stacked, patches, pos_patch):
    """All encoders in one pallas_call with grid=(NUM_ENCODERS, NUM_LAYERS)."""
    n_enc, pcin, width = stacked["conv_w"].shape
    n_layers = stacked["in_w"].shape[1]
    n_cls = stacked["tok"].shape[1]
    proj_pad = stacked["proj_w"].shape[2]
    n_patch = pos_patch.shape[0]
    batch = patches.shape[0] // n_patch
    seq = n_cls + n_patch

    kernel = functools.partial(_encoder_layer_kernel, num_heads=NUM_HEADS)
    out = pl.pallas_call(
        kernel,
        out_shape=jax.ShapeDtypeStruct((n_enc, batch, proj_pad), jnp.float32),
        grid=(n_enc, n_layers),
        in_specs=[
            # shared inputs: constant block index -> fetched once per core
            pl.BlockSpec((batch * n_patch, pcin), lambda e, l: (0, 0)),
            pl.BlockSpec((n_patch, width), lambda e, l: (0, 0)),
            # per-encoder (fetched when e changes)
            pl.BlockSpec((1, pcin, width), lambda e, l: (e, 0, 0)),
            pl.BlockSpec((1, 1, width), lambda e, l: (e, 0, 0)),
            pl.BlockSpec((1, n_cls, width), lambda e, l: (e, 0, 0)),
            # per-layer weights: streamed / double-buffered per grid step
            pl.BlockSpec((1, 1, width, 3 * width), lambda e, l: (e, l, 0, 0)),
            pl.BlockSpec((1, 1, 1, 3 * width), lambda e, l: (e, l, 0, 0)),
            pl.BlockSpec((1, 1, width, width), lambda e, l: (e, l, 0, 0)),
            pl.BlockSpec((1, 1, 1, width), lambda e, l: (e, l, 0, 0)),
            pl.BlockSpec((1, 1, width, 4 * width), lambda e, l: (e, l, 0, 0)),
            pl.BlockSpec((1, 1, 1, 4 * width), lambda e, l: (e, l, 0, 0)),
            pl.BlockSpec((1, 1, 4 * width, width), lambda e, l: (e, l, 0, 0)),
            pl.BlockSpec((1, 1, 1, width), lambda e, l: (e, l, 0, 0)),
            # per-encoder projection
            pl.BlockSpec((1, width, proj_pad), lambda e, l: (e, 0, 0)),
            pl.BlockSpec((1, 1, proj_pad), lambda e, l: (e, 0, 0)),
        ],
        out_specs=pl.BlockSpec((1, batch, proj_pad), lambda e, l: (e, 0, 0)),
        scratch_shapes=[pltpu.VMEM((batch, seq, width), jnp.float32)],
        compiler_params=pltpu.CompilerParams(
            # encoder axis parallel (megacore on v7x); layer axis sequential
            dimension_semantics=("parallel", "arbitrary")),
    )(patches, pos_patch,
      stacked["conv_w"], stacked["conv_b"], stacked["tok"],
      stacked["in_w"], stacked["in_b"], stacked["out_w"], stacked["out_b"],
      stacked["fc_w"], stacked["fc_b"], stacked["cp_w"], stacked["cp_b"],
      stacked["proj_w"], stacked["proj_b"])
    # drop the lane padding, return (B, NUM_ENCODERS, PROJ)
    return out[:, :, :PROJ].transpose(1, 0, 2)


# ------------------------- parameter initialization -------------------------
def sinusoidal_pos_embedding(sequence_length, d_model):
    # exact replica of the PyTorch helper (note the 2*i/d exponent)
    f = np.zeros((sequence_length, d_model), np.float32)
    for pos in range(sequence_length):
        for i in range(0, d_model, 2):
            div_term = math.pow(10000, 2 * i / d_model)
            f[pos, i] = math.sin(pos / div_term)
            if i + 1 < d_model:
                f[pos, i + 1] = math.cos(pos / div_term)
    return jnp.asarray(f)


POS_EMB = sinusoidal_pos_embedding(OUT_LEN, WIDTH)


def _bn_params(key, dim):
    k1, k2, k3, k4 = jax.random.split(key, 4)
    gamma = 1.0 + 0.1 * jax.random.normal(k1, (dim,), jnp.float32)
    beta = 0.1 * jax.random.normal(k2, (dim,), jnp.float32)
    running_mean = 0.1 * jax.random.normal(k3, (dim,), jnp.float32)
    running_var = 1.0 + 0.1 * jax.random.uniform(k4, (dim,), jnp.float32)
    scale = gamma / jnp.sqrt(running_var + BN_EPS)
    shift = beta - running_mean * scale
    return scale, shift


def init_encoder(key):
    keys = iter(jax.random.split(key, 64))
    p = {}
    p["pre_scale"], p["pre_shift"] = _bn_params(next(keys), IN_CHANNELS)

    # Conv1d weight (width, C_in, P) -> matmul matrix (P*C_in, width),
    # patch flat index = k*C_in + c (matches x.reshape(B, T', P, C_in))
    conv_w = 0.02 * jax.random.normal(
        next(keys), (WIDTH, IN_CHANNELS, PATCH), jnp.float32)
    p["conv_w"] = conv_w.transpose(2, 1, 0).reshape(PATCH * IN_CHANNELS, WIDTH)
    p["conv_b"] = jnp.zeros((WIDTH,), jnp.float32)   # Conv1d(bias=False)

    p["cls_token"] = jax.random.normal(next(keys), (1, 1, WIDTH), jnp.float32)
    p["reg_token"] = jax.random.normal(
        next(keys), (1, NUM_CLS_TOKENS - 1, WIDTH), jnp.float32)
    p["pos_emb"] = POS_EMB

    layers = []
    for _ in range(NUM_LAYERS):
        lp = {}
        lp["ln1_scale"], lp["ln1_shift"] = _bn_params(next(keys), WIDTH)
        lp["in_proj_w"] = 0.02 * jax.random.normal(
            next(keys), (WIDTH, 3 * WIDTH), jnp.float32)
        lp["in_proj_b"] = 0.02 * jax.random.normal(
            next(keys), (3 * WIDTH,), jnp.float32)
        lp["out_proj_w"] = 0.02 * jax.random.normal(
            next(keys), (WIDTH, WIDTH), jnp.float32)
        lp["out_proj_b"] = 0.02 * jax.random.normal(
            next(keys), (WIDTH,), jnp.float32)
        lp["ln2_scale"], lp["ln2_shift"] = _bn_params(next(keys), WIDTH)
        lp["fc_w"] = 0.02 * jax.random.normal(
            next(keys), (WIDTH, 4 * WIDTH), jnp.float32)
        lp["fc_b"] = 0.02 * jax.random.normal(
            next(keys), (4 * WIDTH,), jnp.float32)
        lp["cproj_w"] = 0.02 * jax.random.normal(
            next(keys), (4 * WIDTH, WIDTH), jnp.float32)
        lp["cproj_b"] = 0.02 * jax.random.normal(
            next(keys), (WIDTH,), jnp.float32)
        layers.append(lp)
    p["layers"] = layers

    p["post_scale"], p["post_shift"] = _bn_params(next(keys), WIDTH)
    p["proj_w"] = 0.02 * jax.random.normal(next(keys), (WIDTH, PROJ), jnp.float32)
    p["proj_b"] = 0.02 * jax.random.normal(next(keys), (PROJ,), jnp.float32)
    return p


# ------------------- fold BN into matmuls & stack encoders ------------------
def fold_and_stack(enc_params):
    """Fold every eval-mode BN affine into the following matmul, stack all
    per-encoder params with a leading NUM_ENCODERS axis, cast matmul weights
    to bf16 and lane-pad the projection to PROJ_PAD."""
    def fold_one(p):
        d = {}
        # prenorm BN -> conv patch-embed; patch flat index kc = k*C_in + c.
        scale_kc = jnp.tile(p["pre_scale"], PATCH)   # element kc -> pre_scale[c]
        shift_kc = jnp.tile(p["pre_shift"], PATCH)
        d["conv_w"] = scale_kc[:, None] * p["conv_w"]
        d["conv_b"] = (shift_kc @ p["conv_w"] + p["conv_b"]).reshape(1, WIDTH)
        # cls/reg tokens with their slice of the positional embedding pre-added.
        d["tok"] = (jnp.concatenate([p["cls_token"][0], p["reg_token"][0]], axis=0)
                    + p["pos_emb"][:NUM_CLS_TOKENS])
        per = {k: [] for k in
               ("in_w", "in_b", "out_w", "out_b", "fc_w", "fc_b", "cp_w", "cp_b")}
        for lp in p["layers"]:
            # ln_1 -> in_proj
            per["in_w"].append(lp["ln1_scale"][:, None] * lp["in_proj_w"])
            per["in_b"].append((lp["ln1_shift"] @ lp["in_proj_w"]
                                + lp["in_proj_b"]).reshape(1, 3 * WIDTH))
            per["out_w"].append(lp["out_proj_w"])
            per["out_b"].append(lp["out_proj_b"].reshape(1, WIDTH))
            # ln_2 -> c_fc
            per["fc_w"].append(lp["ln2_scale"][:, None] * lp["fc_w"])
            per["fc_b"].append((lp["ln2_shift"] @ lp["fc_w"]
                                + lp["fc_b"]).reshape(1, 4 * WIDTH))
            per["cp_w"].append(lp["cproj_w"])
            per["cp_b"].append(lp["cproj_b"].reshape(1, WIDTH))
        for k, v in per.items():
            d[k] = jnp.stack(v, axis=0)    # weights (NL, m, n); biases (NL, 1, n)
        # ln_post -> projection, zero-padded to a lane-dense 128-wide block.
        pw = p["post_scale"][:, None] * p["proj_w"]
        pb = (p["post_shift"] @ p["proj_w"] + p["proj_b"]).reshape(1, PROJ)
        d["proj_w"] = jnp.pad(pw, ((0, 0), (0, PROJ_PAD - PROJ)))
        d["proj_b"] = jnp.pad(pb, ((0, 0), (0, PROJ_PAD - PROJ)))
        return d

    folded = [fold_one(p) for p in enc_params]
    stacked = {k: jnp.stack([f[k] for f in folded], axis=0) for k in folded[0]}
    # bf16 matmul operands (f32 accumulation in-kernel); biases/tokens stay f32.
    for k in ("conv_w", "in_w", "out_w", "fc_w", "cp_w", "proj_w"):
        stacked[k] = stacked[k].astype(jnp.bfloat16)
    return stacked


# ----------------------- pure-JAX f32 reference model -----------------------
def reference_forward(enc_params, imu):
    """Straightforward f32 replica of the PyTorch eval-mode forward."""
    B = imu.shape[0]
    outs = []
    for p in enc_params:
        xn = imu * p["pre_scale"] + p["pre_shift"]                 # prenorm (BTC)
        patches = xn.reshape(B, N_PATCH, PATCH * IN_CHANNELS)
        xw = patches @ p["conv_w"]                                 # (B, Np, W)
        cls = jnp.broadcast_to(p["cls_token"], (B, 1, WIDTH))
        reg = jnp.broadcast_to(p["reg_token"], (B, NUM_CLS_TOKENS - 1, WIDTH))
        x = jnp.concatenate([cls, reg, xw], axis=1) + p["pos_emb"][None]
        for lp in p["layers"]:
            h = x * lp["ln1_scale"] + lp["ln1_shift"]
            qkv = h @ lp["in_proj_w"] + lp["in_proj_b"]
            q, k, v = jnp.split(qkv, 3, axis=-1)

            def heads(t):
                return t.reshape(B, OUT_LEN, NUM_HEADS,
                                 HEAD_DIM).transpose(0, 2, 1, 3)
            s = jnp.einsum('bhqd,bhkd->bhqk', heads(q),
                           heads(k)) / math.sqrt(HEAD_DIM)
            pw = jax.nn.softmax(s, axis=-1)
            o = jnp.einsum('bhqk,bhkd->bhqd', pw, heads(v))
            o = o.transpose(0, 2, 1, 3).reshape(B, OUT_LEN, WIDTH)
            x = x + (o @ lp["out_proj_w"] + lp["out_proj_b"])
            h = x * lp["ln2_scale"] + lp["ln2_shift"]
            h = h @ lp["fc_w"] + lp["fc_b"]
            h = h * jax.nn.sigmoid(1.702 * h)
            x = x + (h @ lp["cproj_w"] + lp["cproj_b"])
        x = x * p["post_scale"] + p["post_shift"]
        proj = x @ p["proj_w"] + p["proj_b"]
        outs.append(proj[:, 1, :])                                  # consumed token
    return jnp.stack(outs, axis=1)                                  # (B, NE, PROJ)


# ---------------------------------- main -------------------------------------
if __name__ == "__main__":
    root = jax.random.PRNGKey(0)
    key_data, key_params = jax.random.split(root)
    imu = jax.random.normal(key_data, (2, SEQ_LEN, IN_CHANNELS), jnp.float32)

    # TODO(synk): the original __init__ loads 64 checkpoints via torch.load;
    # parameters are synthesized deterministically here instead.
    enc_keys = jax.random.split(key_params, NUM_ENCODERS)
    raw_params = [init_encoder(k) for k in enc_keys]
    stacked = fold_and_stack(raw_params)

    # Conv1d(kernel=stride=PATCH, padding=0) == patch flatten (k*C_in + c).
    B = imu.shape[0]
    patches = imu.reshape(B * N_PATCH, PATCH * IN_CHANNELS)
    pos_patch = POS_EMB[NUM_CLS_TOKENS:]          # shared across encoders

    fwd = jax.jit(combined_forward)
    out = jax.block_until_ready(fwd(stacked, patches, pos_patch))

    assert out.shape == (2, NUM_ENCODERS, PROJ), out.shape
    assert bool(jnp.all(jnp.isfinite(out)))

    # tolerance check vs. exact f32 reference (bf16 operands + approx recip)
    ref = reference_forward(raw_params, imu)
    np.testing.assert_allclose(np.asarray(out), np.asarray(ref),
                               rtol=2e-2, atol=2e-2)

    print("KERNEL_OK")
</pallas_src>

<mosaic_0001>
module attributes {stable_mosaic.version = 11 : i64} {
  func.func @_encoder_layer_kernel(%arg0: i32, %arg1: i32, %arg2: memref<8x16xf32, #tpu.memory_space<vmem>>, %arg3: memref<4x32xf32, #tpu.memory_space<vmem>>, %arg4: memref<1x16x32xbf16, #tpu.memory_space<vmem>>, %arg5: memref<1x1x32xf32, #tpu.memory_space<vmem>>, %arg6: memref<1x2x32xf32, #tpu.memory_space<vmem>>, %arg7: memref<1x1x32x96xbf16, #tpu.memory_space<vmem>>, %arg8: memref<1x1x1x96xf32, #tpu.memory_space<vmem>>, %arg9: memref<1x1x32x32xbf16, #tpu.memory_space<vmem>>, %arg10: memref<1x1x1x32xf32, #tpu.memory_space<vmem>>, %arg11: memref<1x1x32x128xbf16, #tpu.memory_space<vmem>>, %arg12: memref<1x1x1x128xf32, #tpu.memory_space<vmem>>, %arg13: memref<1x1x128x32xbf16, #tpu.memory_space<vmem>>, %arg14: memref<1x1x1x32xf32, #tpu.memory_space<vmem>>, %arg15: memref<1x32x128xbf16, #tpu.memory_space<vmem>>, %arg16: memref<1x1x128xf32, #tpu.memory_space<vmem>>, %arg17: memref<1x2x128xf32, #tpu.memory_space<vmem>>, %arg18: memref<2x6x32xf32, #tpu.memory_space<vmem>>) attributes {dimension_semantics = [#tpu.dimension_semantics<parallel>, #tpu.dimension_semantics<arbitrary>], iteration_bounds = array<i64: 4, 2>, scalar_prefetch = 0 : i64, scratch_operands = 1 : i64, tpu.core_type = #tpu.core_type<tc>, window_params = [{pipeline_mode = #tpu.pipeline_mode<synchronous>, transform_indices = @transform_0, window_bounds = array<i64: 8, 16>}, {pipeline_mode = #tpu.pipeline_mode<synchronous>, transform_indices = @transform_1, window_bounds = array<i64: 4, 32>}, {transform_indices = @transform_2, window_bounds = array<i64: 1, 16, 32>}, {transform_indices = @transform_3, window_bounds = array<i64: 1, 1, 32>}, {transform_indices = @transform_4, window_bounds = array<i64: 1, 2, 32>}, {transform_indices = @transform_5, window_bounds = array<i64: 1, 1, 32, 96>}, {transform_indices = @transform_6, window_bounds = array<i64: 1, 1, 1, 96>}, {transform_indices = @transform_7, window_bounds = array<i64: 1, 1, 32, 32>}, {transform_indices = @transform_8, window_bounds = array<i64: 1, 1, 1, 32>}, {transform_indices = @transform_9, window_bounds = array<i64: 1, 1, 32, 128>}, {transform_indices = @transform_10, window_bounds = array<i64: 1, 1, 1, 128>}, {transform_indices = @transform_11, window_bounds = array<i64: 1, 1, 128, 32>}, {transform_indices = @transform_12, window_bounds = array<i64: 1, 1, 1, 32>}, {transform_indices = @transform_13, window_bounds = array<i64: 1, 32, 128>}, {transform_indices = @transform_14, window_bounds = array<i64: 1, 1, 128>}, {transform_indices = @transform_15, window_bounds = array<i64: 1, 2, 128>}]} {
    %c0_i32 = arith.constant 0 : i32
    %0 = arith.cmpi eq, %arg1, %c0_i32 : i32
    %1 = arith.extui %0 : i1 to i32
    %c0_i32_0 = arith.constant 0 : i32
    %2 = arith.cmpi ne, %1, %c0_i32_0 : i32
    scf.if %2 {
      %c0_64 = arith.constant 0 : index
      %c0_65 = arith.constant 0 : index
      %139 = vector.load %arg2[%c0_64, %c0_65] : memref<8x16xf32, #tpu.memory_space<vmem>>, vector<8x16xf32>
      %140 = arith.truncf %139 : vector<8x16xf32> to vector<8x16xbf16>
      %c0_66 = arith.constant 0 : index
      %c0_67 = arith.constant 0 : index
      %c0_68 = arith.constant 0 : index
      %141 = vector.load %arg4[%c0_66, %c0_67, %c0_68] : memref<1x16x32xbf16, #tpu.memory_space<vmem>>, vector<1x16x32xbf16>
      %142 = vector.shape_cast %141 : vector<1x16x32xbf16> to vector<16x32xbf16>
      %cst_69 = arith.constant dense<0.000000e+00> : vector<8x32xf32>
      %143 = tpu.matmul %140, %142, %cst_69 {dimension_numbers = #tpu.dot_dimension_numbers<[1], [0], [0], [1], [0, 0, 1, 1], [], []>} : vector<8x16xbf16>, vector<16x32xbf16>, vector<8x32xf32> -> vector<8x32xf32>
      %c0_70 = arith.constant 0 : index
      %c0_71 = arith.constant 0 : index
      %c0_72 = arith.constant 0 : index
      %144 = vector.load %arg5[%c0_70, %c0_71, %c0_72] : memref<1x1x32xf32, #tpu.memory_space<vmem>>, vector<1x1x32xf32>
      %145 = vector.shape_cast %144 : vector<1x1x32xf32> to vector<1x32xf32>
      %146 = vector.broadcast %145 : vector<1x32xf32> to vector<8x32xf32>
      %147 = arith.addf %143, %146 : vector<8x32xf32>
      %148 = vector.shape_cast %147 : vector<8x32xf32> to vector<2x4x32xf32>
      %c0_73 = arith.constant 0 : index
      %c0_74 = arith.constant 0 : index
      %149 = vector.load %arg3[%c0_73, %c0_74] : memref<4x32xf32, #tpu.memory_space<vmem>>, vector<4x32xf32>
      %150 = vector.shape_cast %149 : vector<4x32xf32> to vector<1x4x32xf32>
      %151 = vector.broadcast %150 : vector<1x4x32xf32> to vector<2x4x32xf32>
      %152 = arith.addf %148, %151 : vector<2x4x32xf32>
      %c0_75 = arith.constant 0 : index
      %c0_76 = arith.constant 0 : index
      %c0_77 = arith.constant 0 : index
      %153 = vector.load %arg6[%c0_75, %c0_76, %c0_77] : memref<1x2x32xf32, #tpu.memory_space<vmem>>, vector<1x2x32xf32>
      %154 = vector.shape_cast %153 : vector<1x2x32xf32> to vector<2x32xf32>
      %155 = vector.shape_cast %154 : vector<2x32xf32> to vector<1x2x32xf32>
      %156 = vector.shape_cast %155 : vector<1x2x32xf32> to vector<1x2x32xf32>
      %157 = vector.broadcast %156 : vector<1x2x32xf32> to vector<2x2x32xf32>
      %c0_78 = arith.constant 0 : index
      %c0_79 = arith.constant 0 : index
      %c0_80 = arith.constant 0 : index
      %158 = vector.load %arg18[%c0_78, %c0_79, %c0_80] : memref<2x6x32xf32, #tpu.memory_space<vmem>>, vector<2x2x32xf32>
      tpu.vector_store %arg18[%c0_78, %c0_79, %c0_80], %157 {strides = array<i32>} : memref<2x6x32xf32, #tpu.memory_space<vmem>>, vector<2x2x32xf32>,
      %c0_81 = arith.constant 0 : index
      %c2 = arith.constant 2 : index
      %c0_82 = arith.constant 0 : index
      %159 = vector.load %arg18[%c0_81, %c2, %c0_82] : memref<2x6x32xf32, #tpu.memory_space<vmem>>, vector<2x4x32xf32>
      tpu.vector_store %arg18[%c0_81, %c2, %c0_82], %152 {strides = array<i32>} : memref<2x6x32xf32, #tpu.memory_space<vmem>>, vector<2x4x32xf32>,
    } else {
    }
    %c0 = arith.constant 0 : index
    %c0_1 = arith.constant 0 : index
    %c0_2 = arith.constant 0 : index
    %3 = vector.load %arg18[%c0, %c0_1, %c0_2] : memref<2x6x32xf32, #tpu.memory_space<vmem>>, vector<2x6x32xf32>
    %4 = vector.shape_cast %3 : vector<2x6x32xf32> to vector<12x32xf32>
    %5 = arith.truncf %4 : vector<12x32xf32> to vector<12x32xbf16>
    %c0_3 = arith.constant 0 : index
    %c0_4 = arith.constant 0 : index
    %c0_5 = arith.constant 0 : index
    %c0_6 = arith.constant 0 : index
    %6 = vector.load %arg7[%c0_3, %c0_4, %c0_5, %c0_6] : memref<1x1x32x96xbf16, #tpu.memory_space<vmem>>, vector<1x1x32x96xbf16>
    %7 = vector.shape_cast %6 : vector<1x1x32x96xbf16> to vector<32x96xbf16>
    %cst = arith.constant dense<0.000000e+00> : vector<12x96xf32>
    %8 = tpu.matmul %5, %7, %cst {dimension_numbers = #tpu.dot_dimension_numbers<[1], [0], [0], [1], [0, 0, 1, 1], [], []>} : vector<12x32xbf16>, vector<32x96xbf16>, vector<12x96xf32> -> vector<12x96xf32>
    %c0_7 = arith.constant 0 : index
    %c0_8 = arith.constant 0 : index
    %c0_9 = arith.constant 0 : index
    %c0_10 = arith.constant 0 : index
    %9 = vector.load %arg8[%c0_7, %c0_8, %c0_9, %c0_10] : memref<1x1x1x96xf32, #tpu.memory_space<vmem>>, vector<1x1x1x96xf32>
    %10 = vector.shape_cast %9 : vector<1x1x1x96xf32> to vector<1x96xf32>
    %11 = vector.broadcast %10 : vector<1x96xf32> to vector<12x96xf32>
    %12 = arith.addf %8, %11 : vector<12x96xf32>
    %13 = vector.shape_cast %12 : vector<12x96xf32> to vector<2x6x96xf32>
    %14 = vector.extract_strided_slice %13 {offsets = [0, 0, 0], sizes = [2, 6, 8], strides = [1, 1, 1]} : vector<2x6x96xf32> to vector<2x6x8xf32>
    %15 = arith.truncf %14 : vector<2x6x8xf32> to vector<2x6x8xbf16>
    %16 = vector.extract_strided_slice %13 {offsets = [0, 0, 32], sizes = [2, 6, 8], strides = [1, 1, 1]} : vector<2x6x96xf32> to vector<2x6x8xf32>
    %17 = arith.truncf %16 : vector<2x6x8xf32> to vector<2x6x8xbf16>
    %18 = vector.extract_strided_slice %13 {offsets = [0, 0, 64], sizes = [2, 6, 8], strides = [1, 1, 1]} : vector<2x6x96xf32> to vector<2x6x8xf32>
    %19 = arith.truncf %18 : vector<2x6x8xf32> to vector<2x6x8xbf16>
    "tpu.trace_start"() <{level = 10 : i32, message = "bqd,bkd->bqk"}> : () -> ()
    %cst_11 = arith.constant dense<0.000000e+00> : vector<2x6x6xf32>
    %20 = tpu.matmul %15, %17, %cst_11 {dimension_numbers = #tpu.dot_dimension_numbers<[2], [2], [1], [1], [0, 0, 0, 1, 1, 1], [0], [0]>} : vector<2x6x8xbf16>, vector<2x6x8xbf16>, vector<2x6x6xf32> -> vector<2x6x6xf32>
    "tpu.trace_stop"() : () -> ()
    %cst_12 = arith.constant 0.353553385 : f32
    %21 = vector.broadcast %cst_12 : f32 to vector<2x6x6xf32>
    %22 = arith.mulf %20, %21 : vector<2x6x6xf32>
    %cst_13 = arith.constant dense<0xFF800000> : vector<2x6xf32>
    %23 = vector.multi_reduction <maximumf>, %22, %cst_13 [2] : vector<2x6x6xf32> to vector<2x6xf32>
    %24 = vector.shape_cast %23 : vector<2x6xf32> to vector<2x6x1xf32>
    %25 = vector.broadcast %24 : vector<2x6x1xf32> to vector<2x6x6xf32>
    %26 = arith.subf %22, %25 : vector<2x6x6xf32>
    %27 = math.exp %26 : vector<2x6x6xf32>
    %cst_14 = arith.constant dense<0.000000e+00> : vector<2x6xf32>
    %28 = vector.multi_reduction <add>, %27, %cst_14 [2] : vector<2x6x6xf32> to vector<2x6xf32>
    %29 = vector.shape_cast %28 : vector<2x6xf32> to vector<2x6x1xf32>
    %30 = tpu.reciprocal %29 {approx = true} : vector<2x6x1xf32> -> vector<2x6x1xf32>
    %31 = vector.broadcast %30 : vector<2x6x1xf32> to vector<2x6x6xf32>
    %32 = arith.mulf %27, %31 : vector<2x6x6xf32>
    %33 = arith.truncf %32 : vector<2x6x6xf32> to vector<2x6x6xbf16>
    "tpu.trace_start"() <{level = 10 : i32, message = "bqk,bkd->bqd"}> : () -> ()
    %cst_15 = arith.constant dense<0.000000e+00> : vector<2x6x8xf32>
    %34 = tpu.matmul %33, %19, %cst_15 {dimension_numbers = #tpu.dot_dimension_numbers<[2], [1], [1], [2], [0, 0, 0, 1, 1, 2], [0], [0]>} : vector<2x6x6xbf16>, vector<2x6x8xbf16>, vector<2x6x8xf32> -> vector<2x6x8xf32>
    "tpu.trace_stop"() : () -> ()
    %35 = vector.extract_strided_slice %13 {offsets = [0, 0, 8], sizes = [2, 6, 8], strides = [1, 1, 1]} : vector<2x6x96xf32> to vector<2x6x8xf32>
    %36 = arith.truncf %35 : vector<2x6x8xf32> to vector<2x6x8xbf16>
    %37 = vector.extract_strided_slice %13 {offsets = [0, 0, 40], sizes = [2, 6, 8], strides = [1, 1, 1]} : vector<2x6x96xf32> to vector<2x6x8xf32>
    %38 = arith.truncf %37 : vector<2x6x8xf32> to vector<2x6x8xbf16>
    %39 = vector.extract_strided_slice %13 {offsets = [0, 0, 72], sizes = [2, 6, 8], strides = [1, 1, 1]} : vector<2x6x96xf32> to vector<2x6x8xf32>
    %40 = arith.truncf %39 : vector<2x6x8xf32> to vector<2x6x8xbf16>
    "tpu.trace_start"() <{level = 10 : i32, message = "bqd,bkd->bqk"}> : () -> ()
    %cst_16 = arith.constant dense<0.000000e+00> : vector<2x6x6xf32>
    %41 = tpu.matmul %36, %38, %cst_16 {dimension_numbers = #tpu.dot_dimension_numbers<[2], [2], [1], [1], [0, 0, 0, 1, 1, 1], [0], [0]>} : vector<2x6x8xbf16>, vector<2x6x8xbf16>, vector<2x6x6xf32> -> vector<2x6x6xf32>
    "tpu.trace_stop"() : () -> ()
    %cst_17 = arith.constant 0.353553385 : f32
    %42 = vector.broadcast %cst_17 : f32 to vector<2x6x6xf32>
    %43 = arith.mulf %41, %42 : vector<2x6x6xf32>
    %cst_18 = arith.constant dense<0xFF800000> : vector<2x6xf32>
    %44 = vector.multi_reduction <maximumf>, %43, %cst_18 [2] : vector<2x6x6xf32> to vector<2x6xf32>
    %45 = vector.shape_cast %44 : vector<2x6xf32> to vector<2x6x1xf32>
    %46 = vector.broadcast %45 : vector<2x6x1xf32> to vector<2x6x6xf32>
    %47 = arith.subf %43, %46 : vector<2x6x6xf32>
    %48 = math.exp %47 : vector<2x6x6xf32>
    %cst_19 = arith.constant dense<0.000000e+00> : vector<2x6xf32>
    %49 = vector.multi_reduction <add>, %48, %cst_19 [2] : vector<2x6x6xf32> to vector<2x6xf32>
    %50 = vector.shape_cast %49 : vector<2x6xf32> to vector<2x6x1xf32>
    %51 = tpu.reciprocal %50 {approx = true} : vector<2x6x1xf32> -> vector<2x6x1xf32>
    %52 = vector.broadcast %51 : vector<2x6x1xf32> to vector<2x6x6xf32>
    %53 = arith.mulf %48, %52 : vector<2x6x6xf32>
    %54 = arith.truncf %53 : vector<2x6x6xf32> to vector<2x6x6xbf16>
    "tpu.trace_start"() <{level = 10 : i32, message = "bqk,bkd->bqd"}> : () -> ()
    %cst_20 = arith.constant dense<0.000000e+00> : vector<2x6x8xf32>
    %55 = tpu.matmul %54, %40, %cst_20 {dimension_numbers = #tpu.dot_dimension_numbers<[2], [1], [1], [2], [0, 0, 0, 1, 1, 2], [0], [0]>} : vector<2x6x6xbf16>, vector<2x6x8xbf16>, vector<2x6x8xf32> -> vector<2x6x8xf32>
    "tpu.trace_stop"() : () -> ()
    %56 = vector.extract_strided_slice %13 {offsets = [0, 0, 16], sizes = [2, 6, 8], strides = [1, 1, 1]} : vector<2x6x96xf32> to vector<2x6x8xf32>
    %57 = arith.truncf %56 : vector<2x6x8xf32> to vector<2x6x8xbf16>
    %58 = vector.extract_strided_slice %13 {offsets = [0, 0, 48], sizes = [2, 6, 8], strides = [1, 1, 1]} : vector<2x6x96xf32> to vector<2x6x8xf32>
    %59 = arith.truncf %58 : vector<2x6x8xf32> to vector<2x6x8xbf16>
    %60 = vector.extract_strided_slice %13 {offsets = [0, 0, 80], sizes = [2, 6, 8], strides = [1, 1, 1]} : vector<2x6x96xf32> to vector<2x6x8xf32>
    %61 = arith.truncf %60 : vector<2x6x8xf32> to vector<2x6x8xbf16>
    "tpu.trace_start"() <{level = 10 : i32, message = "bqd,bkd->bqk"}> : () -> ()
    %cst_21 = arith.constant dense<0.000000e+00> : vector<2x6x6xf32>
    %62 = tpu.matmul %57, %59, %cst_21 {dimension_numbers = #tpu.dot_dimension_numbers<[2], [2], [1], [1], [0, 0, 0, 1, 1, 1], [0], [0]>} : vector<2x6x8xbf16>, vector<2x6x8xbf16>, vector<2x6x6xf32> -> vector<2x6x6xf32>
    "tpu.trace_stop"() : () -> ()
    %cst_22 = arith.constant 0.353553385 : f32
    %63 = vector.broadcast %cst_22 : f32 to vector<2x6x6xf32>
    %64 = arith.mulf %62, %63 : vector<2x6x6xf32>
    %cst_23 = arith.constant dense<0xFF800000> : vector<2x6xf32>
    %65 = vector.multi_reduction <maximumf>, %64, %cst_23 [2] : vector<2x6x6xf32> to vector<2x6xf32>
    %66 = vector.shape_cast %65 : vector<2x6xf32> to vector<2x6x1xf32>
    %67 = vector.broadcast %66 : vector<2x6x1xf32> to vector<2x6x6xf32>
    %68 = arith.subf %64, %67 : vector<2x6x6xf32>
    %69 = math.exp %68 : vector<2x6x6xf32>
    %cst_24 = arith.constant dense<0.000000e+00> : vector<2x6xf32>
    %70 = vector.multi_reduction <add>, %69, %cst_24 [2] : vector<2x6x6xf32> to vector<2x6xf32>
    %71 = vector.shape_cast %70 : vector<2x6xf32> to vector<2x6x1xf32>
    %72 = tpu.reciprocal %71 {approx = true} : vector<2x6x1xf32> -> vector<2x6x1xf32>
    %73 = vector.broadcast %72 : vector<2x6x1xf32> to vector<2x6x6xf32>
    %74 = arith.mulf %69, %73 : vector<2x6x6xf32>
    %75 = arith.truncf %74 : vector<2x6x6xf32> to vector<2x6x6xbf16>
    "tpu.trace_start"() <{level = 10 : i32, message = "bqk,bkd->bqd"}> : () -> ()
    %cst_25 = arith.constant dense<0.000000e+00> : vector<2x6x8xf32>
    %76 = tpu.matmul %75, %61, %cst_25 {dimension_numbers = #tpu.dot_dimension_numbers<[2], [1], [1], [2], [0, 0, 0, 1, 1, 2], [0], [0]>} : vector<2x6x6xbf16>, vector<2x6x8xbf16>, vector<2x6x8xf32> -> vector<2x6x8xf32>
    "tpu.trace_stop"() : () -> ()
    %77 = vector.extract_strided_slice %13 {offsets = [0, 0, 24], sizes = [2, 6, 8], strides = [1, 1, 1]} : vector<2x6x96xf32> to vector<2x6x8xf32>
    %78 = arith.truncf %77 : vector<2x6x8xf32> to vector<2x6x8xbf16>
    %79 = vector.extract_strided_slice %13 {offsets = [0, 0, 56], sizes = [2, 6, 8], strides = [1, 1, 1]} : vector<2x6x96xf32> to vector<2x6x8xf32>
    %80 = arith.truncf %79 : vector<2x6x8xf32> to vector<2x6x8xbf16>
    %81 = vector.extract_strided_slice %13 {offsets = [0, 0, 88], sizes = [2, 6, 8], strides = [1, 1, 1]} : vector<2x6x96xf32> to vector<2x6x8xf32>
    %82 = arith.truncf %81 : vector<2x6x8xf32> to vector<2x6x8xbf16>
    "tpu.trace_start"() <{level = 10 : i32, message = "bqd,bkd->bqk"}> : () -> ()
    %cst_26 = arith.constant dense<0.000000e+00> : vector<2x6x6xf32>
    %83 = tpu.matmul %78, %80, %cst_26 {dimension_numbers = #tpu.dot_dimension_numbers<[2], [2], [1], [1], [0, 0, 0, 1, 1, 1], [0], [0]>} : vector<2x6x8xbf16>, vector<2x6x8xbf16>, vector<2x6x6xf32> -> vector<2x6x6xf32>
    "tpu.trace_stop"() : () -> ()
    %cst_27 = arith.constant 0.353553385 : f32
    %84 = vector.broadcast %cst_27 : f32 to vector<2x6x6xf32>
    %85 = arith.mulf %83, %84 : vector<2x6x6xf32>
    %cst_28 = arith.constant dense<0xFF800000> : vector<2x6xf32>
    %86 = vector.multi_reduction <maximumf>, %85, %cst_28 [2] : vector<2x6x6xf32> to vector<2x6xf32>
    %87 = vector.shape_cast %86 : vector<2x6xf32> to vector<2x6x1xf32>
    %88 = vector.broadcast %87 : vector<2x6x1xf32> to vector<2x6x6xf32>
    %89 = arith.subf %85, %88 : vector<2x6x6xf32>
    %90 = math.exp %89 : vector<2x6x6xf32>
    %cst_29 = arith.constant dense<0.000000e+00> : vector<2x6xf32>
    %91 = vector.multi_reduction <add>, %90, %cst_29 [2] : vector<2x6x6xf32> to vector<2x6xf32>
    %92 = vector.shape_cast %91 : vector<2x6xf32> to vector<2x6x1xf32>
    %93 = tpu.reciprocal %92 {approx = true} : vector<2x6x1xf32> -> vector<2x6x1xf32>
    %94 = vector.broadcast %93 : vector<2x6x1xf32> to vector<2x6x6xf32>
    %95 = arith.mulf %90, %94 : vector<2x6x6xf32>
    %96 = arith.truncf %95 : vector<2x6x6xf32> to vector<2x6x6xbf16>
    "tpu.trace_start"() <{level = 10 : i32, message = "bqk,bkd->bqd"}> : () -> ()
    %cst_30 = arith.constant dense<0.000000e+00> : vector<2x6x8xf32>
    %97 = tpu.matmul %96, %82, %cst_30 {dimension_numbers = #tpu.dot_dimension_numbers<[2], [1], [1], [2], [0, 0, 0, 1, 1, 2], [0], [0]>} : vector<2x6x6xbf16>, vector<2x6x8xbf16>, vector<2x6x8xf32> -> vector<2x6x8xf32>
    "tpu.trace_stop"() : () -> ()
    %98 = tpu.concatenate %34, %55, %76, %97 in 2 : vector<2x6x8xf32>, vector<2x6x8xf32>, vector<2x6x8xf32>, vector<2x6x8xf32> -> vector<2x6x32xf32>
    %99 = vector.shape_cast %98 : vector<2x6x32xf32> to vector<12x32xf32>
    %100 = arith.truncf %99 : vector<12x32xf32> to vector<12x32xbf16>
    %c0_31 = arith.constant 0 : index
    %c0_32 = arith.constant 0 : index
    %c0_33 = arith.constant 0 : index
    %c0_34 = arith.constant 0 : index
    %101 = vector.load %arg9[%c0_31, %c0_32, %c0_33, %c0_34] : memref<1x1x32x32xbf16, #tpu.memory_space<vmem>>, vector<1x1x32x32xbf16>
    %102 = vector.shape_cast %101 : vector<1x1x32x32xbf16> to vector<32x32xbf16>
    %cst_35 = arith.constant dense<0.000000e+00> : vector<12x32xf32>
    %103 = tpu.matmul %100, %102, %cst_35 {dimension_numbers = #tpu.dot_dimension_numbers<[1], [0], [0], [1], [0, 0, 1, 1], [], []>} : vector<12x32xbf16>, vector<32x32xbf16>, vector<12x32xf32> -> vector<12x32xf32>
    %c0_36 = arith.constant 0 : index
    %c0_37 = arith.constant 0 : index
    %c0_38 = arith.constant 0 : index
    %c0_39 = arith.constant 0 : index
    %104 = vector.load %arg10[%c0_36, %c0_37, %c0_38, %c0_39] : memref<1x1x1x32xf32, #tpu.memory_space<vmem>>, vector<1x1x1x32xf32>
    %105 = vector.shape_cast %104 : vector<1x1x1x32xf32> to vector<1x32xf32>
    %106 = vector.broadcast %105 : vector<1x32xf32> to vector<12x32xf32>
    %107 = arith.addf %103, %106 : vector<12x32xf32>
    %108 = arith.addf %4, %107 : vector<12x32xf32>
    %109 = arith.truncf %108 : vector<12x32xf32> to vector<12x32xbf16>
    %c0_40 = arith.constant 0 : index
    %c0_41 = arith.constant 0 : index
    %c0_42 = arith.constant 0 : index
    %c0_43 = arith.constant 0 : index
    %110 = vector.load %arg11[%c0_40, %c0_41, %c0_42, %c0_43] : memref<1x1x32x128xbf16, #tpu.memory_space<vmem>>, vector<1x1x32x128xbf16>
    %111 = vector.shape_cast %110 : vector<1x1x32x128xbf16> to vector<32x128xbf16>
    %cst_44 = arith.constant dense<0.000000e+00> : vector<12x128xf32>
    %112 = tpu.matmul %109, %111, %cst_44 {dimension_numbers = #tpu.dot_dimension_numbers<[1], [0], [0], [1], [0, 0, 1, 1], [], []>} : vector<12x32xbf16>, vector<32x128xbf16>, vector<12x128xf32> -> vector<12x128xf32>
    %c0_45 = arith.constant 0 : index
    %c0_46 = arith.constant 0 : index
    %c0_47 = arith.constant 0 : index
    %c0_48 = arith.constant 0 : index
    %113 = vector.load %arg12[%c0_45, %c0_46, %c0_47, %c0_48] : memref<1x1x1x128xf32, #tpu.memory_space<vmem>>, vector<1x1x1x128xf32>
    %114 = vector.shape_cast %113 : vector<1x1x1x128xf32> to vector<1x128xf32>
    %115 = vector.broadcast %114 : vector<1x128xf32> to vector<12x128xf32>
    %116 = arith.addf %112, %115 : vector<12x128xf32>
    %cst_49 = arith.constant 1.702000e+00 : f32
    %117 = vector.broadcast %cst_49 : f32 to vector<12x128xf32>
    %118 = arith.mulf %117, %116 : vector<12x128xf32>
    %119 = arith.negf %118 : vector<12x128xf32>
    %120 = math.exp %119 : vector<12x128xf32>
    %cst_50 = arith.constant 1.000000e+00 : f32
    %121 = vector.broadcast %cst_50 : f32 to vector<12x128xf32>
    %122 = arith.addf %121, %120 : vector<12x128xf32>
    %123 = arith.divf %121, %122 : vector<12x128xf32>
    %124 = arith.mulf %116, %123 : vector<12x128xf32>
    %125 = arith.truncf %124 : vector<12x128xf32> to vector<12x128xbf16>
    %c0_51 = arith.constant 0 : index
    %c0_52 = arith.constant 0 : index
    %c0_53 = arith.constant 0 : index
    %c0_54 = arith.constant 0 : index
    %126 = vector.load %arg13[%c0_51, %c0_52, %c0_53, %c0_54] : memref<1x1x128x32xbf16, #tpu.memory_space<vmem>>, vector<1x1x128x32xbf16>
    %127 = vector.shape_cast %126 : vector<1x1x128x32xbf16> to vector<128x32xbf16>
    %cst_55 = arith.constant dense<0.000000e+00> : vector<12x32xf32>
    %128 = tpu.matmul %125, %127, %cst_55 {dimension_numbers = #tpu.dot_dimension_numbers<[1], [0], [0], [1], [0, 0, 1, 1], [], []>} : vector<12x128xbf16>, vector<128x32xbf16>, vector<12x32xf32> -> vector<12x32xf32>
    %c0_56 = arith.constant 0 : index
    %c0_57 = arith.constant 0 : index
    %c0_58 = arith.constant 0 : index
    %c0_59 = arith.constant 0 : index
    %129 = vector.load %arg14[%c0_56, %c0_57, %c0_58, %c0_59] : memref<1x1x1x32xf32, #tpu.memory_space<vmem>>, vector<1x1x1x32xf32>
    %130 = vector.shape_cast %129 : vector<1x1x1x32xf32> to vector<1x32xf32>
    %131 = vector.broadcast %130 : vector<1x32xf32> to vector<12x32xf32>
    %132 = arith.addf %128, %131 : vector<12x32xf32>
    %133 = arith.addf %108, %132 : vector<12x32xf32>
    %134 = vector.shape_cast %133 : vector<12x32xf32> to vector<2x6x32xf32>
    %c0_60 = arith.constant 0 : index
    %c0_61 = arith.constant 0 : index
    %c0_62 = arith.constant 0 : index
    %135 = vector.load %arg18[%c0_60, %c0_61, %c0_62] : memref<2x6x32xf32, #tpu.memory_space<vmem>>, vector<2x6x32xf32>
    tpu.vector_store %arg18[%c0_60, %c0_61, %c0_62], %134 {strides = array<i32>} : memref<2x6x32xf32, #tpu.memory_space<vmem>>, vector<2x6x32xf32>,
    %c1_i32 = arith.constant 1 : i32
    %136 = arith.cmpi eq, %arg1, %c1_i32 : i32
    %137 = arith.extui %136 : i1 to i32
    %c0_i32_63 = arith.constant 0 : i32
    %138 = arith.cmpi ne, %137, %c0_i32_63 : i32
    scf.if %138 {
      %139 = vector.shape_cast %133 : vector<12x32xf32> to vector<2x6x32xf32>
      %140 = vector.extract_strided_slice %139 {offsets = [0, 1, 0], sizes = [2, 1, 32], strides = [1, 1, 1]} : vector<2x6x32xf32> to vector<2x1x32xf32>
      %141 = vector.shape_cast %140 : vector<2x1x32xf32> to vector<2x32xf32>
      %142 = arith.truncf %141 : vector<2x32xf32> to vector<2x32xbf16>
      %c0_64 = arith.constant 0 : index
      %c0_65 = arith.constant 0 : index
      %c0_66 = arith.constant 0 : index
      %143 = vector.load %arg15[%c0_64, %c0_65, %c0_66] : memref<1x32x128xbf16, #tpu.memory_space<vmem>>, vector<1x32x128xbf16>
      %144 = vector.shape_cast %143 : vector<1x32x128xbf16> to vector<32x128xbf16>
      %cst_67 = arith.constant dense<0.000000e+00> : vector<2x128xf32>
      %145 = tpu.matmul %142, %144, %cst_67 {dimension_numbers = #tpu.dot_dimension_numbers<[1], [0], [0], [1], [0, 0, 1, 1], [], []>} : vector<2x32xbf16>, vector<32x128xbf16>, vector<2x128xf32> -> vector<2x128xf32>
      %c0_68 = arith.constant 0 : index
      %c0_69 = arith.constant 0 : index
      %c0_70 = arith.constant 0 : index
      %146 = vector.load %arg16[%c0_68, %c0_69, %c0_70] : memref<1x1x128xf32, #tpu.memory_space<vmem>>, vector<1x1x128xf32>
      %147 = vector.shape_cast %146 : vector<1x1x128xf32> to vector<1x128xf32>
      %148 = vector.broadcast %147 : vector<1x128xf32> to vector<2x128xf32>
      %149 = arith.addf %145, %148 : vector<2x128xf32>
      %c0_71 = arith.constant 0 : index
      %c0_72 = arith.constant 0 : index
      %c0_73 = arith.constant 0 : index
      %150 = vector.load %arg17[%c0_71, %c0_72, %c0_73] : memref<1x2x128xf32, #tpu.memory_space<vmem>>, vector<1x2x128xf32>
      %151 = vector.shape_cast %150 : vector<1x2x128xf32> to vector<2x128xf32>
      %152 = vector.shape_cast %149 : vector<2x128xf32> to vector<1x2x128xf32>
      tpu.vector_store %arg17[%c0_71, %c0_72, %c0_73], %152 {strides = array<i32>} : memref<1x2x128xf32, #tpu.memory_space<vmem>>, vector<1x2x128xf32>,
    } else {
    }
    return
  }
  func.func @transform_0(%arg0: i32, %arg1: i32) -> (i32, i32) {
    %c0_i32 = arith.constant 0 : i32
    %c0_i32_0 = arith.constant 0 : i32
    %c0_i32_1 = arith.constant 0 : i32
    return %c0_i32, %c0_i32_0 : i32, i32
  }
  func.func @transform_1(%arg0: i32, %arg1: i32) -> (i32, i32) {
    %c0_i32 = arith.constant 0 : i32
    %c0_i32_0 = arith.constant 0 : i32
    %c0_i32_1 = arith.constant 0 : i32
    return %c0_i32, %c0_i32_0 : i32, i32
  }
  func.func @transform_2(%arg0: i32, %arg1: i32) -> (i32, i32, i32) {
    %c0_i32 = arith.constant 0 : i32
    %c0_i32_0 = arith.constant 0 : i32
    %c0_i32_1 = arith.constant 0 : i32
    return %arg0, %c0_i32, %c0_i32_0 : i32, i32, i32
  }
  func.func @transform_3(%arg0: i32, %arg1: i32) -> (i32, i32, i32) {
    %c0_i32 = arith.constant 0 : i32
    %c0_i32_0 = arith.constant 0 : i32
    %c0_i32_1 = arith.constant 0 : i32
    return %arg0, %c0_i32, %c0_i32_0 : i32, i32, i32
  }
  func.func @transform_4(%arg0: i32, %arg1: i32) -> (i32, i32, i32) {
    %c0_i32 = arith.constant 0 : i32
    %c0_i32_0 = arith.constant 0 : i32
    %c0_i32_1 = arith.constant 0 : i32
    return %arg0, %c0_i32, %c0_i32_0 : i32, i32, i32
  }
  func.func @transform_5(%arg0: i32, %arg1: i32) -> (i32, i32, i32, i32) {
    %c0_i32 = arith.constant 0 : i32
    %c0_i32_0 = arith.constant 0 : i32
    %c0_i32_1 = arith.constant 0 : i32
    return %arg0, %arg1, %c0_i32, %c0_i32_0 : i32, i32, i32, i32
  }
  func.func @transform_6(%arg0: i32, %arg1: i32) -> (i32, i32, i32, i32) {
    %c0_i32 = arith.constant 0 : i32
    %c0_i32_0 = arith.constant 0 : i32
    %c0_i32_1 = arith.constant 0 : i32
    return %arg0, %arg1, %c0_i32, %c0_i32_0 : i32, i32, i32, i32
  }
  func.func @transform_7(%arg0: i32, %arg1: i32) -> (i32, i32, i32, i32) {
    %c0_i32 = arith.constant 0 : i32
    %c0_i32_0 = arith.constant 0 : i32
    %c0_i32_1 = arith.constant 0 : i32
    return %arg0, %arg1, %c0_i32, %c0_i32_0 : i32, i32, i32, i32
  }
  func.func @transform_8(%arg0: i32, %arg1: i32) -> (i32, i32, i32, i32) {
    %c0_i32 = arith.constant 0 : i32
    %c0_i32_0 = arith.constant 0 : i32
    %c0_i32_1 = arith.constant 0 : i32
    return %arg0, %arg1, %c0_i32, %c0_i32_0 : i32, i32, i32, i32
  }
  func.func @transform_9(%arg0: i32, %arg1: i32) -> (i32, i32, i32, i32) {
    %c0_i32 = arith.constant 0 : i32
    %c0_i32_0 = arith.constant 0 : i32
    %c0_i32_1 = arith.constant 0 : i32
    return %arg0, %arg1, %c0_i32, %c0_i32_0 : i32, i32, i32, i32
  }
  func.func @transform_10(%arg0: i32, %arg1: i32) -> (i32, i32, i32, i32) {
    %c0_i32 = arith.constant 0 : i32
    %c0_i32_0 = arith.constant 0 : i32
    %c0_i32_1 = arith.constant 0 : i32
    return %arg0, %arg1, %c0_i32, %c0_i32_0 : i32, i32, i32, i32
  }
  func.func @transform_11(%arg0: i32, %arg1: i32) -> (i32, i32, i32, i32) {
    %c0_i32 = arith.constant 0 : i32
    %c0_i32_0 = arith.constant 0 : i32
    %c0_i32_1 = arith.constant 0 : i32
    return %arg0, %arg1, %c0_i32, %c0_i32_0 : i32, i32, i32, i32
  }
  func.func @transform_12(%arg0: i32, %arg1: i32) -> (i32, i32, i32, i32) {
    %c0_i32 = arith.constant 0 : i32
    %c0_i32_0 = arith.constant 0 : i32
    %c0_i32_1 = arith.constant 0 : i32
    return %arg0, %arg1, %c0_i32, %c0_i32_0 : i32, i32, i32, i32
  }
  func.func @transform_13(%arg0: i32, %arg1: i32) -> (i32, i32, i32) {
    %c0_i32 = arith.constant 0 : i32
    %c0_i32_0 = arith.constant 0 : i32
    %c0_i32_1 = arith.constant 0 : i32
    return %arg0, %c0_i32, %c0_i32_0 : i32, i32, i32
  }
  func.func @transform_14(%arg0: i32, %arg1: i32) -> (i32, i32, i32) {
    %c0_i32 = arith.constant 0 : i32
    %c0_i32_0 = arith.constant 0 : i32
    %c0_i32_1 = arith.constant 0 : i32
    return %arg0, %c0_i32, %c0_i32_0 : i32, i32, i32
  }
  func.func @transform_15(%arg0: i32, %arg1: i32) -> (i32, i32, i32) {
    %c0_i32 = arith.constant 0 : i32
    %c0_i32_0 = arith.constant 0 : i32
    %c0_i32_1 = arith.constant 0 : i32
    return %arg0, %c0_i32, %c0_i32_0 : i32, i32, i32
  }
}

</mosaic_0001>

<llo_original>
// kernel: combined_forward.1
$region0: #{combined_forward.1}
  #allocation0 [shape = 'u32[]', space=smem, size = 0x4, offset = 0x4, fixed_abs, tag = 'smem constant byte address 0x4 - core index']
  #allocation1 [shape = 'u32[144,128]{1,0:T(1,128)}', space=vmem, size = 0x12000, scoped, tag = 'internal scratch']
  #allocation2 [shape = 'f32[2,6,32]{2,1,0:T(8,128)}', space=vmem, size = 0x2000, scoped, tag = 'scratch operand']
  %s0 = inlined_call_operand.vmem [shape: f32[8,16], index: 0, kind: input, shape index: {}]
  %s1 = inlined_call_operand.vmem [shape: f32[4,32], index: 1, kind: input, shape index: {}]
  %s2 = inlined_call_operand.vmem [shape: bf16[4,16,32], index: 2, kind: input, shape index: {}]
  %s3 = inlined_call_operand.vmem [shape: f32[4,1,32], index: 3, kind: input, shape index: {}]
  %s4 = inlined_call_operand.vmem [shape: f32[4,2,32], index: 4, kind: input, shape index: {}]
  %s5 = inlined_call_operand.vmem [shape: bf16[4,2,32,96], index: 5, kind: input, shape index: {}]
  %s6 = inlined_call_operand.vmem [shape: f32[4,2,1,96], index: 6, kind: input, shape index: {}]
  %s7 = inlined_call_operand.vmem [shape: bf16[4,2,32,32], index: 7, kind: input, shape index: {}]
  %s8 = inlined_call_operand.vmem [shape: f32[4,2,1,32], index: 8, kind: input, shape index: {}]
  %s9 = inlined_call_operand.vmem [shape: bf16[4,2,32,128], index: 9, kind: input, shape index: {}]
  %s10 = inlined_call_operand.vmem [shape: f32[4,2,1,128], index: 10, kind: input, shape index: {}]
  %s11 = inlined_call_operand.vmem [shape: bf16[4,2,128,32], index: 11, kind: input, shape index: {}]
  %s12 = inlined_call_operand.vmem [shape: f32[4,2,1,32], index: 12, kind: input, shape index: {}]
  %s13 = inlined_call_operand.vmem [shape: bf16[4,32,128], index: 13, kind: input, shape index: {}]
  %s14 = inlined_call_operand.vmem [shape: f32[4,1,128], index: 14, kind: input, shape index: {}]
  %s15 = inlined_call_operand.vmem [shape: f32[4,2,128], index: 15, kind: output, shape index: {}]
  %s16 = sld [smem:[#allocation0]]
  $region101: #{combined_forward.1} parent=0
    _
  %s18 = ssub.s32 1, %s16
  %s19 = scalar_select 0, %s18, %s16
  loop: start=0, step=1, limit=10
  $region2: #{combined_forward.1} parent=0 // loop_pre_header
    _
  $region3: #{combined_forward.1} parent=0 // loop_header
    %s21 = sphi 0, %s25
    %p22 = scmp.ge.s32.totalorder %s21, 10
    %s28 = sphi 0, %s40
    %s29 = sphi 0, %s36
    %s30 = sphi 0, %s28
    %s31 = sphi 0, %s29
    %s32 = sphi 0, %s30
    %s33 = sphi 0, %s31
    %s41 = sphi 0, %s41
    %s43 = sphi 0, %s41
    %s44 = sphi 0, %s43
    %s58 = sphi 0, %s44
    %s62 = sphi 0, %s62
    %s64 = sphi 0, %s62
    %s65 = sphi 0, %s64
    %s79 = sphi 0, %s65
    %s85 = sphi 0, %s87
    %s88 = sphi 0, %s85
    %s89 = sphi 0, %s88
    %s105 = sphi 0, %s89
    %s111 = sphi 0, %s113
    %s114 = sphi 0, %s111
    %s115 = sphi 0, %s114
    %s131 = sphi 0, %s115
    %s137 = sphi 0, %s139
    %s140 = sphi 0, %s137
    %s141 = sphi 0, %s140
    %s157 = sphi 0, %s141
    %s165 = sphi 0, %s167
    %s168 = sphi 0, %s165
    %s169 = sphi 0, %s168
    %s185 = sphi 0, %s169
    %s193 = sphi 0, %s195
    %s196 = sphi 0, %s193
    %s197 = sphi 0, %s196
    %s213 = sphi 0, %s197
    %s221 = sphi 0, %s223
    %s224 = sphi 0, %s221
    %s225 = sphi 0, %s224
    %s241 = sphi 0, %s225
    %s249 = sphi 0, %s251
    %s252 = sphi 0, %s249
    %s253 = sphi 0, %s252
    %s269 = sphi 0, %s253
    %s277 = sphi 0, %s279
    %s280 = sphi 0, %s277
    %s281 = sphi 0, %s280
    %s297 = sphi 0, %s281
    %s305 = sphi 0, %s307
    %s308 = sphi 0, %s305
    %s309 = sphi 0, %s308
    %s325 = sphi 0, %s309
    %s333 = sphi 0, %s335
    %s336 = sphi 0, %s333
    %s337 = sphi 0, %s336
    %s353 = sphi 0, %s337
    %s361 = sphi 0, %s363
    %s364 = sphi 0, %s361
    %s365 = sphi 0, %s364
    %s381 = sphi 0, %s365
    %s387 = sphi 0, %s389
    %s390 = sphi 0, %s387
    %s391 = sphi 0, %s390
    %s407 = sphi 0, %s391
    %s413 = sphi 0, %s415
    %s416 = sphi 0, %s413
    %s417 = sphi 0, %s416
    %s433 = sphi 0, %s417
    %s439 = sphi 0, %s441
    %s442 = sphi 0, %s439
    %s443 = sphi 0, %s442
    %s459 = sphi 0, %s443
  $region4: #{combined_forward.1} parent=0 // loop_header_branch
    %24 = sbr.rel (%p22) target = $region8
  $region5: #{combined_forward.1} parent=0 // loop_body
    %s26 = ssub.s32 %s21, 1
    %s27 = ssub.s32 %s21, 2
    %s34 = sadd.s32 1, %s29
    %p35 = scmp.ge.s32.totalorder %s34, 2
    %s36 = scalar_select %p35, 0, %s34
    %s37 = sadd.s32 1, %s28
    %s38 = scalar_select %p35, %s37, %s28
    %p39 = scmp.ge.s32.totalorder %s38, 4
    %s40 = scalar_select %p39, 0, %s38
    %s42 = sadd.s32 %s41, 1
    %p45 = scmp.eq.s32.totalorder %s21, 7
    %p46 = scmp.ne.s32.totalorder %s41, %s43
    %p47 = scmp.eq.s32.totalorder %s21, 0
    %p48 = por %p46, %p47
    %p49 = scmp.ne.s32.totalorder %s41, %s43
    %p50 = scmp.eq.s32.totalorder %s26, 7
    %p51 = por %p49, %p50
    %p52 = scmp.ne.s32.totalorder %s43, %s44
    %p53 = scmp.eq.s32.totalorder %s26, 0
    %p54 = por %p52, %p53
    %p55 = scmp.ne.s32.totalorder %s43, %s44
    %p56 = scmp.eq.s32.totalorder %s27, 7
    %p57 = por %p55, %p56
    %p59 = scmp.ne.s32.totalorder %s44, %s58
    %p60 = scmp.eq.s32.totalorder %s27, 0
    %p61 = por %p59, %p60
    %s63 = sadd.s32 %s62, 1
    %p66 = scmp.eq.s32.totalorder %s21, 7
    %p67 = scmp.ne.s32.totalorder %s62, %s64
    %p68 = scmp.eq.s32.totalorder %s21, 0
    %p69 = por %p67, %p68
    %p70 = scmp.ne.s32.totalorder %s62, %s64
    %p71 = scmp.eq.s32.totalorder %s26, 7
    %p72 = por %p70, %p71
    %p73 = scmp.ne.s32.totalorder %s64, %s65
    %p74 = scmp.eq.s32.totalorder %s26, 0
    %p75 = por %p73, %p74
    %p76 = scmp.ne.s32.totalorder %s64, %s65
    %p77 = scmp.eq.s32.totalorder %s27, 7
    %p78 = por %p76, %p77
    %p80 = scmp.ne.s32.totalorder %s65, %s79
    %p81 = scmp.eq.s32.totalorder %s27, 0
    %p82 = por %p80, %p81
    %s83 = ssub.s32 %s28, %s40
    %p84 = scmp.eq.s32.totalorder %s83, 0
    %s86 = sadd.s32 %s85, 1
    %s87 = scalar_select %p84, %s85, %s86
    %p90 = pneg %p84
    %p91 = scmp.eq.s32.totalorder %s21, 7
    %p92 = por %p90, %p91
    %p93 = scmp.ne.s32.totalorder %s85, %s88
    %p94 = scmp.eq.s32.totalorder %s21, 0
    %p95 = por %p93, %p94
    %p96 = scmp.ne.s32.totalorder %s85, %s88
    %p97 = scmp.eq.s32.totalorder %s26, 7
    %p98 = por %p96, %p97
    %p99 = scmp.ne.s32.totalorder %s88, %s89
    %p100 = scmp.eq.s32.totalorder %s26, 0
    %p101 = por %p99, %p100
    %p102 = scmp.ne.s32.totalorder %s88, %s89
    %p103 = scmp.eq.s32.totalorder %s27, 7
    %p104 = por %p102, %p103
    %p106 = scmp.ne.s32.totalorder %s89, %s105
    %p107 = scmp.eq.s32.totalorder %s27, 0
    %p108 = por %p106, %p107
    %s109 = ssub.s32 %s28, %s40
    %p110 = scmp.eq.s32.totalorder %s109, 0
    %s112 = sadd.s32 %s111, 1
    %s113 = scalar_select %p110, %s111, %s112
    %p116 = pneg %p110
    %p117 = scmp.eq.s32.totalorder %s21, 7
    %p118 = por %p116, %p117
    %p119 = scmp.ne.s32.totalorder %s111, %s114
    %p120 = scmp.eq.s32.totalorder %s21, 0
    %p121 = por %p119, %p120
    %p122 = scmp.ne.s32.totalorder %s111, %s114
    %p123 = scmp.eq.s32.totalorder %s26, 7
    %p124 = por %p122, %p123
    %p125 = scmp.ne.s32.totalorder %s114, %s115
    %p126 = scmp.eq.s32.totalorder %s26, 0
    %p127 = por %p125, %p126
    %p128 = scmp.ne.s32.totalorder %s114, %s115
    %p129 = scmp.eq.s32.totalorder %s27, 7
    %p130 = por %p128, %p129
    %p132 = scmp.ne.s32.totalorder %s115, %s131
    %p133 = scmp.eq.s32.totalorder %s27, 0
    %p134 = por %p132, %p133
    %s135 = ssub.s32 %s28, %s40
    %p136 = scmp.eq.s32.totalorder %s135, 0
    %s138 = sadd.s32 %s137, 1
    %s139 = scalar_select %p136, %s137, %s138
    %p142 = pneg %p136
    %p143 = scmp.eq.s32.totalorder %s21, 7
    %p144 = por %p142, %p143
    %p145 = scmp.ne.s32.totalorder %s137, %s140
    %p146 = scmp.eq.s32.totalorder %s21, 0
    %p147 = por %p145, %p146
    %p148 = scmp.ne.s32.totalorder %s137, %s140
    %p149 = scmp.eq.s32.totalorder %s26, 7
    %p150 = por %p148, %p149
    %p151 = scmp.ne.s32.totalorder %s140, %s141
    %p152 = scmp.eq.s32.totalorder %s26, 0
    %p153 = por %p151, %p152
    %p154 = scmp.ne.s32.totalorder %s140, %s141
    %p155 = scmp.eq.s32.totalorder %s27, 7
    %p156 = por %p154, %p155
    %p158 = scmp.ne.s32.totalorder %s141, %s157
    %p159 = scmp.eq.s32.totalorder %s27, 0
    %p160 = por %p158, %p159
    %s161 = ssub.s32 %s28, %s40
    %s162 = ssub.s32 %s29, %s36
    %s163 = sor.u32 %s161, %s162
    %p164 = scmp.eq.s32.totalorder %s163, 0
    %s166 = sadd.s32 %s165, 1
    %s167 = scalar_select %p164, %s165, %s166
    %p170 = pneg %p164
    %p171 = scmp.eq.s32.totalorder %s21, 7
    %p172 = por %p170, %p171
    %p173 = scmp.ne.s32.totalorder %s165, %s168
    %p174 = scmp.eq.s32.totalorder %s21, 0
    %p175 = por %p173, %p174
    %p176 = scmp.ne.s32.totalorder %s165, %s168
    %p177 = scmp.eq.s32.totalorder %s26, 7
    %p178 = por %p176, %p177
    %p179 = scmp.ne.s32.totalorder %s168, %s169
    %p180 = scmp.eq.s32.totalorder %s26, 0
    %p181 = por %p179, %p180
    %p182 = scmp.ne.s32.totalorder %s168, %s169
    %p183 = scmp.eq.s32.totalorder %s27, 7
    %p184 = por %p182, %p183
    %p186 = scmp.ne.s32.totalorder %s169, %s185
    %p187 = scmp.eq.s32.totalorder %s27, 0
    %p188 = por %p186, %p187
    %s189 = ssub.s32 %s28, %s40
    %s190 = ssub.s32 %s29, %s36
    %s191 = sor.u32 %s189, %s190
    %p192 = scmp.eq.s32.totalorder %s191, 0
    %s194 = sadd.s32 %s193, 1
    %s195 = scalar_select %p192, %s193, %s194
    %p198 = pneg %p192
    %p199 = scmp.eq.s32.totalorder %s21, 7
    %p200 = por %p198, %p199
    %p201 = scmp.ne.s32.totalorder %s193, %s196
    %p202 = scmp.eq.s32.totalorder %s21, 0
    %p203 = por %p201, %p202
    %p204 = scmp.ne.s32.totalorder %s193, %s196
    %p205 = scmp.eq.s32.totalorder %s26, 7
    %p206 = por %p204, %p205
    %p207 = scmp.ne.s32.totalorder %s196, %s197
    %p208 = scmp.eq.s32.totalorder %s26, 0
    %p209 = por %p207, %p208
    %p210 = scmp.ne.s32.totalorder %s196, %s197
    %p211 = scmp.eq.s32.totalorder %s27, 7
    %p212 = por %p210, %p211
    %p214 = scmp.ne.s32.totalorder %s197, %s213
    %p215 = scmp.eq.s32.totalorder %s27, 0
    %p216 = por %p214, %p215
    %s217 = ssub.s32 %s28, %s40
    %s218 = ssub.s32 %s29, %s36
    %s219 = sor.u32 %s217, %s218
    %p220 = scmp.eq.s32.totalorder %s219, 0
    %s222 = sadd.s32 %s221, 1
    %s223 = scalar_select %p220, %s221, %s222
    %p226 = pneg %p220
    %p227 = scmp.eq.s32.totalorder %s21, 7
    %p228 = por %p226, %p227
    %p229 = scmp.ne.s32.totalorder %s221, %s224
    %p230 = scmp.eq.s32.totalorder %s21, 0
    %p231 = por %p229, %p230
    %p232 = scmp.ne.s32.totalorder %s221, %s224
    %p233 = scmp.eq.s32.totalorder %s26, 7
    %p234 = por %p232, %p233
    %p235 = scmp.ne.s32.totalorder %s224, %s225
    %p236 = scmp.eq.s32.totalorder %s26, 0
    %p237 = por %p235, %p236
    %p238 = scmp.ne.s32.totalorder %s224, %s225
    %p239 = scmp.eq.s32.totalorder %s27, 7
    %p240 = por %p238, %p239
    %p242 = scmp.ne.s32.totalorder %s225, %s241
    %p243 = scmp.eq.s32.totalorder %s27, 0
    %p244 = por %p242, %p243
    %s245 = ssub.s32 %s28, %s40
    %s246 = ssub.s32 %s29, %s36
    %s247 = sor.u32 %s245, %s246
    %p248 = scmp.eq.s32.totalorder %s247, 0
    %s250 = sadd.s32 %s249, 1
    %s251 = scalar_select %p248, %s249, %s250
    %p254 = pneg %p248
    %p255 = scmp.eq.s32.totalorder %s21, 7
    %p256 = por %p254, %p255
    %p257 = scmp.ne.s32.totalorder %s249, %s252
    %p258 = scmp.eq.s32.totalorder %s21, 0
    %p259 = por %p257, %p258
    %p260 = scmp.ne.s32.totalorder %s249, %s252
    %p261 = scmp.eq.s32.totalorder %s26, 7
    %p262 = por %p260, %p261
    %p263 = scmp.ne.s32.totalorder %s252, %s253
    %p264 = scmp.eq.s32.totalorder %s26, 0
    %p265 = por %p263, %p264
    %p266 = scmp.ne.s32.totalorder %s252, %s253
    %p267 = scmp.eq.s32.totalorder %s27, 7
    %p268 = por %p266, %p267
    %p270 = scmp.ne.s32.totalorder %s253, %s269
    %p271 = scmp.eq.s32.totalorder %s27, 0
    %p272 = por %p270, %p271
    %s273 = ssub.s32 %s28, %s40
    %s274 = ssub.s32 %s29, %s36
    %s275 = sor.u32 %s273, %s274
    %p276 = scmp.eq.s32.totalorder %s275, 0
    %s278 = sadd.s32 %s277, 1
    %s279 = scalar_select %p276, %s277, %s278
    %p282 = pneg %p276
    %p283 = scmp.eq.s32.totalorder %s21, 7
    %p284 = por %p282, %p283
    %p285 = scmp.ne.s32.totalorder %s277, %s280
    %p286 = scmp.eq.s32.totalorder %s21, 0
    %p287 = por %p285, %p286
    %p288 = scmp.ne.s32.totalorder %s277, %s280
    %p289 = scmp.eq.s32.totalorder %s26, 7
    %p290 = por %p288, %p289
    %p291 = scmp.ne.s32.totalorder %s280, %s281
    %p292 = scmp.eq.s32.totalorder %s26, 0
    %p293 = por %p291, %p292
    %p294 = scmp.ne.s32.totalorder %s280, %s281
    %p295 = scmp.eq.s32.totalorder %s27, 7
    %p296 = por %p294, %p295
    %p298 = scmp.ne.s32.totalorder %s281, %s297
    %p299 = scmp.eq.s32.totalorder %s27, 0
    %p300 = por %p298, %p299
    %s301 = ssub.s32 %s28, %s40
    %s302 = ssub.s32 %s29, %s36
    %s303 = sor.u32 %s301, %s302
    %p304 = scmp.eq.s32.totalorder %s303, 0
    %s306 = sadd.s32 %s305, 1
    %s307 = scalar_select %p304, %s305, %s306
    %p310 = pneg %p304
    %p311 = scmp.eq.s32.totalorder %s21, 7
    %p312 = por %p310, %p311
    %p313 = scmp.ne.s32.totalorder %s305, %s308
    %p314 = scmp.eq.s32.totalorder %s21, 0
    %p315 = por %p313, %p314
    %p316 = scmp.ne.s32.totalorder %s305, %s308
    %p317 = scmp.eq.s32.totalorder %s26, 7
    %p318 = por %p316, %p317
    %p319 = scmp.ne.s32.totalorder %s308, %s309
    %p320 = scmp.eq.s32.totalorder %s26, 0
    %p321 = por %p319, %p320
    %p322 = scmp.ne.s32.totalorder %s308, %s309
    %p323 = scmp.eq.s32.totalorder %s27, 7
    %p324 = por %p322, %p323
    %p326 = scmp.ne.s32.totalorder %s309, %s325
    %p327 = scmp.eq.s32.totalorder %s27, 0
    %p328 = por %p326, %p327
    %s329 = ssub.s32 %s28, %s40
    %s330 = ssub.s32 %s29, %s36
    %s331 = sor.u32 %s329, %s330
    %p332 = scmp.eq.s32.totalorder %s331, 0
    %s334 = sadd.s32 %s333, 1
    %s335 = scalar_select %p332, %s333, %s334
    %p338 = pneg %p332
    %p339 = scmp.eq.s32.totalorder %s21, 7
    %p340 = por %p338, %p339
    %p341 = scmp.ne.s32.totalorder %s333, %s336
    %p342 = scmp.eq.s32.totalorder %s21, 0
    %p343 = por %p341, %p342
    %p344 = scmp.ne.s32.totalorder %s333, %s336
    %p345 = scmp.eq.s32.totalorder %s26, 7
    %p346 = por %p344, %p345
    %p347 = scmp.ne.s32.totalorder %s336, %s337
    %p348 = scmp.eq.s32.totalorder %s26, 0
    %p349 = por %p347, %p348
    %p350 = scmp.ne.s32.totalorder %s336, %s337
    %p351 = scmp.eq.s32.totalorder %s27, 7
    %p352 = por %p350, %p351
    %p354 = scmp.ne.s32.totalorder %s337, %s353
    %p355 = scmp.eq.s32.totalorder %s27, 0
    %p356 = por %p354, %p355
    %s357 = ssub.s32 %s28, %s40
    %s358 = ssub.s32 %s29, %s36
    %s359 = sor.u32 %s357, %s358
    %p360 = scmp.eq.s32.totalorder %s359, 0
    %s362 = sadd.s32 %s361, 1
    %s363 = scalar_select %p360, %s361, %s362
    %p366 = pneg %p360
    %p367 = scmp.eq.s32.totalorder %s21, 7
    %p368 = por %p366, %p367
    %p369 = scmp.ne.s32.totalorder %s361, %s364
    %p370 = scmp.eq.s32.totalorder %s21, 0
    %p371 = por %p369, %p370
    %p372 = scmp.ne.s32.totalorder %s361, %s364
    %p373 = scmp.eq.s32.totalorder %s26, 7
    %p374 = por %p372, %p373
    %p375 = scmp.ne.s32.totalorder %s364, %s365
    %p376 = scmp.eq.s32.totalorder %s26, 0
    %p377 = por %p375, %p376
    %p378 = scmp.ne.s32.totalorder %s364, %s365
    %p379 = scmp.eq.s32.totalorder %s27, 7
    %p380 = por %p378, %p379
    %p382 = scmp.ne.s32.totalorder %s365, %s381
    %p383 = scmp.eq.s32.totalorder %s27, 0
    %p384 = por %p382, %p383
    %s385 = ssub.s32 %s28, %s40
    %p386 = scmp.eq.s32.totalorder %s385, 0
    %s388 = sadd.s32 %s387, 1
    %s389 = scalar_select %p386, %s387, %s388
    %p392 = pneg %p386
    %p393 = scmp.eq.s32.totalorder %s21, 7
    %p394 = por %p392, %p393
    %p395 = scmp.ne.s32.totalorder %s387, %s390
    %p396 = scmp.eq.s32.totalorder %s21, 0
    %p397 = por %p395, %p396
    %p398 = scmp.ne.s32.totalorder %s387, %s390
    %p399 = scmp.eq.s32.totalorder %s26, 7
    %p400 = por %p398, %p399
    %p401 = scmp.ne.s32.totalorder %s390, %s391
    %p402 = scmp.eq.s32.totalorder %s26, 0
    %p403 = por %p401, %p402
    %p404 = scmp.ne.s32.totalorder %s390, %s391
    %p405 = scmp.eq.s32.totalorder %s27, 7
    %p406 = por %p404, %p405
    %p408 = scmp.ne.s32.totalorder %s391, %s407
    %p409 = scmp.eq.s32.totalorder %s27, 0
    %p410 = por %p408, %p409
    %s411 = ssub.s32 %s28, %s40
    %p412 = scmp.eq.s32.totalorder %s411, 0
    %s414 = sadd.s32 %s413, 1
    %s415 = scalar_select %p412, %s413, %s414
    %p418 = pneg %p412
    %p419 = scmp.eq.s32.totalorder %s21, 7
    %p420 = por %p418, %p419
    %p421 = scmp.ne.s32.totalorder %s413, %s416
    %p422 = scmp.eq.s32.totalorder %s21, 0
    %p423 = por %p421, %p422
    %p424 = scmp.ne.s32.totalorder %s413, %s416
    %p425 = scmp.eq.s32.totalorder %s26, 7
    %p426 = por %p424, %p425
    %p427 = scmp.ne.s32.totalorder %s416, %s417
    %p428 = scmp.eq.s32.totalorder %s26, 0
    %p429 = por %p427, %p428
    %p430 = scmp.ne.s32.totalorder %s416, %s417
    %p431 = scmp.eq.s32.totalorder %s27, 7
    %p432 = por %p430, %p431
    %p434 = scmp.ne.s32.totalorder %s417, %s433
    %p435 = scmp.eq.s32.totalorder %s27, 0
    %p436 = por %p434, %p435
    %s437 = ssub.s32 %s28, %s40
    %p438 = scmp.eq.s32.totalorder %s437, 0
    %s440 = sadd.s32 %s439, 1
    %s441 = scalar_select %p438, %s439, %s440
    %p444 = pneg %p438
    %p445 = scmp.eq.s32.totalorder %s21, 7
    %p446 = por %p444, %p445
    %p447 = scmp.ne.s32.totalorder %s439, %s442
    %p448 = scmp.eq.s32.totalorder %s21, 0
    %p449 = por %p447, %p448
    %p450 = scmp.ne.s32.totalorder %s439, %s442
    %p451 = scmp.eq.s32.totalorder %s26, 7
    %p452 = por %p450, %p451
    %p453 = scmp.ne.s32.totalorder %s442, %s443
    %p454 = scmp.eq.s32.totalorder %s26, 0
    %p455 = por %p453, %p454
    %p456 = scmp.ne.s32.totalorder %s442, %s443
    %p457 = scmp.eq.s32.totalorder %s27, 7
    %p458 = por %p456, %p457
    %p460 = scmp.ne.s32.totalorder %s443, %s459
    %p461 = scmp.eq.s32.totalorder %s27, 0
    %p462 = por %p460, %p461
    %p463 = scmp.le.s32.totalorder 1, %s21
    %p464 = scmp.lt.s32.totalorder %s21, 9
    %p465 = pnand %p463, %p464
    %p466 = pneg %p465
    // Predicated region
    $region9: #{combined_forward.1} parent=5 // pred_check
      _
    $region10: #{combined_forward.1} parent=5 // pred_check_branch
      %468 = sbr.rel (%p465) target = $region12
    $region11: #{combined_forward.1} parent=5 // pred_region
      %s469 = ssub.s32 %s21, 1
      // Predicated region
      $region13: #{combined_forward.1} parent=11 // pred_check
        %p470 = pneg %p54
      $region14: #{combined_forward.1} parent=11 // pred_check_branch
        %472 = sbr.rel (%p470) target = $region16
      $region15: #{combined_forward.1} parent=11 // pred_region
        _
      $region16: #{combined_forward.1} parent=11 // pred_fallthru
        _
      // Predicated region
      $region17: #{combined_forward.1} parent=11 // pred_check
        %p473 = pneg %p75
      $region18: #{combined_forward.1} parent=11 // pred_check_branch
        %475 = sbr.rel (%p473) target = $region20
      $region19: #{combined_forward.1} parent=11 // pred_region
        _
      $region20: #{combined_forward.1} parent=11 // pred_fallthru
        _
    $region12: #{combined_forward.1} parent=5 // pred_fallthru
      _
    %p476 = scmp.lt.s32.totalorder %s21, 8
    // Predicated region
    $region21: #{combined_forward.1} parent=5 // pred_check
      %p477 = pneg %p476
    $region22: #{combined_forward.1} parent=5 // pred_check_branch
      %479 = sbr.rel (%p477) target = $region24
    $region23: #{combined_forward.1} parent=5 // pred_region
      // Predicated region
      $region25: #{combined_forward.1} parent=23 // pred_check
        %p480 = pneg %p95
      $region26: #{combined_forward.1} parent=23 // pred_check_branch
        %482 = sbr.rel (%p480) target = $region28
      $region27: #{combined_forward.1} parent=23 // pred_region
        %p483 = scmp.lt.s32.totalorder %s28, 3
        %s484 = scalar_select %p483, %s28, 3
        %s485 = smul.addr %s484, 2
        %s486 = smul.addr %s485, 4
        %s487 = scalar_lea.vmem %s2, %s486
      $region28: #{combined_forward.1} parent=23 // pred_fallthru
        _
      // Predicated region
      $region29: #{combined_forward.1} parent=23 // pred_check
        %p488 = pneg %p121
      $region30: #{combined_forward.1} parent=23 // pred_check_branch
        %490 = sbr.rel (%p488) target = $region32
      $region31: #{combined_forward.1} parent=23 // pred_region
        %p491 = scmp.lt.s32.totalorder %s28, 3
        %s492 = scalar_select %p491, %s28, 3
        %s493 = scalar_lea.vmem %s3, %s492
      $region32: #{combined_forward.1} parent=23 // pred_fallthru
        _
      // Predicated region
      $region33: #{combined_forward.1} parent=23 // pred_check
        %p494 = pneg %p147
      $region34: #{combined_forward.1} parent=23 // pred_check_branch
        %496 = sbr.rel (%p494) target = $region36
      $region35: #{combined_forward.1} parent=23 // pred_region
        %p497 = scmp.lt.s32.totalorder %s28, 3
        %s498 = scalar_select %p497, %s28, 3
        %s499 = smul.addr %s498, 2
        %s500 = scalar_lea.vmem %s4, %s499
      $region36: #{combined_forward.1} parent=23 // pred_fallthru
        _
      // Predicated region
      $region37: #{combined_forward.1} parent=23 // pred_check
        %p501 = pneg %p175
      $region38: #{combined_forward.1} parent=23 // pred_check_branch
        %503 = sbr.rel (%p501) target = $region40
      $region39: #{combined_forward.1} parent=23 // pred_region
        %p504 = scmp.lt.s32.totalorder %s28, 3
        %s505 = scalar_select %p504, %s28, 3
        %p506 = scmp.lt.s32.totalorder %s29, 1
        %s507 = scalar_select %p506, %s29, 1
        %s508 = smul.addr %s507, 4
        %s509 = smul.addr %s505, 8
        %s510 = sadd.s32 %s508, %s509
        %s511 = smul.addr %s510, 4
        %s512 = scalar_lea.vmem %s5, %s511
      $region40: #{combined_forward.1} parent=23 // pred_fallthru
        _
      // Predicated region
      $region41: #{combined_forward.1} parent=23 // pred_check
        %p513 = pneg %p203
      $region42: #{combined_forward.1} parent=23 // pred_check_branch
        %515 = sbr.rel (%p513) target = $region44
      $region43: #{combined_forward.1} parent=23 // pred_region
        %p516 = scmp.lt.s32.totalorder %s28, 3
        %s517 = scalar_select %p516, %s28, 3
        %p518 = scmp.lt.s32.totalorder %s29, 1
        %s519 = scalar_select %p518, %s29, 1
        %s520 = smul.addr %s517, 2
        %s521 = sadd.s32 %s519, %s520
        %s522 = scalar_lea.vmem %s6, %s521
      $region44: #{combined_forward.1} parent=23 // pred_fallthru
        _
      // Predicated region
      $region45: #{combined_forward.1} parent=23 // pred_check
        %p523 = pneg %p231
      $region46: #{combined_forward.1} parent=23 // pred_check_branch
        %525 = sbr.rel (%p523) target = $region48
      $region47: #{combined_forward.1} parent=23 // pred_region
        %p526 = scmp.lt.s32.totalorder %s28, 3
        %s527 = scalar_select %p526, %s28, 3
        %p528 = scmp.lt.s32.totalorder %s29, 1
        %s529 = scalar_select %p528, %s29, 1
        %s530 = smul.addr %s529, 4
        %s531 = smul.addr %s527, 8
        %s532 = sadd.s32 %s530, %s531
        %s533 = smul.addr %s532, 4
        %s534 = scalar_lea.vmem %s7, %s533
      $region48: #{combined_forward.1} parent=23 // pred_fallthru
        _
      // Predicated region
      $region49: #{combined_forward.1} parent=23 // pred_check
        %p535 = pneg %p259
      $region50: #{combined_forward.1} parent=23 // pred_check_branch
        %537 = sbr.rel (%p535) target = $region52
      $region51: #{combined_forward.1} parent=23 // pred_region
        %p538 = scmp.lt.s32.totalorder %s28, 3
        %s539 = scalar_select %p538, %s28, 3
        %p540 = scmp.lt.s32.totalorder %s29, 1
        %s541 = scalar_select %p540, %s29, 1
        %s542 = smul.addr %s539, 2
        %s543 = sadd.s32 %s541, %s542
        %s544 = scalar_lea.vmem %s8, %s543
      $region52: #{combined_forward.1} parent=23 // pred_fallthru
        _
      // Predicated region
      $region53: #{combined_forward.1} parent=23 // pred_check
        %p545 = pneg %p287
      $region54: #{combined_forward.1} parent=23 // pred_check_branch
        %547 = sbr.rel (%p545) target = $region56
      $region55: #{combined_forward.1} parent=23 // pred_region
        %p548 = scmp.lt.s32.totalorder %s28, 3
        %s549 = scalar_select %p548, %s28, 3
        %p550 = scmp.lt.s32.totalorder %s29, 1
        %s551 = scalar_select %p550, %s29, 1
        %s552 = smul.addr %s551, 4
        %s553 = smul.addr %s549, 8
        %s554 = sadd.s32 %s552, %s553
        %s555 = smul.addr %s554, 4
        %s556 = scalar_lea.vmem %s9, %s555
      $region56: #{combined_forward.1} parent=23 // pred_fallthru
        _
      // Predicated region
      $region57: #{combined_forward.1} parent=23 // pred_check
        %p557 = pneg %p315
      $region58: #{combined_forward.1} parent=23 // pred_check_branch
        %559 = sbr.rel (%p557) target = $region60
      $region59: #{combined_forward.1} parent=23 // pred_region
        %p560 = scmp.lt.s32.totalorder %s28, 3
        %s561 = scalar_select %p560, %s28, 3
        %p562 = scmp.lt.s32.totalorder %s29, 1
        %s563 = scalar_select %p562, %s29, 1
        %s564 = smul.addr %s561, 2
        %s565 = sadd.s32 %s563, %s564
        %s566 = scalar_lea.vmem %s10, %s565
      $region60: #{combined_forward.1} parent=23 // pred_fallthru
        _
      // Predicated region
      $region61: #{combined_forward.1} parent=23 // pred_check
        %p567 = pneg %p343
      $region62: #{combined_forward.1} parent=23 // pred_check_branch
        %569 = sbr.rel (%p567) target = $region64
      $region63: #{combined_forward.1} parent=23 // pred_region
        %p570 = scmp.lt.s32.totalorder %s28, 3
        %s571 = scalar_select %p570, %s28, 3
        %p572 = scmp.lt.s32.totalorder %s29, 1
        %s573 = scalar_select %p572, %s29, 1
        %s574 = smul.addr %s573, 16
        %s575 = smul.addr %s571, 32
        %s576 = sadd.s32 %s574, %s575
        %s577 = smul.addr %s576, 4
        %s578 = scalar_lea.vmem %s11, %s577
      $region64: #{combined_forward.1} parent=23 // pred_fallthru
        _
      // Predicated region
      $region65: #{combined_forward.1} parent=23 // pred_check
        %p579 = pneg %p371
      $region66: #{combined_forward.1} parent=23 // pred_check_branch
        %581 = sbr.rel (%p579) target = $region68
      $region67: #{combined_forward.1} parent=23 // pred_region
        %p582 = scmp.lt.s32.totalorder %s28, 3
        %s583 = scalar_select %p582, %s28, 3
        %p584 = scmp.lt.s32.totalorder %s29, 1
        %s585 = scalar_select %p584, %s29, 1
        %s586 = smul.addr %s583, 2
        %s587 = sadd.s32 %s585, %s586
        %s588 = scalar_lea.vmem %s12, %s587
      $region68: #{combined_forward.1} parent=23 // pred_fallthru
        _
      // Predicated region
      $region69: #{combined_forward.1} parent=23 // pred_check
        %p589 = pneg %p397
      $region70: #{combined_forward.1} parent=23 // pred_check_branch
        %591 = sbr.rel (%p589) target = $region72
      $region71: #{combined_forward.1} parent=23 // pred_region
        %p592 = scmp.lt.s32.totalorder %s28, 3
        %s593 = scalar_select %p592, %s28, 3
        %s594 = smul.addr %s593, 4
        %s595 = smul.addr %s594, 4
        %s596 = scalar_lea.vmem %s13, %s595
      $region72: #{combined_forward.1} parent=23 // pred_fallthru
        _
      // Predicated region
      $region73: #{combined_forward.1} parent=23 // pred_check
        %p597 = pneg %p423
      $region74: #{combined_forward.1} parent=23 // pred_check_branch
        %599 = sbr.rel (%p597) target = $region76
      $region75: #{combined_forward.1} parent=23 // pred_region
        %p600 = scmp.lt.s32.totalorder %s28, 3
        %s601 = scalar_select %p600, %s28, 3
        %s602 = scalar_lea.vmem %s14, %s601
      $region76: #{combined_forward.1} parent=23 // pred_fallthru
        _
    $region24: #{combined_forward.1} parent=5 // pred_fallthru
      _
    %p603 = scmp.le.s32.totalorder 1, %s21
    %p604 = scmp.lt.s32.totalorder %s21, 9
    %p605 = pnand %p603, %p604
    %p606 = pneg %p605
    // Predicated region
    $region77: #{combined_forward.1} parent=5 // pred_check
      _
    $region78: #{combined_forward.1} parent=5 // pred_check_branch
      %608 = sbr.rel (%p605) target = $region80
    $region79: #{combined_forward.1} parent=5 // pred_region
      %s609 = ssub.s32 %s21, 1
      %p610 = pneg %p54
      %p611 = pneg %p51
      %p612 = pneg %p75
      %p613 = pneg %p72
      %p614 = scmp.lt.s32.totalorder %s30, 3
      %s615 = scalar_select %p614, %s30, 3
      %s616 = smul.addr %s615, 2
      %s617 = smul.addr %s616, 4
      %s618 = scalar_lea.vmem %s2, %s617
      %p619 = pneg %p101
      %p620 = pneg %p98
      %p621 = scmp.lt.s32.totalorder %s30, 3
      %s622 = scalar_select %p621, %s30, 3
      %s623 = scalar_lea.vmem %s3, %s622
      %p624 = pneg %p127
      %p625 = pneg %p124
      %p626 = scmp.lt.s32.totalorder %s30, 3
      %s627 = scalar_select %p626, %s30, 3
      %s628 = smul.addr %s627, 2
      %s629 = scalar_lea.vmem %s4, %s628
      %p630 = pneg %p153
      %p631 = pneg %p150
      %p632 = scmp.lt.s32.totalorder %s30, 3
      %s633 = scalar_select %p632, %s30, 3
      %p634 = scmp.lt.s32.totalorder %s31, 1
      %s635 = scalar_select %p634, %s31, 1
      %s636 = smul.addr %s635, 4
      %s637 = smul.addr %s633, 8
      %s638 = sadd.s32 %s636, %s637
      %s639 = smul.addr %s638, 4
      %s640 = scalar_lea.vmem %s5, %s639
      %p641 = pneg %p181
      %p642 = pneg %p178
      %p643 = scmp.lt.s32.totalorder %s30, 3
      %s644 = scalar_select %p643, %s30, 3
      %p645 = scmp.lt.s32.totalorder %s31, 1
      %s646 = scalar_select %p645, %s31, 1
      %s647 = smul.addr %s644, 2
      %s648 = sadd.s32 %s646, %s647
      %s649 = scalar_lea.vmem %s6, %s648
      %p650 = pneg %p209
      %p651 = pneg %p206
      %p652 = scmp.lt.s32.totalorder %s30, 3
      %s653 = scalar_select %p652, %s30, 3
      %p654 = scmp.lt.s32.totalorder %s31, 1
      %s655 = scalar_select %p654, %s31, 1
      %s656 = smul.addr %s655, 4
      %s657 = smul.addr %s653, 8
      %s658 = sadd.s32 %s656, %s657
      %s659 = smul.addr %s658, 4
      %s660 = scalar_lea.vmem %s7, %s659
      %p661 = pneg %p237
      %p662 = pneg %p234
      %p663 = scmp.lt.s32.totalorder %s30, 3
      %s664 = scalar_select %p663, %s30, 3
      %p665 = scmp.lt.s32.totalorder %s31, 1
      %s666 = scalar_select %p665, %s31, 1
      %s667 = smul.addr %s664, 2
      %s668 = sadd.s32 %s666, %s667
      %s669 = scalar_lea.vmem %s8, %s668
      %p670 = pneg %p265
      %p671 = pneg %p262
      %p672 = scmp.lt.s32.totalorder %s30, 3
      %s673 = scalar_select %p672, %s30, 3
      %p674 = scmp.lt.s32.totalorder %s31, 1
      %s675 = scalar_select %p674, %s31, 1
      %s676 = smul.addr %s675, 4
      %s677 = smul.addr %s673, 8
      %s678 = sadd.s32 %s676, %s677
      %s679 = smul.addr %s678, 4
      %s680 = scalar_lea.vmem %s9, %s679
      %p681 = pneg %p293
      %p682 = pneg %p290
      %p683 = scmp.lt.s32.totalorder %s30, 3
      %s684 = scalar_select %p683, %s30, 3
      %p685 = scmp.lt.s32.totalorder %s31, 1
      %s686 = scalar_select %p685, %s31, 1
      %s687 = smul.addr %s684, 2
      %s688 = sadd.s32 %s686, %s687
      %s689 = scalar_lea.vmem %s10, %s688
      %p690 = pneg %p321
      %p691 = pneg %p318
      %p692 = scmp.lt.s32.totalorder %s30, 3
      %s693 = scalar_select %p692, %s30, 3
      %p694 = scmp.lt.s32.totalorder %s31, 1
      %s695 = scalar_select %p694, %s31, 1
      %s696 = smul.addr %s695, 16
      %s697 = smul.addr %s693, 32
      %s698 = sadd.s32 %s696, %s697
      %s699 = smul.addr %s698, 4
      %s700 = scalar_lea.vmem %s11, %s699
      %p701 = pneg %p349
      %p702 = pneg %p346
      %p703 = scmp.lt.s32.totalorder %s30, 3
      %s704 = scalar_select %p703, %s30, 3
      %p705 = scmp.lt.s32.totalorder %s31, 1
      %s706 = scalar_select %p705, %s31, 1
      %s707 = smul.addr %s704, 2
      %s708 = sadd.s32 %s706, %s707
      %s709 = scalar_lea.vmem %s12, %s708
      %p710 = pneg %p377
      %p711 = pneg %p374
      %p712 = scmp.lt.s32.totalorder %s30, 3
      %s713 = scalar_select %p712, %s30, 3
      %s714 = smul.addr %s713, 4
      %s715 = smul.addr %s714, 4
      %s716 = scalar_lea.vmem %s13, %s715
      %p717 = pneg %p403
      %p718 = pneg %p400
      %p719 = scmp.lt.s32.totalorder %s30, 3
      %s720 = scalar_select %p719, %s30, 3
      %s721 = scalar_lea.vmem %s14, %s720
      %p722 = pneg %p429
      %p723 = pneg %p426
      %p724 = pneg %p455
      %p725 = pneg %p452
      %p726 = scmp.lt.s32.totalorder %s30, 3
      %s727 = scalar_select %p726, %s30, 3
      %s728 = smul.addr %s727, 2
      %s729 = scalar_lea.vmem %s15, %s728
      %p730 = scmp.lt.s32.totalorder %s30, 3
      %s731 = scalar_select %p730, %s30, 3
      %s732 = smul.addr %s731, 2
      %s733 = smul.addr %s732, 4
      %s734 = scalar_lea.vmem %s2, %s733
      %p735 = scmp.lt.s32.totalorder %s30, 3
      %s736 = scalar_select %p735, %s30, 3
      %s737 = scalar_lea.vmem %s3, %s736
      %p738 = scmp.lt.s32.totalorder %s30, 3
      %s739 = scalar_select %p738, %s30, 3
      %s740 = smul.addr %s739, 2
      %s741 = scalar_lea.vmem %s4, %s740
      %p742 = scmp.lt.s32.totalorder %s30, 3
      %s743 = scalar_select %p742, %s30, 3
      %p744 = scmp.lt.s32.totalorder %s31, 1
      %s745 = scalar_select %p744, %s31, 1
      %s746 = smul.addr %s745, 4
      %s747 = smul.addr %s743, 8
      %s748 = sadd.s32 %s746, %s747
      %s749 = smul.addr %s748, 4
      %s750 = scalar_lea.vmem %s5, %s749
      %p751 = scmp.lt.s32.totalorder %s30, 3
      %s752 = scalar_select %p751, %s30, 3
      %p753 = scmp.lt.s32.totalorder %s31, 1
      %s754 = scalar_select %p753, %s31, 1
      %s755 = smul.addr %s752, 2
      %s756 = sadd.s32 %s754, %s755
      %s757 = scalar_lea.vmem %s6, %s756
      %p758 = scmp.lt.s32.totalorder %s30, 3
      %s759 = scalar_select %p758, %s30, 3
      %p760 = scmp.lt.s32.totalorder %s31, 1
      %s761 = scalar_select %p760, %s31, 1
      %s762 = smul.addr %s761, 4
      %s763 = smul.addr %s759, 8
      %s764 = sadd.s32 %s762, %s763
      %s765 = smul.addr %s764, 4
      %s766 = scalar_lea.vmem %s7, %s765
      %p767 = scmp.lt.s32.totalorder %s30, 3
      %s768 = scalar_select %p767, %s30, 3
      %p769 = scmp.lt.s32.totalorder %s31, 1
      %s770 = scalar_select %p769, %s31, 1
      %s771 = smul.addr %s768, 2
      %s772 = sadd.s32 %s770, %s771
      %s773 = scalar_lea.vmem %s8, %s772
      %p774 = scmp.lt.s32.totalorder %s30, 3
      %s775 = scalar_select %p774, %s30, 3
      %p776 = scmp.lt.s32.totalorder %s31, 1
      %s777 = scalar_select %p776, %s31, 1
      %s778 = smul.addr %s777, 4
      %s779 = smul.addr %s775, 8
      %s780 = sadd.s32 %s778, %s779
      %s781 = smul.addr %s780, 4
      %s782 = scalar_lea.vmem %s9, %s781
      %p783 = scmp.lt.s32.totalorder %s30, 3
      %s784 = scalar_select %p783, %s30, 3
      %p785 = scmp.lt.s32.totalorder %s31, 1
      %s786 = scalar_select %p785, %s31, 1
      %s787 = smul.addr %s784, 2
      %s788 = sadd.s32 %s786, %s787
      %s789 = scalar_lea.vmem %s10, %s788
      %p790 = scmp.lt.s32.totalorder %s30, 3
      %s791 = scalar_select %p790, %s30, 3
      %p792 = scmp.lt.s32.totalorder %s31, 1
      %s793 = scalar_select %p792, %s31, 1
      %s794 = smul.addr %s793, 16
      %s795 = smul.addr %s791, 32
      %s796 = sadd.s32 %s794, %s795
      %s797 = smul.addr %s796, 4
      %s798 = scalar_lea.vmem %s11, %s797
      %p799 = scmp.lt.s32.totalorder %s30, 3
      %s800 = scalar_select %p799, %s30, 3
      %p801 = scmp.lt.s32.totalorder %s31, 1
      %s802 = scalar_select %p801, %s31, 1
      %s803 = smul.addr %s800, 2
      %s804 = sadd.s32 %s802, %s803
      %s805 = scalar_lea.vmem %s12, %s804
      %p806 = scmp.lt.s32.totalorder %s30, 3
      %s807 = scalar_select %p806, %s30, 3
      %s808 = smul.addr %s807, 4
      %s809 = smul.addr %s808, 4
      %s810 = scalar_lea.vmem %s13, %s809
      %p811 = scmp.lt.s32.totalorder %s30, 3
      %s812 = scalar_select %p811, %s30, 3
      %s813 = scalar_lea.vmem %s14, %s812
      %p814 = scmp.lt.s32.totalorder %s30, 3
      %s815 = scalar_select %p814, %s30, 3
      %s816 = smul.addr %s815, 2
      %s817 = scalar_lea.vmem %s15, %s816
      %p819 = scmp.eq.s32.totalorder %s31, 0
      // Predicated region
      $region81: #{combined_forward.1} parent=79 // pred_check
        %p820 = pneg %p819
      $region82: #{combined_forward.1} parent=79 // pred_check_branch
        %822 = sbr.rel (%p820) target = $region84
      $region83: #{combined_forward.1} parent=79 // pred_region
        %v823 = vld [vmem:[%s0] sm:$0xff]
        %v824 = vpack.c.bf16 %v823, %v823
        %v825 = vld [vmem:[%s734] sm:$0xf]
        %v826 = vld [vmem:[%s734 + $0x4] sm:$0xf]
        %v827 = vld [vmem:[%s737] sm:$0x1]
        %v829 = vlaneseq
        %v830 = vshrl.u32 %v829, 7
        %v831 = vsub.s32 0, %v830
        %v832 = vrot.slane %v827, %v831
        %v836 = vunpack.c.l.b16 %v825
        %v837 = vunpack.c.l.b16 %v826
        %v838 = vpack.c.b16 %v837, %v836
        %vm840 = vcmask 130048
        %v842 = vsel %vm840, %v824, 0
        %844 = vmatprep.subr.bf16.mxu0 0
        %845 = vmatpush1.bf16.msra.mxu0 %v838
        %846 = vmatprep.subr.bf16.mxu0 0
        %847 = vmatpush1.bf16.msra.mxu0 0
        %848 = vmatprep.subr.bf16.mxu0 0
        %849 = vmatpush1.bf16.msra.mxu0 0
        %850 = vmatprep.subr.bf16.mxu0 0
        %851 = vmatpush1.bf16.msra.mxu0 0
        %852 = vmatprep.subr.bf16.mxu0 0
        %853 = vmatpush1.bf16.msra.mxu0 0
        %854 = vmatprep.subr.bf16.mxu0 0
        %855 = vmatpush1.bf16.msra.mxu0 0
        %856 = vmatprep.subr.bf16.mxu0 0
        %857 = vmatpush1.bf16.msra.mxu0 0
        %858 = vmatprep.subr.bf16.mxu0 0
        %859 = vmatpush1.bf16.msra.mxu0 0
        %860 = vmatprep.subr.bf16.mxu0 0
        %861 = vmatpush1.bf16.msra.mxu0 0
        %862 = vmatprep.subr.bf16.mxu0 0
        %863 = vmatpush1.bf16.msra.mxu0 0
        %864 = vmatprep.subr.bf16.mxu0 0
        %865 = vmatpush1.bf16.msra.mxu0 0
        %866 = vmatprep.subr.bf16.mxu0 0
        %867 = vmatpush1.bf16.msra.mxu0 0
        %868 = vmatprep.subr.bf16.mxu0 0
        %869 = vmatpush1.bf16.msra.mxu0 0
        %870 = vmatprep.subr.bf16.mxu0 0
        %871 = vmatpush1.bf16.msra.mxu0 0
        %872 = vmatprep.subr.bf16.mxu0 0
        %873 = vmatpush1.bf16.msra.mxu0 0
        %874 = vmatprep.subr.bf16.mxu0 0
        %875 = vmatpush1.bf16.msra.mxu0 0
        %876 = vmatprep.mubr.bf16.mxu0 0
        %877 = vmatmul.mubr.bf16.gmra.mrb[0].mxu0 %v842
        %v878 = vpop.f32.mrb[0].mxu0
        %v879 = vadd.f32 %v832, %v878
        %v880 = vpop.f32.mrb[0].mxu0
        %v881 = vpop.f32.mrb[0].mxu0
        %v882 = vpop.f32.mrb[0].mxu0
        %883 = vdwg.mxu0
        %v885 = vcombine.high %v879, %v879
        %v887 = vld [vmem:[%s1] sm:$0xf]
        %v888 = vadd.f32 %v879, %v887
        %v889 = vadd.f32 %v885, %v887
        %v890 = vld [vmem:[%s741] sm:$0x3]
        %vm891 = vcmask 254976
        %892 = vst.msk [vmem:[#allocation2] sm:$0x3] %vm891, %v890
        %893 = vst.msk [vmem:[#allocation2 + $0x8] sm:$0x3] %vm891, %v890
        %vm894 = vcmask 257024
        %895 = vst.msk [vmem:[#allocation2 + $0x2] sm:$0xf] %vm894, %v888
        %896 = vst.msk [vmem:[#allocation2 + $0xa] sm:$0xf] %vm894, %v889
      $region84: #{combined_forward.1} parent=79 // pred_fallthru
        _
      %v897 = vld [vmem:[#allocation2] sm:$0x3f]
      %v898 = vld [vmem:[#allocation2 + $0x8] sm:$0x3f]
      %v901 = vcombine.high %v897, %v897
      %v903 = vunpack.c.l.s4 1983009808
      %v904 = vunpack.c.0.s8 %v903
      %v905 = vlaneseq
      %v906 = vshrl.u32 %v905, 7
      %v907 = vsub.s32 %v904, %v906
      %v908 = vrot.slane %v897, %v907
      %v910 = vunpack.c.l.s4 1983009808
      %v911 = vunpack.c.0.s8 %v910
      %v912 = vlaneseq
      %v913 = vshrl.u32 %v912, 7
      %v914 = vsub.s32 %v911, %v913
      %v915 = vrot.slane %v901, %v914
      %v916 = vcombine.high %v908, %v908
      %v917 = vcombine.high %v898, %v898
      %v919 = vunpack.c.l.s4 1983009808
      %v920 = vunpack.c.0.s8 %v919
      %v921 = vlaneseq
      %v922 = vshrl.u32 %v921, 7
      %v923 = vsub.s32 %v920, %v922
      %v924 = vrot.slane %v898, %v923
      %v926 = vunpack.c.l.s4 1983009808
      %v927 = vunpack.c.0.s8 %v926
      %v928 = vlaneseq
      %v929 = vshrl.u32 %v928, 7
      %v930 = vsub.s32 %v927, %v929
      %v931 = vrot.slane %v917, %v930
      %v932 = vcombine.high %v924, %v924
      %v939 = vcombine.low %v908, %v916
      %v940 = vcombine.low %v915, %v924
      %v942 = vunpack.c.l.s4 1983009808
      %v943 = vunpack.c.0.s8 %v942
      %v944 = vlaneseq
      %v945 = vshrl.u32 %v944, 7
      %v946 = vsub.s32 %v943, %v945
      %v947 = vrot.slane %v939, %v946
      %v949 = vunpack.c.l.s4 1983009808
      %v950 = vunpack.c.0.s8 %v949
      %v951 = vlaneseq
      %v952 = vshrl.u32 %v951, 7
      %v953 = vsub.s32 %v950, %v952
      %v954 = vrot.slane %v940, %v953
      %v955 = vcombine.low %v947, %v954
      %v956 = vcombine.low %v932, %v931
      %v958 = vunpack.c.l.s4 1983009808
      %v959 = vunpack.c.0.s8 %v958
      %v960 = vlaneseq
      %v961 = vshrl.u32 %v960, 7
      %v962 = vsub.s32 %v959, %v961
      %v963 = vrot.slane %v956, %v962
      %v966 = vpack.c.bf16 %v963, %v955
      %v967 = vld [vmem:[%s750] sm:$0xf]
      %v968 = vld [vmem:[%s750 + $0x4] sm:$0xf]
      %v969 = vld [vmem:[%s750 + $0x8] sm:$0xf]
      %v970 = vld [vmem:[%s750 + $0xc] sm:$0xf]
      %v971 = vld [vmem:[%s757] sm:$0x1]
      %v973 = vlaneseq
      %v974 = vshrl.u32 %v973, 7
      %v975 = vsub.s32 0, %v974
      %v976 = vrot.slane %v971, %v975
      %v982 = vunpack.c.l.b16 %v967
      %v983 = vunpack.c.l.b16 %v968
      %v984 = vunpack.c.l.b16 %v969
      %v985 = vunpack.c.l.b16 %v970
      %v986 = vpack.c.b16 %v983, %v982
      %v987 = vpack.c.b16 %v985, %v984
      %vm990 = vcmask 261120
      %v992 = vsel %vm990, %v966, 0
      %994 = vmatprep.subr.bf16.mxu0 0
      %995 = vmatpush1.bf16.msra.mxu0 %v986
      %996 = vmatprep.subr.bf16.mxu0 0
      %997 = vmatpush1.bf16.msra.mxu0 %v987
      %998 = vmatprep.subr.bf16.mxu0 0
      %999 = vmatpush1.bf16.msra.mxu0 0
      %1000 = vmatprep.subr.bf16.mxu0 0
      %1001 = vmatpush1.bf16.msra.mxu0 0
      %1002 = vmatprep.subr.bf16.mxu0 0
      %1003 = vmatpush1.bf16.msra.mxu0 0
      %1004 = vmatprep.subr.bf16.mxu0 0
      %1005 = vmatpush1.bf16.msra.mxu0 0
      %1006 = vmatprep.subr.bf16.mxu0 0
      %1007 = vmatpush1.bf16.msra.mxu0 0
      %1008 = vmatprep.subr.bf16.mxu0 0
      %1009 = vmatpush1.bf16.msra.mxu0 0
      %1010 = vmatprep.subr.bf16.mxu0 0
      %1011 = vmatpush1.bf16.msra.mxu0 0
      %1012 = vmatprep.subr.bf16.mxu0 0
      %1013 = vmatpush1.bf16.msra.mxu0 0
      %1014 = vmatprep.subr.bf16.mxu0 0
      %1015 = vmatpush1.bf16.msra.mxu0 0
      %1016 = vmatprep.subr.bf16.mxu0 0
      %1017 = vmatpush1.bf16.msra.mxu0 0
      %1018 = vmatprep.subr.bf16.mxu0 0
      %1019 = vmatpush1.bf16.msra.mxu0 0
      %1020 = vmatprep.subr.bf16.mxu0 0
      %1021 = vmatpush1.bf16.msra.mxu0 0
      %1022 = vmatprep.subr.bf16.mxu0 0
      %1023 = vmatpush1.bf16.msra.mxu0 0
      %1024 = vmatprep.subr.bf16.mxu0 0
      %1025 = vmatpush1.bf16.msra.mxu0 0
      %1026 = vmatprep.mubr.bf16.mxu0 0
      %1027 = vmatmul.mubr.bf16.gmra.mrb[0].mxu0 %v992
      %v1028 = vpop.f32.mrb[0].mxu0
      %v1029 = vadd.f32 %v976, %v1028
      %v1030 = vpop.f32.mrb[0].mxu0
      %v1031 = vpop.f32.mrb[0].mxu0
      %v1032 = vadd.f32 %v976, %v1031
      %v1033 = vpop.f32.mrb[0].mxu0
      %1034 = vdwg.mxu0
      %v1037 = vcombine.high %v1029, %v1029
      %v1039 = vunpack.c.l.s4 1983009808
      %v1040 = vunpack.c.0.s8 %v1039
      %v1041 = vlaneseq
      %v1042 = vshrl.u32 %v1041, 7
      %v1043 = vsub.s32 %v1040, %v1042
      %v1044 = vrot.slane %v1029, %v1043
      %v1046 = vunpack.c.l.s4 1983009808
      %v1047 = vunpack.c.0.s8 %v1046
      %v1048 = vlaneseq
      %v1049 = vshrl.u32 %v1048, 7
      %v1050 = vsub.s32 %v1047, %v1049
      %v1051 = vrot.slane %v1037, %v1050
      %v1052 = vcombine.high %v1044, %v1044
      %v1053 = vcombine.high %v1051, %v1051
      %v1055 = vunpack.c.l.s4 1983009808
      %v1056 = vunpack.c.0.s8 %v1055
      %v1057 = vlaneseq
      %v1058 = vshrl.u32 %v1057, 7
      %v1059 = vsub.s32 %v1056, %v1058
      %v1060 = vrot.slane %v1032, %v1059
      %v1061 = vcombine.high %v1060, %v1060
      %v1062 = vcombine.low %v1044, %v1052
      %v1064 = vunpack.c.l.s4 1983009808
      %v1065 = vunpack.c.0.s8 %v1064
      %v1066 = vlaneseq
      %v1067 = vshrl.u32 %v1066, 7
      %v1068 = vsub.s32 %v1065, %v1067
      %v1069 = vrot.slane %v1062, %v1068
      %v1071 = vunpack.c.l.s4 1983009808
      %v1072 = vunpack.c.0.s8 %v1071
      %v1073 = vlaneseq
      %v1074 = vshrl.u32 %v1073, 7
      %v1075 = vsub.s32 %v1072, %v1074
      %v1076 = vrot.slane %v1051, %v1075
      %v1077 = vcombine.low %v1069, %v1076
      %v1078 = vcombine.low %v1053, %v1060
      %v1080 = vunpack.c.l.s4 1983009808
      %v1081 = vunpack.c.0.s8 %v1080
      %v1082 = vlaneseq
      %v1083 = vshrl.u32 %v1082, 7
      %v1084 = vsub.s32 %v1081, %v1083
      %v1085 = vrot.slane %v1078, %v1084
      %v1087 = vunpack.c.l.s4 1983009808
      %v1088 = vunpack.c.0.s8 %v1087
      %v1089 = vlaneseq
      %v1090 = vshrl.u32 %v1089, 7
      %v1091 = vsub.s32 %v1088, %v1090
      %v1092 = vrot.slane %v1061, %v1091
      %v1093 = vcombine.low %v1085, %v1092
      %v1096 = vpack.c.bf16 %v1077, %v1077
      %v1097 = vpack.c.bf16 %v1093, %v1093
      %1099 = vrot.lane.b32.xlu0 %v1096, 96
      %v1100 = vpop.permute.xlu0 %1099
      %vm1101 = vcmask 64512
      %v1103 = vsel %vm1101, %v1096, 0
      %v1106 = vsel %vm1101, %v1100, 0
      %1108 = vmatprep.subr.bf16.mxu0 0
      %1109 = vmatpush1.bf16.xpose.msra.mxu0 %v1106
      %1110 = vmatprep.subr.bf16.mxu0 0
      %1111 = vmatpush1.bf16.xpose.msra.mxu0 0
      %1112 = vmatprep.subr.bf16.mxu0 0
      %1113 = vmatpush1.bf16.xpose.msra.mxu0 0
      %1114 = vmatprep.subr.bf16.mxu0 0
      %1115 = vmatpush1.bf16.xpose.msra.mxu0 0
      %1116 = vmatprep.subr.bf16.mxu0 0
      %1117 = vmatpush1.bf16.xpose.msra.mxu0 0
      %1118 = vmatprep.subr.bf16.mxu0 0
      %1119 = vmatpush1.bf16.xpose.msra.mxu0 0
      %1120 = vmatprep.subr.bf16.mxu0 0
      %1121 = vmatpush1.bf16.xpose.msra.mxu0 0
      %1122 = vmatprep.subr.bf16.mxu0 0
      %1123 = vmatpush1.bf16.xpose.msra.mxu0 0
      %1124 = vmatprep.subr.bf16.mxu0 0
      %1125 = vmatpush1.bf16.xpose.msra.mxu0 0
      %1126 = vmatprep.subr.bf16.mxu0 0
      %1127 = vmatpush1.bf16.xpose.msra.mxu0 0
      %1128 = vmatprep.subr.bf16.mxu0 0
      %1129 = vmatpush1.bf16.xpose.msra.mxu0 0
      %1130 = vmatprep.subr.bf16.mxu0 0
      %1131 = vmatpush1.bf16.xpose.msra.mxu0 0
      %1132 = vmatprep.subr.bf16.mxu0 0
      %1133 = vmatpush1.bf16.xpose.msra.mxu0 0
      %1134 = vmatprep.subr.bf16.mxu0 0
      %1135 = vmatpush1.bf16.xpose.msra.mxu0 0
      %1136 = vmatprep.subr.bf16.mxu0 0
      %1137 = vmatpush1.bf16.xpose.msra.mxu0 0
      %1138 = vmatprep.subr.bf16.mxu0 0
      %1139 = vmatpush1.bf16.xpose.msra.mxu0 0
      %1140 = vmatprep.mubr.bf16.mxu0 0
      %1141 = vmatmul.mubr.bf16.gmra.mrb[0].mxu0 %v1103
      %v1142 = vpop.f32.mrb[0].mxu0
      %v1143 = vadd.f32 0.0, %v1142
      %v1144 = vpop.f32.mrb[0].mxu0
      %v1145 = vpop.f32.mrb[0].mxu0
      %v1146 = vpop.f32.mrb[0].mxu0
      %1147 = vdwg.mxu0
      %1149 = vrot.lane.b32.xlu0 %v1097, 96
      %v1150 = vpop.permute.xlu0 %1149
      %v1152 = vsel %vm1101, %v1097, 0
      %v1155 = vsel %vm1101, %v1150, 0
      %1157 = vmatprep.subr.bf16.mxu0 0
      %1158 = vmatpush1.bf16.xpose.msra.mxu0 %v1155
      %1159 = vmatprep.subr.bf16.mxu0 0
      %1160 = vmatpush1.bf16.xpose.msra.mxu0 0
      %1161 = vmatprep.subr.bf16.mxu0 0
      %1162 = vmatpush1.bf16.xpose.msra.mxu0 0
      %1163 = vmatprep.subr.bf16.mxu0 0
      %1164 = vmatpush1.bf16.xpose.msra.mxu0 0
      %1165 = vmatprep.subr.bf16.mxu0 0
      %1166 = vmatpush1.bf16.xpose.msra.mxu0 0
      %1167 = vmatprep.subr.bf16.mxu0 0
      %1168 = vmatpush1.bf16.xpose.msra.mxu0 0
      %1169 = vmatprep.subr.bf16.mxu0 0
      %1170 = vmatpush1.bf16.xpose.msra.mxu0 0
      %1171 = vmatprep.subr.bf16.mxu0 0
      %1172 = vmatpush1.bf16.xpose.msra.mxu0 0
      %1173 = vmatprep.subr.bf16.mxu0 0
      %1174 = vmatpush1.bf16.xpose.msra.mxu0 0
      %1175 = vmatprep.subr.bf16.mxu0 0
      %1176 = vmatpush1.bf16.xpose.msra.mxu0 0
      %1177 = vmatprep.subr.bf16.mxu0 0
      %1178 = vmatpush1.bf16.xpose.msra.mxu0 0
      %1179 = vmatprep.subr.bf16.mxu0 0
      %1180 = vmatpush1.bf16.xpose.msra.mxu0 0
      %1181 = vmatprep.subr.bf16.mxu0 0
      %1182 = vmatpush1.bf16.xpose.msra.mxu0 0
      %1183 = vmatprep.subr.bf16.mxu0 0
      %1184 = vmatpush1.bf16.xpose.msra.mxu0 0
      %1185 = vmatprep.subr.bf16.mxu0 0
      %1186 = vmatpush1.bf16.xpose.msra.mxu0 0
      %1187 = vmatprep.subr.bf16.mxu0 0
      %1188 = vmatpush1.bf16.xpose.msra.mxu0 0
      %1189 = vmatprep.mubr.bf16.mxu0 0
      %1190 = vmatmul.mubr.bf16.gmra.mrb[0].mxu0 %v1152
      %v1191 = vpop.f32.mrb[0].mxu0
      %v1192 = vadd.f32 0.0, %v1191
      %v1193 = vpop.f32.mrb[0].mxu0
      %v1194 = vpop.f32.mrb[0].mxu0
      %v1195 = vpop.f32.mrb[0].mxu0
      %1196 = vdwg.mxu0
      %v1197 = vmul.f32 %v1143, 0.35355338
      %v1198 = vmul.f32 %v1192, 0.35355338
      %vm1199 = vcmask 46080
      %v1200 = vsel %vm1199, %v1197, -inf
      %1201 = vmax.xlane.f32.xlu0 %v1200
      %v1202 = vpop.xlane.xlu0 %1201
      %v1203 = vsel %vm1199, %v1198, -inf
      %1204 = vmax.xlane.f32.xlu0 %v1203
      %v1205 = vpop.xlane.xlu0 %1204
      %v1206 = vsub.f32 %v1197, %v1202
      %v1207 = vsub.f32 %v1198, %v1205
      %v1208 = vmul.f32 %v1206, 1.442695
      %v1209 = vpow.pop %v1208
      %v1210 = vmul.f32 %v1207, 1.442695
      %v1211 = vpow.pop %v1210
      %v1212 = vsel %vm1199, %v1209, 0.0
      %1213 = vadd.xlane.f32.xlu0 %v1212
      %v1214 = vpop.xlane.xlu0 %1213
      %v1215 = vsel %vm1199, %v1211, 0.0
      %1216 = vadd.xlane.f32.xlu0 %v1215
      %v1217 = vpop.xlane.xlu0 %1216
      %v1218 = vrcp.pop %v1214
      %v1219 = vrcp.pop %v1217
      %v1220 = vmul.f32 %v1209, %v1218
      %v1221 = vmul.f32 %v1211, %v1219
      %v1222 = vpack.c.bf16 %v1220, %v1220
      %v1223 = vpack.c.bf16 %v1221, %v1221
      %1224 = vrot.lane.b32.xlu0 %v1096, 64
      %v1225 = vpop.permute.xlu0 %1224
      %vm1226 = vcmask 48128
      %v1228 = vsel %vm1226, %v1222, 0
      %vm1230 = vcmask 1042432
      %v1232 = vsel %vm1230, %v1225, 0
      %1234 = vmatprep.subr.bf16.mxu0 0
      %1235 = vmatpush1.bf16.msra.mxu0 %v1232
      %1236 = vmatprep.subr.bf16.mxu0 0
      %1237 = vmatpush1.bf16.msra.mxu0 0
      %1238 = vmatprep.subr.bf16.mxu0 0
      %1239 = vmatpush1.bf16.msra.mxu0 0
      %1240 = vmatprep.subr.bf16.mxu0 0
      %1241 = vmatpush1.bf16.msra.mxu0 0
      %1242 = vmatprep.subr.bf16.mxu0 0
      %1243 = vmatpush1.bf16.msra.mxu0 0
      %1244 = vmatprep.subr.bf16.mxu0 0
      %1245 = vmatpush1.bf16.msra.mxu0 0
      %1246 = vmatprep.subr.bf16.mxu0 0
      %1247 = vmatpush1.bf16.msra.mxu0 0
      %1248 = vmatprep.subr.bf16.mxu0 0
      %1249 = vmatpush1.bf16.msra.mxu0 0
      %1250 = vmatprep.subr.bf16.mxu0 0
      %1251 = vmatpush1.bf16.msra.mxu0 0
      %1252 = vmatprep.subr.bf16.mxu0 0
      %1253 = vmatpush1.bf16.msra.mxu0 0
      %1254 = vmatprep.subr.bf16.mxu0 0
      %1255 = vmatpush1.bf16.msra.mxu0 0
      %1256 = vmatprep.subr.bf16.mxu0 0
      %1257 = vmatpush1.bf16.msra.mxu0 0
      %1258 = vmatprep.subr.bf16.mxu0 0
      %1259 = vmatpush1.bf16.msra.mxu0 0
      %1260 = vmatprep.subr.bf16.mxu0 0
      %1261 = vmatpush1.bf16.msra.mxu0 0
      %1262 = vmatprep.subr.bf16.mxu0 0
      %1263 = vmatpush1.bf16.msra.mxu0 0
      %1264 = vmatprep.subr.bf16.mxu0 0
      %1265 = vmatpush1.bf16.msra.mxu0 0
      %1266 = vmatprep.mubr.bf16.mxu0 0
      %1267 = vmatmul.mubr.bf16.gmra.mrb[0].mxu0 %v1228
      %v1268 = vpop.f32.mrb[0].mxu0
      %v1269 = vadd.f32 0.0, %v1268
      %v1270 = vpop.f32.mrb[0].mxu0
      %v1271 = vpop.f32.mrb[0].mxu0
      %v1272 = vpop.f32.mrb[0].mxu0
      %1273 = vdwg.mxu0
      %1274 = vrot.lane.b32.xlu0 %v1097, 64
      %v1275 = vpop.permute.xlu0 %1274
      %v1277 = vsel %vm1226, %v1223, 0
      %v1280 = vsel %vm1230, %v1275, 0
      %1282 = vmatprep.subr.bf16.mxu0 0
      %1283 = vmatpush1.bf16.msra.mxu0 %v1280
      %1284 = vmatprep.subr.bf16.mxu0 0
      %1285 = vmatpush1.bf16.msra.mxu0 0
      %1286 = vmatprep.subr.bf16.mxu0 0
      %1287 = vmatpush1.bf16.msra.mxu0 0
      %1288 = vmatprep.subr.bf16.mxu0 0
      %1289 = vmatpush1.bf16.msra.mxu0 0
      %1290 = vmatprep.subr.bf16.mxu0 0
      %1291 = vmatpush1.bf16.msra.mxu0 0
      %1292 = vmatprep.subr.bf16.mxu0 0
      %1293 = vmatpush1.bf16.msra.mxu0 0
      %1294 = vmatprep.subr.bf16.mxu0 0
      %1295 = vmatpush1.bf16.msra.mxu0 0
      %1296 = vmatprep.subr.bf16.mxu0 0
      %1297 = vmatpush1.bf16.msra.mxu0 0
      %1298 = vmatprep.subr.bf16.mxu0 0
      %1299 = vmatpush1.bf16.msra.mxu0 0
      %1300 = vmatprep.subr.bf16.mxu0 0
      %1301 = vmatpush1.bf16.msra.mxu0 0
      %1302 = vmatprep.subr.bf16.mxu0 0
      %1303 = vmatpush1.bf16.msra.mxu0 0
      %1304 = vmatprep.subr.bf16.mxu0 0
      %1305 = vmatpush1.bf16.msra.mxu0 0
      %1306 = vmatprep.subr.bf16.mxu0 0
      %1307 = vmatpush1.bf16.msra.mxu0 0
      %1308 = vmatprep.subr.bf16.mxu0 0
      %1309 = vmatpush1.bf16.msra.mxu0 0
      %1310 = vmatprep.subr.bf16.mxu0 0
      %1311 = vmatpush1.bf16.msra.mxu0 0
      %1312 = vmatprep.subr.bf16.mxu0 0
      %1313 = vmatpush1.bf16.msra.mxu0 0
      %1314 = vmatprep.mubr.bf16.mxu0 0
      %1315 = vmatmul.mubr.bf16.gmra.mrb[0].mxu0 %v1277
      %v1316 = vpop.f32.mrb[0].mxu0
      %v1317 = vadd.f32 0.0, %v1316
      %v1318 = vpop.f32.mrb[0].mxu0
      %v1319 = vpop.f32.mrb[0].mxu0
      %v1320 = vpop.f32.mrb[0].mxu0
      %1321 = vdwg.mxu0
      %1322 = vrot.lane.b32.xlu0 %v1096, 120
      %v1323 = vpop.permute.xlu0 %1322
      %1324 = vrot.lane.b32.xlu0 %v1096, 88
      %v1325 = vpop.permute.xlu0 %1324
      %v1327 = vsel %vm1101, %v1323, 0
      %v1330 = vsel %vm1101, %v1325, 0
      %1332 = vmatprep.subr.bf16.mxu0 0
      %1333 = vmatpush1.bf16.xpose.msra.mxu0 %v1330
      %1334 = vmatprep.subr.bf16.mxu0 0
      %1335 = vmatpush1.bf16.xpose.msra.mxu0 0
      %1336 = vmatprep.subr.bf16.mxu0 0
      %1337 = vmatpush1.bf16.xpose.msra.mxu0 0
      %1338 = vmatprep.subr.bf16.mxu0 0
      %1339 = vmatpush1.bf16.xpose.msra.mxu0 0
      %1340 = vmatprep.subr.bf16.mxu0 0
      %1341 = vmatpush1.bf16.xpose.msra.mxu0 0
      %1342 = vmatprep.subr.bf16.mxu0 0
      %1343 = vmatpush1.bf16.xpose.msra.mxu0 0
      %1344 = vmatprep.subr.bf16.mxu0 0
      %1345 = vmatpush1.bf16.xpose.msra.mxu0 0
      %1346 = vmatprep.subr.bf16.mxu0 0
      %1347 = vmatpush1.bf16.xpose.msra.mxu0 0
      %1348 = vmatprep.subr.bf16.mxu0 0
      %1349 = vmatpush1.bf16.xpose.msra.mxu0 0
      %1350 = vmatprep.subr.bf16.mxu0 0
      %1351 = vmatpush1.bf16.xpose.msra.mxu0 0
      %1352 = vmatprep.subr.bf16.mxu0 0
      %1353 = vmatpush1.bf16.xpose.msra.mxu0 0
      %1354 = vmatprep.subr.bf16.mxu0 0
      %1355 = vmatpush1.bf16.xpose.msra.mxu0 0
      %1356 = vmatprep.subr.bf16.mxu0 0
      %1357 = vmatpush1.bf16.xpose.msra.mxu0 0
      %1358 = vmatprep.subr.bf16.mxu0 0
      %1359 = vmatpush1.bf16.xpose.msra.mxu0 0
      %1360 = vmatprep.subr.bf16.mxu0 0
      %1361 = vmatpush1.bf16.xpose.msra.mxu0 0
      %1362 = vmatprep.subr.bf16.mxu0 0
      %1363 = vmatpush1.bf16.xpose.msra.mxu0 0
      %1364 = vmatprep.mubr.bf16.mxu0 0
      %1365 = vmatmul.mubr.bf16.gmra.mrb[0].mxu0 %v1327
      %v1366 = vpop.f32.mrb[0].mxu0
      %v1367 = vadd.f32 0.0, %v1366
      %v1368 = vpop.f32.mrb[0].mxu0
      %v1369 = vpop.f32.mrb[0].mxu0
      %v1370 = vpop.f32.mrb[0].mxu0
      %1371 = vdwg.mxu0
      %1372 = vrot.lane.b32.xlu0 %v1097, 120
      %v1373 = vpop.permute.xlu0 %1372
      %1374 = vrot.lane.b32.xlu0 %v1097, 88
      %v1375 = vpop.permute.xlu0 %1374
      %v1377 = vsel %vm1101, %v1373, 0
      %v1380 = vsel %vm1101, %v1375, 0
      %1382 = vmatprep.subr.bf16.mxu0 0
      %1383 = vmatpush1.bf16.xpose.msra.mxu0 %v1380
      %1384 = vmatprep.subr.bf16.mxu0 0
      %1385 = vmatpush1.bf16.xpose.msra.mxu0 0
      %1386 = vmatprep.subr.bf16.mxu0 0
      %1387 = vmatpush1.bf16.xpose.msra.mxu0 0
      %1388 = vmatprep.subr.bf16.mxu0 0
      %1389 = vmatpush1.bf16.xpose.msra.mxu0 0
      %1390 = vmatprep.subr.bf16.mxu0 0
      %1391 = vmatpush1.bf16.xpose.msra.mxu0 0
      %1392 = vmatprep.subr.bf16.mxu0 0
      %1393 = vmatpush1.bf16.xpose.msra.mxu0 0
      %1394 = vmatprep.subr.bf16.mxu0 0
      %1395 = vmatpush1.bf16.xpose.msra.mxu0 0
      %1396 = vmatprep.subr.bf16.mxu0 0
      %1397 = vmatpush1.bf16.xpose.msra.mxu0 0
      %1398 = vmatprep.subr.bf16.mxu0 0
      %1399 = vmatpush1.bf16.xpose.msra.mxu0 0
      %1400 = vmatprep.subr.bf16.mxu0 0
      %1401 = vmatpush1.bf16.xpose.msra.mxu0 0
      %1402 = vmatprep.subr.bf16.mxu0 0
      %1403 = vmatpush1.bf16.xpose.msra.mxu0 0
      %1404 = vmatprep.subr.bf16.mxu0 0
      %1405 = vmatpush1.bf16.xpose.msra.mxu0 0
      %1406 = vmatprep.subr.bf16.mxu0 0
      %1407 = vmatpush1.bf16.xpose.msra.mxu0 0
      %1408 = vmatprep.subr.bf16.mxu0 0
      %1409 = vmatpush1.bf16.xpose.msra.mxu0 0
      %1410 = vmatprep.subr.bf16.mxu0 0
      %1411 = vmatpush1.bf16.xpose.msra.mxu0 0
      %1412 = vmatprep.subr.bf16.mxu0 0
      %1413 = vmatpush1.bf16.xpose.msra.mxu0 0
      %1414 = vmatprep.mubr.bf16.mxu0 0
      %1415 = vmatmul.mubr.bf16.gmra.mrb[0].mxu0 %v1377
      %v1416 = vpop.f32.mrb[0].mxu0
      %v1417 = vadd.f32 0.0, %v1416
      %v1418 = vpop.f32.mrb[0].mxu0
      %v1419 = vpop.f32.mrb[0].mxu0
      %v1420 = vpop.f32.mrb[0].mxu0
      %1421 = vdwg.mxu0
      %v1422 = vmul.f32 %v1367, 0.35355338
      %v1423 = vmul.f32 %v1417, 0.35355338
      %v1424 = vsel %vm1199, %v1422, -inf
      %1425 = vmax.xlane.f32.xlu0 %v1424
      %v1426 = vpop.xlane.xlu0 %1425
      %v1427 = vsel %vm1199, %v1423, -inf
      %1428 = vmax.xlane.f32.xlu0 %v1427
      %v1429 = vpop.xlane.xlu0 %1428
      %v1430 = vsub.f32 %v1422, %v1426
      %v1431 = vsub.f32 %v1423, %v1429
      %v1432 = vmul.f32 %v1430, 1.442695
      %v1433 = vpow.pop %v1432
      %v1434 = vmul.f32 %v1431, 1.442695
      %v1435 = vpow.pop %v1434
      %v1436 = vsel %vm1199, %v1433, 0.0
      %1437 = vadd.xlane.f32.xlu0 %v1436
      %v1438 = vpop.xlane.xlu0 %1437
      %v1439 = vsel %vm1199, %v1435, 0.0
      %1440 = vadd.xlane.f32.xlu0 %v1439
      %v1441 = vpop.xlane.xlu0 %1440
      %v1442 = vrcp.pop %v1438
      %v1443 = vrcp.pop %v1441
      %v1444 = vmul.f32 %v1433, %v1442
      %v1445 = vmul.f32 %v1435, %v1443
      %v1446 = vpack.c.bf16 %v1444, %v1444
      %v1447 = vpack.c.bf16 %v1445, %v1445
      %1448 = vrot.lane.b32.xlu0 %v1096, 56
      %v1449 = vpop.permute.xlu0 %1448
      %v1451 = vsel %vm1226, %v1446, 0
      %v1454 = vsel %vm1230, %v1449, 0
      %1456 = vmatprep.subr.bf16.mxu0 0
      %1457 = vmatpush1.bf16.msra.mxu0 %v1454
      %1458 = vmatprep.subr.bf16.mxu0 0
      %1459 = vmatpush1.bf16.msra.mxu0 0
      %1460 = vmatprep.subr.bf16.mxu0 0
      %1461 = vmatpush1.bf16.msra.mxu0 0
      %1462 = vmatprep.subr.bf16.mxu0 0
      %1463 = vmatpush1.bf16.msra.mxu0 0
      %1464 = vmatprep.subr.bf16.mxu0 0
      %1465 = vmatpush1.bf16.msra.mxu0 0
      %1466 = vmatprep.subr.bf16.mxu0 0
      %1467 = vmatpush1.bf16.msra.mxu0 0
      %1468 = vmatprep.subr.bf16.mxu0 0
      %1469 = vmatpush1.bf16.msra.mxu0 0
      %1470 = vmatprep.subr.bf16.mxu0 0
      %1471 = vmatpush1.bf16.msra.mxu0 0
      %1472 = vmatprep.subr.bf16.mxu0 0
      %1473 = vmatpush1.bf16.msra.mxu0 0
      %1474 = vmatprep.subr.bf16.mxu0 0
      %1475 = vmatpush1.bf16.msra.mxu0 0
      %1476 = vmatprep.subr.bf16.mxu0 0
      %1477 = vmatpush1.bf16.msra.mxu0 0
      %1478 = vmatprep.subr.bf16.mxu0 0
      %1479 = vmatpush1.bf16.msra.mxu0 0
      %1480 = vmatprep.subr.bf16.mxu0 0
      %1481 = vmatpush1.bf16.msra.mxu0 0
      %1482 = vmatprep.subr.bf16.mxu0 0
      %1483 = vmatpush1.bf16.msra.mxu0 0
      %1484 = vmatprep.subr.bf16.mxu0 0
      %1485 = vmatpush1.bf16.msra.mxu0 0
      %1486 = vmatprep.subr.bf16.mxu0 0
      %1487 = vmatpush1.bf16.msra.mxu0 0
      %1488 = vmatprep.mubr.bf16.mxu0 0
      %1489 = vmatmul.mubr.bf16.gmra.mrb[0].mxu0 %v1451
      %v1490 = vpop.f32.mrb[0].mxu0
      %v1491 = vadd.f32 0.0, %v1490
      %v1492 = vpop.f32.mrb[0].mxu0
      %v1493 = vpop.f32.mrb[0].mxu0
      %v1494 = vpop.f32.mrb[0].mxu0
      %1495 = vdwg.mxu0
      %1496 = vrot.lane.b32.xlu0 %v1097, 56
      %v1497 = vpop.permute.xlu0 %1496
      %v1499 = vsel %vm1226, %v1447, 0
      %v1502 = vsel %vm1230, %v1497, 0
      %1504 = vmatprep.subr.bf16.mxu0 0
      %1505 = vmatpush1.bf16.msra.mxu0 %v1502
      %1506 = vmatprep.subr.bf16.mxu0 0
      %1507 = vmatpush1.bf16.msra.mxu0 0
      %1508 = vmatprep.subr.bf16.mxu0 0
      %1509 = vmatpush1.bf16.msra.mxu0 0
      %1510 = vmatprep.subr.bf16.mxu0 0
      %1511 = vmatpush1.bf16.msra.mxu0 0
      %1512 = vmatprep.subr.bf16.mxu0 0
      %1513 = vmatpush1.bf16.msra.mxu0 0
      %1514 = vmatprep.subr.bf16.mxu0 0
      %1515 = vmatpush1.bf16.msra.mxu0 0
      %1516 = vmatprep.subr.bf16.mxu0 0
      %1517 = vmatpush1.bf16.msra.mxu0 0
      %1518 = vmatprep.subr.bf16.mxu0 0
      %1519 = vmatpush1.bf16.msra.mxu0 0
      %1520 = vmatprep.subr.bf16.mxu0 0
      %1521 = vmatpush1.bf16.msra.mxu0 0
      %1522 = vmatprep.subr.bf16.mxu0 0
      %1523 = vmatpush1.bf16.msra.mxu0 0
      %1524 = vmatprep.subr.bf16.mxu0 0
      %1525 = vmatpush1.bf16.msra.mxu0 0
      %1526 = vmatprep.subr.bf16.mxu0 0
      %1527 = vmatpush1.bf16.msra.mxu0 0
      %1528 = vmatprep.subr.bf16.mxu0 0
      %1529 = vmatpush1.bf16.msra.mxu0 0
      %1530 = vmatprep.subr.bf16.mxu0 0
      %1531 = vmatpush1.bf16.msra.mxu0 0
      %1532 = vmatprep.subr.bf16.mxu0 0
      %1533 = vmatpush1.bf16.msra.mxu0 0
      %1534 = vmatprep.subr.bf16.mxu0 0
      %1535 = vmatpush1.bf16.msra.mxu0 0
      %1536 = vmatprep.mubr.bf16.mxu0 0
      %1537 = vmatmul.mubr.bf16.gmra.mrb[0].mxu0 %v1499
      %v1538 = vpop.f32.mrb[0].mxu0
      %v1539 = vadd.f32 0.0, %v1538
      %v1540 = vpop.f32.mrb[0].mxu0
      %v1541 = vpop.f32.mrb[0].mxu0
      %v1542 = vpop.f32.mrb[0].mxu0
      %1543 = vdwg.mxu0
      %1544 = vrot.lane.b32.xlu0 %v1096, 112
      %v1545 = vpop.permute.xlu0 %1544
      %1546 = vrot.lane.b32.xlu0 %v1096, 80
      %v1547 = vpop.permute.xlu0 %1546
      %v1549 = vsel %vm1101, %v1545, 0
      %v1552 = vsel %vm1101, %v1547, 0
      %1554 = vmatprep.subr.bf16.mxu0 0
      %1555 = vmatpush1.bf16.xpose.msra.mxu0 %v1552
      %1556 = vmatprep.subr.bf16.mxu0 0
      %1557 = vmatpush1.bf16.xpose.msra.mxu0 0
      %1558 = vmatprep.subr.bf16.mxu0 0
      %1559 = vmatpush1.bf16.xpose.msra.mxu0 0
      %1560 = vmatprep.subr.bf16.mxu0 0
      %1561 = vmatpush1.bf16.xpose.msra.mxu0 0
      %1562 = vmatprep.subr.bf16.mxu0 0
      %1563 = vmatpush1.bf16.xpose.msra.mxu0 0
      %1564 = vmatprep.subr.bf16.mxu0 0
      %1565 = vmatpush1.bf16.xpose.msra.mxu0 0
      %1566 = vmatprep.subr.bf16.mxu0 0
      %1567 = vmatpush1.bf16.xpose.msra.mxu0 0
      %1568 = vmatprep.subr.bf16.mxu0 0
      %1569 = vmatpush1.bf16.xpose.msra.mxu0 0
      %1570 = vmatprep.subr.bf16.mxu0 0
      %1571 = vmatpush1.bf16.xpose.msra.mxu0 0
      %1572 = vmatprep.subr.bf16.mxu0 0
      %1573 = vmatpush1.bf16.xpose.msra.mxu0 0
      %1574 = vmatprep.subr.bf16.mxu0 0
      %1575 = vmatpush1.bf16.xpose.msra.mxu0 0
      %1576 = vmatprep.subr.bf16.mxu0 0
      %1577 = vmatpush1.bf16.xpose.msra.mxu0 0
      %1578 = vmatprep.subr.bf16.mxu0 0
      %1579 = vmatpush1.bf16.xpose.msra.mxu0 0
      %1580 = vmatprep.subr.bf16.mxu0 0
      %1581 = vmatpush1.bf16.xpose.msra.mxu0 0
      %1582 = vmatprep.subr.bf16.mxu0 0
      %1583 = vmatpush1.bf16.xpose.msra.mxu0 0
      %1584 = vmatprep.subr.bf16.mxu0 0
      %1585 = vmatpush1.bf16.xpose.msra.mxu0 0
      %1586 = vmatprep.mubr.bf16.mxu0 0
      %1587 = vmatmul.mubr.bf16.gmra.mrb[0].mxu0 %v1549
      %v1588 = vpop.f32.mrb[0].mxu0
      %v1589 = vadd.f32 0.0, %v1588
      %v1590 = vpop.f32.mrb[0].mxu0
      %v1591 = vpop.f32.mrb[0].mxu0
      %v1592 = vpop.f32.mrb[0].mxu0
      %1593 = vdwg.mxu0
      %1594 = vrot.lane.b32.xlu0 %v1097, 112
      %v1595 = vpop.permute.xlu0 %1594
      %1596 = vrot.lane.b32.xlu0 %v1097, 80
      %v1597 = vpop.permute.xlu0 %1596
      %v1599 = vsel %vm1101, %v1595, 0
      %v1602 = vsel %vm1101, %v1597, 0
      %1604 = vmatprep.subr.bf16.mxu0 0
      %1605 = vmatpush1.bf16.xpose.msra.mxu0 %v1602
      %1606 = vmatprep.subr.bf16.mxu0 0
      %1607 = vmatpush1.bf16.xpose.msra.mxu0 0
      %1608 = vmatprep.subr.bf16.mxu0 0
      %1609 = vmatpush1.bf16.xpose.msra.mxu0 0
      %1610 = vmatprep.subr.bf16.mxu0 0
      %1611 = vmatpush1.bf16.xpose.msra.mxu0 0
      %1612 = vmatprep.subr.bf16.mxu0 0
      %1613 = vmatpush1.bf16.xpose.msra.mxu0 0
      %1614 = vmatprep.subr.bf16.mxu0 0
      %1615 = vmatpush1.bf16.xpose.msra.mxu0 0
      %1616 = vmatprep.subr.bf16.mxu0 0
      %1617 = vmatpush1.bf16.xpose.msra.mxu0 0
      %1618 = vmatprep.subr.bf16.mxu0 0
      %1619 = vmatpush1.bf16.xpose.msra.mxu0 0
      %1620 = vmatprep.subr.bf16.mxu0 0
      %1621 = vmatpush1.bf16.xpose.msra.mxu0 0
      %1622 = vmatprep.subr.bf16.mxu0 0
      %1623 = vmatpush1.bf16.xpose.msra.mxu0 0
      %1624 = vmatprep.subr.bf16.mxu0 0
      %1625 = vmatpush1.bf16.xpose.msra.mxu0 0
      %1626 = vmatprep.subr.bf16.mxu0 0
      %1627 = vmatpush1.bf16.xpose.msra.mxu0 0
      %1628 = vmatprep.subr.bf16.mxu0 0
      %1629 = vmatpush1.bf16.xpose.msra.mxu0 0
      %1630 = vmatprep.subr.bf16.mxu0 0
      %1631 = vmatpush1.bf16.xpose.msra.mxu0 0
      %1632 = vmatprep.subr.bf16.mxu0 0
      %1633 = vmatpush1.bf16.xpose.msra.mxu0 0
      %1634 = vmatprep.subr.bf16.mxu0 0
      %1635 = vmatpush1.bf16.xpose.msra.mxu0 0
      %1636 = vmatprep.mubr.bf16.mxu0 0
      %1637 = vmatmul.mubr.bf16.gmra.mrb[0].mxu0 %v1599
      %v1638 = vpop.f32.mrb[0].mxu0
      %v1639 = vadd.f32 0.0, %v1638
      %v1640 = vpop.f32.mrb[0].mxu0
      %v1641 = vpop.f32.mrb[0].mxu0
      %v1642 = vpop.f32.mrb[0].mxu0
      %1643 = vdwg.mxu0
      %v1644 = vmul.f32 %v1589, 0.35355338
      %v1645 = vmul.f32 %v1639, 0.35355338
      %v1646 = vsel %vm1199, %v1644, -inf
      %1647 = vmax.xlane.f32.xlu0 %v1646
      %v1648 = vpop.xlane.xlu0 %1647
      %v1649 = vsel %vm1199, %v1645, -inf
      %1650 = vmax.xlane.f32.xlu0 %v1649
      %v1651 = vpop.xlane.xlu0 %1650
      %v1652 = vsub.f32 %v1644, %v1648
      %v1653 = vsub.f32 %v1645, %v1651
      %v1654 = vmul.f32 %v1652, 1.442695
      %v1655 = vpow.pop %v1654
      %v1656 = vmul.f32 %v1653, 1.442695
      %v1657 = vpow.pop %v1656
      %v1658 = vsel %vm1199, %v1655, 0.0
      %1659 = vadd.xlane.f32.xlu0 %v1658
      %v1660 = vpop.xlane.xlu0 %1659
      %v1661 = vsel %vm1199, %v1657, 0.0
      %1662 = vadd.xlane.f32.xlu0 %v1661
      %v1663 = vpop.xlane.xlu0 %1662
      %v1664 = vrcp.pop %v1660
      %v1665 = vrcp.pop %v1663
      %v1666 = vmul.f32 %v1655, %v1664
      %v1667 = vmul.f32 %v1657, %v1665
      %v1668 = vpack.c.bf16 %v1666, %v1666
      %v1669 = vpack.c.bf16 %v1667, %v1667
      %1670 = vrot.lane.b32.xlu0 %v1096, 48
      %v1671 = vpop.permute.xlu0 %1670
      %v1673 = vsel %vm1226, %v1668, 0
      %v1676 = vsel %vm1230, %v1671, 0
      %1678 = vmatprep.subr.bf16.mxu0 0
      %1679 = vmatpush1.bf16.msra.mxu0 %v1676
      %1680 = vmatprep.subr.bf16.mxu0 0
      %1681 = vmatpush1.bf16.msra.mxu0 0
      %1682 = vmatprep.subr.bf16.mxu0 0
      %1683 = vmatpush1.bf16.msra.mxu0 0
      %1684 = vmatprep.subr.bf16.mxu0 0
      %1685 = vmatpush1.bf16.msra.mxu0 0
      %1686 = vmatprep.subr.bf16.mxu0 0
      %1687 = vmatpush1.bf16.msra.mxu0 0
      %1688 = vmatprep.subr.bf16.mxu0 0
      %1689 = vmatpush1.bf16.msra.mxu0 0
      %1690 = vmatprep.subr.bf16.mxu0 0
      %1691 = vmatpush1.bf16.msra.mxu0 0
      %1692 = vmatprep.subr.bf16.mxu0 0
      %1693 = vmatpush1.bf16.msra.mxu0 0
      %1694 = vmatprep.subr.bf16.mxu0 0
      %1695 = vmatpush1.bf16.msra.mxu0 0
      %1696 = vmatprep.subr.bf16.mxu0 0
      %1697 = vmatpush1.bf16.msra.mxu0 0
      %1698 = vmatprep.subr.bf16.mxu0 0
      %1699 = vmatpush1.bf16.msra.mxu0 0
      %1700 = vmatprep.subr.bf16.mxu0 0
      %1701 = vmatpush1.bf16.msra.mxu0 0
      %1702 = vmatprep.subr.bf16.mxu0 0
      %1703 = vmatpush1.bf16.msra.mxu0 0
      %1704 = vmatprep.subr.bf16.mxu0 0
      %1705 = vmatpush1.bf16.msra.mxu0 0
      %1706 = vmatprep.subr.bf16.mxu0 0
      %1707 = vmatpush1.bf16.msra.mxu0 0
      %1708 = vmatprep.subr.bf16.mxu0 0
      %1709 = vmatpush1.bf16.msra.mxu0 0
      %1710 = vmatprep.mubr.bf16.mxu0 0
      %1711 = vmatmul.mubr.bf16.gmra.mrb[0].mxu0 %v1673
      %v1712 = vpop.f32.mrb[0].mxu0
      %v1713 = vadd.f32 0.0, %v1712
      %v1714 = vpop.f32.mrb[0].mxu0
      %v1715 = vpop.f32.mrb[0].mxu0
      %v1716 = vpop.f32.mrb[0].mxu0
      %1717 = vdwg.mxu0
      %1718 = vrot.lane.b32.xlu0 %v1097, 48
      %v1719 = vpop.permute.xlu0 %1718
      %v1721 = vsel %vm1226, %v1669, 0
      %v1724 = vsel %vm1230, %v1719, 0
      %1726 = vmatprep.subr.bf16.mxu0 0
      %1727 = vmatpush1.bf16.msra.mxu0 %v1724
      %1728 = vmatprep.subr.bf16.mxu0 0
      %1729 = vmatpush1.bf16.msra.mxu0 0
      %1730 = vmatprep.subr.bf16.mxu0 0
      %1731 = vmatpush1.bf16.msra.mxu0 0
      %1732 = vmatprep.subr.bf16.mxu0 0
      %1733 = vmatpush1.bf16.msra.mxu0 0
      %1734 = vmatprep.subr.bf16.mxu0 0
      %1735 = vmatpush1.bf16.msra.mxu0 0
      %1736 = vmatprep.subr.bf16.mxu0 0
      %1737 = vmatpush1.bf16.msra.mxu0 0
      %1738 = vmatprep.subr.bf16.mxu0 0
      %1739 = vmatpush1.bf16.msra.mxu0 0
      %1740 = vmatprep.subr.bf16.mxu0 0
      %1741 = vmatpush1.bf16.msra.mxu0 0
      %1742 = vmatprep.subr.bf16.mxu0 0
      %1743 = vmatpush1.bf16.msra.mxu0 0
      %1744 = vmatprep.subr.bf16.mxu0 0
      %1745 = vmatpush1.bf16.msra.mxu0 0
      %1746 = vmatprep.subr.bf16.mxu0 0
      %1747 = vmatpush1.bf16.msra.mxu0 0
      %1748 = vmatprep.subr.bf16.mxu0 0
      %1749 = vmatpush1.bf16.msra.mxu0 0
      %1750 = vmatprep.subr.bf16.mxu0 0
      %1751 = vmatpush1.bf16.msra.mxu0 0
      %1752 = vmatprep.subr.bf16.mxu0 0
      %1753 = vmatpush1.bf16.msra.mxu0 0
      %1754 = vmatprep.subr.bf16.mxu0 0
      %1755 = vmatpush1.bf16.msra.mxu0 0
      %1756 = vmatprep.subr.bf16.mxu0 0
      %1757 = vmatpush1.bf16.msra.mxu0 0
      %1758 = vmatprep.mubr.bf16.mxu0 0
      %1759 = vmatmul.mubr.bf16.gmra.mrb[0].mxu0 %v1721
      %v1760 = vpop.f32.mrb[0].mxu0
      %v1761 = vadd.f32 0.0, %v1760
      %v1762 = vpop.f32.mrb[0].mxu0
      %v1763 = vpop.f32.mrb[0].mxu0
      %v1764 = vpop.f32.mrb[0].mxu0
      %1765 = vdwg.mxu0
      %1766 = vrot.lane.b32.xlu0 %v1096, 104
      %v1767 = vpop.permute.xlu0 %1766
      %1768 = vrot.lane.b32.xlu0 %v1096, 72
      %v1769 = vpop.permute.xlu0 %1768
      %v1771 = vsel %vm1101, %v1767, 0
      %v1774 = vsel %vm1101, %v1769, 0
      %1776 = vmatprep.subr.bf16.mxu0 0
      %1777 = vmatpush1.bf16.xpose.msra.mxu0 %v1774
      %1778 = vmatprep.subr.bf16.mxu0 0
      %1779 = vmatpush1.bf16.xpose.msra.mxu0 0
      %1780 = vmatprep.subr.bf16.mxu0 0
      %1781 = vmatpush1.bf16.xpose.msra.mxu0 0
      %1782 = vmatprep.subr.bf16.mxu0 0
      %1783 = vmatpush1.bf16.xpose.msra.mxu0 0
      %1784 = vmatprep.subr.bf16.mxu0 0
      %1785 = vmatpush1.bf16.xpose.msra.mxu0 0
      %1786 = vmatprep.subr.bf16.mxu0 0
      %1787 = vmatpush1.bf16.xpose.msra.mxu0 0
      %1788 = vmatprep.subr.bf16.mxu0 0
      %1789 = vmatpush1.bf16.xpose.msra.mxu0 0
      %1790 = vmatprep.subr.bf16.mxu0 0
      %1791 = vmatpush1.bf16.xpose.msra.mxu0 0
      %1792 = vmatprep.subr.bf16.mxu0 0
      %1793 = vmatpush1.bf16.xpose.msra.mxu0 0
      %1794 = vmatprep.subr.bf16.mxu0 0
      %1795 = vmatpush1.bf16.xpose.msra.mxu0 0
      %1796 = vmatprep.subr.bf16.mxu0 0
      %1797 = vmatpush1.bf16.xpose.msra.mxu0 0
      %1798 = vmatprep.subr.bf16.mxu0 0
      %1799 = vmatpush1.bf16.xpose.msra.mxu0 0
      %1800 = vmatprep.subr.bf16.mxu0 0
      %1801 = vmatpush1.bf16.xpose.msra.mxu0 0
      %1802 = vmatprep.subr.bf16.mxu0 0
      %1803 = vmatpush1.bf16.xpose.msra.mxu0 0
      %1804 = vmatprep.subr.bf16.mxu0 0
      %1805 = vmatpush1.bf16.xpose.msra.mxu0 0
      %1806 = vmatprep.subr.bf16.mxu0 0
      %1807 = vmatpush1.bf16.xpose.msra.mxu0 0
      %1808 = vmatprep.mubr.bf16.mxu0 0
      %1809 = vmatmul.mubr.bf16.gmra.mrb[0].mxu0 %v1771
      %v1810 = vpop.f32.mrb[0].mxu0
      %v1811 = vadd.f32 0.0, %v1810
      %v1812 = vpop.f32.mrb[0].mxu0
      %v1813 = vpop.f32.mrb[0].mxu0
      %v1814 = vpop.f32.mrb[0].mxu0
      %1815 = vdwg.mxu0
      %1816 = vrot.lane.b32.xlu0 %v1097, 104
      %v1817 = vpop.permute.xlu0 %1816
      %1818 = vrot.lane.b32.xlu0 %v1097, 72
      %v1819 = vpop.permute.xlu0 %1818
      %v1821 = vsel %vm1101, %v1817, 0
      %v1824 = vsel %vm1101, %v1819, 0
      %1826 = vmatprep.subr.bf16.mxu0 0
      %1827 = vmatpush1.bf16.xpose.msra.mxu0 %v1824
      %1828 = vmatprep.subr.bf16.mxu0 0
      %1829 = vmatpush1.bf16.xpose.msra.mxu0 0
      %1830 = vmatprep.subr.bf16.mxu0 0
      %1831 = vmatpush1.bf16.xpose.msra.mxu0 0
      %1832 = vmatprep.subr.bf16.mxu0 0
      %1833 = vmatpush1.bf16.xpose.msra.mxu0 0
      %1834 = vmatprep.subr.bf16.mxu0 0
      %1835 = vmatpush1.bf16.xpose.msra.mxu0 0
      %1836 = vmatprep.subr.bf16.mxu0 0
      %1837 = vmatpush1.bf16.xpose.msra.mxu0 0
      %1838 = vmatprep.subr.bf16.mxu0 0
      %1839 = vmatpush1.bf16.xpose.msra.mxu0 0
      %1840 = vmatprep.subr.bf16.mxu0 0
      %1841 = vmatpush1.bf16.xpose.msra.mxu0 0
      %1842 = vmatprep.subr.bf16.mxu0 0
      %1843 = vmatpush1.bf16.xpose.msra.mxu0 0
      %1844 = vmatprep.subr.bf16.mxu0 0
      %1845 = vmatpush1.bf16.xpose.msra.mxu0 0
      %1846 = vmatprep.subr.bf16.mxu0 0
      %1847 = vmatpush1.bf16.xpose.msra.mxu0 0
      %1848 = vmatprep.subr.bf16.mxu0 0
      %1849 = vmatpush1.bf16.xpose.msra.mxu0 0
      %1850 = vmatprep.subr.bf16.mxu0 0
      %1851 = vmatpush1.bf16.xpose.msra.mxu0 0
      %1852 = vmatprep.subr.bf16.mxu0 0
      %1853 = vmatpush1.bf16.xpose.msra.mxu0 0
      %1854 = vmatprep.subr.bf16.mxu0 0
      %1855 = vmatpush1.bf16.xpose.msra.mxu0 0
      %1856 = vmatprep.subr.bf16.mxu0 0
      %1857 = vmatpush1.bf16.xpose.msra.mxu0 0
      %1858 = vmatprep.mubr.bf16.mxu0 0
      %1859 = vmatmul.mubr.bf16.gmra.mrb[0].mxu0 %v1821
      %v1860 = vpop.f32.mrb[0].mxu0
      %v1861 = vadd.f32 0.0, %v1860
      %v1862 = vpop.f32.mrb[0].mxu0
      %v1863 = vpop.f32.mrb[0].mxu0
      %v1864 = vpop.f32.mrb[0].mxu0
      %1865 = vdwg.mxu0
      %v1866 = vmul.f32 %v1811, 0.35355338
      %v1867 = vmul.f32 %v1861, 0.35355338
      %v1868 = vsel %vm1199, %v1866, -inf
      %1869 = vmax.xlane.f32.xlu0 %v1868
      %v1870 = vpop.xlane.xlu0 %1869
      %v1871 = vsel %vm1199, %v1867, -inf
      %1872 = vmax.xlane.f32.xlu0 %v1871
      %v1873 = vpop.xlane.xlu0 %1872
      %v1874 = vsub.f32 %v1866, %v1870
      %v1875 = vsub.f32 %v1867, %v1873
      %v1876 = vmul.f32 %v1874, 1.442695
      %v1877 = vpow.pop %v1876
      %v1878 = vmul.f32 %v1875, 1.442695
      %v1879 = vpow.pop %v1878
      %v1880 = vsel %vm1199, %v1877, 0.0
      %1881 = vadd.xlane.f32.xlu0 %v1880
      %v1882 = vpop.xlane.xlu0 %1881
      %v1883 = vsel %vm1199, %v1879, 0.0
      %1884 = vadd.xlane.f32.xlu0 %v1883
      %v1885 = vpop.xlane.xlu0 %1884
      %v1886 = vrcp.pop %v1882
      %v1887 = vrcp.pop %v1885
      %v1888 = vmul.f32 %v1877, %v1886
      %v1889 = vmul.f32 %v1879, %v1887
      %v1890 = vpack.c.bf16 %v1888, %v1888
      %v1891 = vpack.c.bf16 %v1889, %v1889
      %1892 = vrot.lane.b32.xlu0 %v1096, 40
      %v1893 = vpop.permute.xlu0 %1892
      %v1895 = vsel %vm1226, %v1890, 0
      %v1898 = vsel %vm1230, %v1893, 0
      %1900 = vmatprep.subr.bf16.mxu0 0
      %1901 = vmatpush1.bf16.msra.mxu0 %v1898
      %1902 = vmatprep.subr.bf16.mxu0 0
      %1903 = vmatpush1.bf16.msra.mxu0 0
      %1904 = vmatprep.subr.bf16.mxu0 0
      %1905 = vmatpush1.bf16.msra.mxu0 0
      %1906 = vmatprep.subr.bf16.mxu0 0
      %1907 = vmatpush1.bf16.msra.mxu0 0
      %1908 = vmatprep.subr.bf16.mxu0 0
      %1909 = vmatpush1.bf16.msra.mxu0 0
      %1910 = vmatprep.subr.bf16.mxu0 0
      %1911 = vmatpush1.bf16.msra.mxu0 0
      %1912 = vmatprep.subr.bf16.mxu0 0
      %1913 = vmatpush1.bf16.msra.mxu0 0
      %1914 = vmatprep.subr.bf16.mxu0 0
      %1915 = vmatpush1.bf16.msra.mxu0 0
      %1916 = vmatprep.subr.bf16.mxu0 0
      %1917 = vmatpush1.bf16.msra.mxu0 0
      %1918 = vmatprep.subr.bf16.mxu0 0
      %1919 = vmatpush1.bf16.msra.mxu0 0
      %1920 = vmatprep.subr.bf16.mxu0 0
      %1921 = vmatpush1.bf16.msra.mxu0 0
      %1922 = vmatprep.subr.bf16.mxu0 0
      %1923 = vmatpush1.bf16.msra.mxu0 0
      %1924 = vmatprep.subr.bf16.mxu0 0
      %1925 = vmatpush1.bf16.msra.mxu0 0
      %1926 = vmatprep.subr.bf16.mxu0 0
      %1927 = vmatpush1.bf16.msra.mxu0 0
      %1928 = vmatprep.subr.bf16.mxu0 0
      %1929 = vmatpush1.bf16.msra.mxu0 0
      %1930 = vmatprep.subr.bf16.mxu0 0
      %1931 = vmatpush1.bf16.msra.mxu0 0
      %1932 = vmatprep.mubr.bf16.mxu0 0
      %1933 = vmatmul.mubr.bf16.gmra.mrb[0].mxu0 %v1895
      %v1934 = vpop.f32.mrb[0].mxu0
      %v1935 = vadd.f32 0.0, %v1934
      %v1936 = vpop.f32.mrb[0].mxu0
      %v1937 = vpop.f32.mrb[0].mxu0
      %v1938 = vpop.f32.mrb[0].mxu0
      %1939 = vdwg.mxu0
      %1940 = vrot.lane.b32.xlu0 %v1097, 40
      %v1941 = vpop.permute.xlu0 %1940
      %v1943 = vsel %vm1226, %v1891, 0
      %v1946 = vsel %vm1230, %v1941, 0
      %1948 = vmatprep.subr.bf16.mxu0 0
      %1949 = vmatpush1.bf16.msra.mxu0 %v1946
      %1950 = vmatprep.subr.bf16.mxu0 0
      %1951 = vmatpush1.bf16.msra.mxu0 0
      %1952 = vmatprep.subr.bf16.mxu0 0
      %1953 = vmatpush1.bf16.msra.mxu0 0
      %1954 = vmatprep.subr.bf16.mxu0 0
      %1955 = vmatpush1.bf16.msra.mxu0 0
      %1956 = vmatprep.subr.bf16.mxu0 0
      %1957 = vmatpush1.bf16.msra.mxu0 0
      %1958 = vmatprep.subr.bf16.mxu0 0
      %1959 = vmatpush1.bf16.msra.mxu0 0
      %1960 = vmatprep.subr.bf16.mxu0 0
      %1961 = vmatpush1.bf16.msra.mxu0 0
      %1962 = vmatprep.subr.bf16.mxu0 0
      %1963 = vmatpush1.bf16.msra.mxu0 0
      %1964 = vmatprep.subr.bf16.mxu0 0
      %1965 = vmatpush1.bf16.msra.mxu0 0
      %1966 = vmatprep.subr.bf16.mxu0 0
      %1967 = vmatpush1.bf16.msra.mxu0 0
      %1968 = vmatprep.subr.bf16.mxu0 0
      %1969 = vmatpush1.bf16.msra.mxu0 0
      %1970 = vmatprep.subr.bf16.mxu0 0
      %1971 = vmatpush1.bf16.msra.mxu0 0
      %1972 = vmatprep.subr.bf16.mxu0 0
      %1973 = vmatpush1.bf16.msra.mxu0 0
      %1974 = vmatprep.subr.bf16.mxu0 0
      %1975 = vmatpush1.bf16.msra.mxu0 0
      %1976 = vmatprep.subr.bf16.mxu0 0
      %1977 = vmatpush1.bf16.msra.mxu0 0
      %1978 = vmatprep.subr.bf16.mxu0 0
      %1979 = vmatpush1.bf16.msra.mxu0 0
      %1980 = vmatprep.mubr.bf16.mxu0 0
      %1981 = vmatmul.mubr.bf16.gmra.mrb[0].mxu0 %v1943
      %v1982 = vpop.f32.mrb[0].mxu0
      %v1983 = vadd.f32 0.0, %v1982
      %v1984 = vpop.f32.mrb[0].mxu0
      %v1985 = vpop.f32.mrb[0].mxu0
      %v1986 = vpop.f32.mrb[0].mxu0
      %1987 = vdwg.mxu0
      %1990 = vrot.lane.b32.xlu0 %v1491, 8
      %v1991 = vpop.permute.xlu0 %1990
      %1992 = vrot.lane.b32.xlu0 %v1539, 8
      %v1993 = vpop.permute.xlu0 %1992
      %1998 = vrot.lane.b32.xlu0 %v1713, 16
      %v1999 = vpop.permute.xlu0 %1998
      %2000 = vrot.lane.b32.xlu0 %v1761, 16
      %v2001 = vpop.permute.xlu0 %2000
      %2006 = vrot.lane.b32.xlu0 %v1935, 24
      %v2007 = vpop.permute.xlu0 %2006
      %2008 = vrot.lane.b32.xlu0 %v1983, 24
      %v2009 = vpop.permute.xlu0 %2008
      %v2012 = vsel %vm1101, %v1269, %v1991
      %v2013 = vsel %vm1101, %v1317, %v1993
      %vm2014 = vcmask 130048
      %v2015 = vsel %vm2014, %v2012, %v1999
      %v2016 = vsel %vm2014, %v2013, %v2001
      %vm2017 = vcmask 195584
      %v2018 = vsel %vm2017, %v2015, %v2007
      %v2019 = vsel %vm2017, %v2016, %v2009
      %v2022 = vcombine.high %v2018, %v2018
      %v2024 = vunpack.c.l.s4 1983009808
      %v2025 = vunpack.c.0.s8 %v2024
      %v2026 = vlaneseq
      %v2027 = vshrl.u32 %v2026, 7
      %v2028 = vsub.s32 %v2025, %v2027
      %v2029 = vrot.slane %v2018, %v2028
      %v2031 = vunpack.c.l.s4 1983009808
      %v2032 = vunpack.c.0.s8 %v2031
      %v2033 = vlaneseq
      %v2034 = vshrl.u32 %v2033, 7
      %v2035 = vsub.s32 %v2032, %v2034
      %v2036 = vrot.slane %v2022, %v2035
      %v2037 = vcombine.high %v2029, %v2029
      %v2038 = vcombine.high %v2019, %v2019
      %v2040 = vunpack.c.l.s4 1983009808
      %v2041 = vunpack.c.0.s8 %v2040
      %v2042 = vlaneseq
      %v2043 = vshrl.u32 %v2042, 7
      %v2044 = vsub.s32 %v2041, %v2043
      %v2045 = vrot.slane %v2019, %v2044
      %v2047 = vunpack.c.l.s4 1983009808
      %v2048 = vunpack.c.0.s8 %v2047
      %v2049 = vlaneseq
      %v2050 = vshrl.u32 %v2049, 7
      %v2051 = vsub.s32 %v2048, %v2050
      %v2052 = vrot.slane %v2038, %v2051
      %v2053 = vcombine.high %v2045, %v2045
      %v2054 = vcombine.low %v2029, %v2037
      %v2055 = vcombine.low %v2036, %v2045
      %v2057 = vunpack.c.l.s4 1983009808
      %v2058 = vunpack.c.0.s8 %v2057
      %v2059 = vlaneseq
      %v2060 = vshrl.u32 %v2059, 7
      %v2061 = vsub.s32 %v2058, %v2060
      %v2062 = vrot.slane %v2054, %v2061
      %v2064 = vunpack.c.l.s4 1983009808
      %v2065 = vunpack.c.0.s8 %v2064
      %v2066 = vlaneseq
      %v2067 = vshrl.u32 %v2066, 7
      %v2068 = vsub.s32 %v2065, %v2067
      %v2069 = vrot.slane %v2055, %v2068
      %v2070 = vcombine.low %v2062, %v2069
      %v2071 = vcombine.low %v2053, %v2052
      %v2073 = vunpack.c.l.s4 1983009808
      %v2074 = vunpack.c.0.s8 %v2073
      %v2075 = vlaneseq
      %v2076 = vshrl.u32 %v2075, 7
      %v2077 = vsub.s32 %v2074, %v2076
      %v2078 = vrot.slane %v2071, %v2077
      %v2081 = vpack.c.bf16 %v2078, %v2070
      %v2082 = vld [vmem:[%s766] sm:$0xf]
      %v2083 = vld [vmem:[%s766 + $0x4] sm:$0xf]
      %v2084 = vld [vmem:[%s766 + $0x8] sm:$0xf]
      %v2085 = vld [vmem:[%s766 + $0xc] sm:$0xf]
      %v2086 = vld [vmem:[%s773] sm:$0x1]
      %v2088 = vlaneseq
      %v2089 = vshrl.u32 %v2088, 7
      %v2090 = vsub.s32 0, %v2089
      %v2091 = vrot.slane %v2086, %v2090
      %v2097 = vunpack.c.l.b16 %v2082
      %v2098 = vunpack.c.l.b16 %v2083
      %v2099 = vunpack.c.l.b16 %v2084
      %v2100 = vunpack.c.l.b16 %v2085
      %v2101 = vpack.c.b16 %v2098, %v2097
      %v2102 = vpack.c.b16 %v2100, %v2099
      %v2106 = vsel %vm990, %v2081, 0
      %2108 = vmatprep.subr.bf16.mxu0 0
      %2109 = vmatpush1.bf16.msra.mxu0 %v2101
      %2110 = vmatprep.subr.bf16.mxu0 0
      %2111 = vmatpush1.bf16.msra.mxu0 %v2102
      %2112 = vmatprep.subr.bf16.mxu0 0
      %2113 = vmatpush1.bf16.msra.mxu0 0
      %2114 = vmatprep.subr.bf16.mxu0 0
      %2115 = vmatpush1.bf16.msra.mxu0 0
      %2116 = vmatprep.subr.bf16.mxu0 0
      %2117 = vmatpush1.bf16.msra.mxu0 0
      %2118 = vmatprep.subr.bf16.mxu0 0
      %2119 = vmatpush1.bf16.msra.mxu0 0
      %2120 = vmatprep.subr.bf16.mxu0 0
      %2121 = vmatpush1.bf16.msra.mxu0 0
      %2122 = vmatprep.subr.bf16.mxu0 0
      %2123 = vmatpush1.bf16.msra.mxu0 0
      %2124 = vmatprep.subr.bf16.mxu0 0
      %2125 = vmatpush1.bf16.msra.mxu0 0
      %2126 = vmatprep.subr.bf16.mxu0 0
      %2127 = vmatpush1.bf16.msra.mxu0 0
      %2128 = vmatprep.subr.bf16.mxu0 0
      %2129 = vmatpush1.bf16.msra.mxu0 0
      %2130 = vmatprep.subr.bf16.mxu0 0
      %2131 = vmatpush1.bf16.msra.mxu0 0
      %2132 = vmatprep.subr.bf16.mxu0 0
      %2133 = vmatpush1.bf16.msra.mxu0 0
      %2134 = vmatprep.subr.bf16.mxu0 0
      %2135 = vmatpush1.bf16.msra.mxu0 0
      %2136 = vmatprep.subr.bf16.mxu0 0
      %2137 = vmatpush1.bf16.msra.mxu0 0
      %2138 = vmatprep.subr.bf16.mxu0 0
      %2139 = vmatpush1.bf16.msra.mxu0 0
      %2140 = vmatprep.mubr.bf16.mxu0 0
      %2141 = vmatmul.mubr.bf16.gmra.mrb[0].mxu0 %v2106
      %v2142 = vpop.f32.mrb[0].mxu0
      %v2143 = vadd.f32 %v2091, %v2142
      %v2144 = vpop.f32.mrb[0].mxu0
      %v2145 = vpop.f32.mrb[0].mxu0
      %v2146 = vadd.f32 %v2091, %v2145
      %v2147 = vpop.f32.mrb[0].mxu0
      %2148 = vdwg.mxu0
      %v2151 = vcombine.high %v2143, %v2143
      %v2153 = vunpack.c.l.s4 1983009808
      %v2154 = vunpack.c.0.s8 %v2153
      %v2155 = vlaneseq
      %v2156 = vshrl.u32 %v2155, 7
      %v2157 = vsub.s32 %v2154, %v2156
      %v2158 = vrot.slane %v2143, %v2157
      %v2160 = vunpack.c.l.s4 1983009808
      %v2161 = vunpack.c.0.s8 %v2160
      %v2162 = vlaneseq
      %v2163 = vshrl.u32 %v2162, 7
      %v2164 = vsub.s32 %v2161, %v2163
      %v2165 = vrot.slane %v2151, %v2164
      %v2166 = vcombine.high %v2158, %v2158
      %v2167 = vcombine.high %v2165, %v2165
      %v2169 = vunpack.c.l.s4 1983009808
      %v2170 = vunpack.c.0.s8 %v2169
      %v2171 = vlaneseq
      %v2172 = vshrl.u32 %v2171, 7
      %v2173 = vsub.s32 %v2170, %v2172
      %v2174 = vrot.slane %v2146, %v2173
      %v2175 = vcombine.high %v2174, %v2174
      %v2182 = vadd.f32 %v908, %v2158
      %v2183 = vadd.f32 %v916, %v2166
      %v2184 = vadd.f32 %v915, %v2165
      %v2185 = vadd.f32 %v924, %v2167
      %v2186 = vadd.f32 %v932, %v2174
      %v2187 = vadd.f32 %v931, %v2175
      %v2194 = vcombine.low %v2182, %v2183
      %v2195 = vcombine.low %v2184, %v2185
      %v2197 = vunpack.c.l.s4 1983009808
      %v2198 = vunpack.c.0.s8 %v2197
      %v2199 = vlaneseq
      %v2200 = vshrl.u32 %v2199, 7
      %v2201 = vsub.s32 %v2198, %v2200
      %v2202 = vrot.slane %v2194, %v2201
      %v2204 = vunpack.c.l.s4 1983009808
      %v2205 = vunpack.c.0.s8 %v2204
      %v2206 = vlaneseq
      %v2207 = vshrl.u32 %v2206, 7
      %v2208 = vsub.s32 %v2205, %v2207
      %v2209 = vrot.slane %v2195, %v2208
      %v2210 = vcombine.low %v2202, %v2209
      %v2211 = vcombine.low %v2186, %v2187
      %v2213 = vunpack.c.l.s4 1983009808
      %v2214 = vunpack.c.0.s8 %v2213
      %v2215 = vlaneseq
      %v2216 = vshrl.u32 %v2215, 7
      %v2217 = vsub.s32 %v2214, %v2216
      %v2218 = vrot.slane %v2211, %v2217
      %v2221 = vpack.c.bf16 %v2218, %v2210
      %v2222 = vld [vmem:[%s782] sm:$0xf]
      %v2223 = vld [vmem:[%s782 + $0x4] sm:$0xf]
      %v2224 = vld [vmem:[%s782 + $0x8] sm:$0xf]
      %v2225 = vld [vmem:[%s782 + $0xc] sm:$0xf]
      %v2226 = vld [vmem:[%s789] sm:$0x1]
      %v2228 = vlaneseq
      %v2229 = vshrl.u32 %v2228, 7
      %v2230 = vsub.s32 0, %v2229
      %v2231 = vrot.slane %v2226, %v2230
      %v2237 = vunpack.c.l.b16 %v2222
      %v2238 = vunpack.c.l.b16 %v2223
      %v2239 = vunpack.c.l.b16 %v2224
      %v2240 = vunpack.c.l.b16 %v2225
      %v2241 = vpack.c.b16 %v2238, %v2237
      %v2242 = vpack.c.b16 %v2240, %v2239
      %v2246 = vsel %vm990, %v2221, 0
      %2248 = vmatprep.subr.bf16.mxu0 0
      %2249 = vmatpush1.bf16.msra.mxu0 %v2241
      %2250 = vmatprep.subr.bf16.mxu0 0
      %2251 = vmatpush1.bf16.msra.mxu0 %v2242
      %2252 = vmatprep.subr.bf16.mxu0 0
      %2253 = vmatpush1.bf16.msra.mxu0 0
      %2254 = vmatprep.subr.bf16.mxu0 0
      %2255 = vmatpush1.bf16.msra.mxu0 0
      %2256 = vmatprep.subr.bf16.mxu0 0
      %2257 = vmatpush1.bf16.msra.mxu0 0
      %2258 = vmatprep.subr.bf16.mxu0 0
      %2259 = vmatpush1.bf16.msra.mxu0 0
      %2260 = vmatprep.subr.bf16.mxu0 0
      %2261 = vmatpush1.bf16.msra.mxu0 0
      %2262 = vmatprep.subr.bf16.mxu0 0
      %2263 = vmatpush1.bf16.msra.mxu0 0
      %2264 = vmatprep.subr.bf16.mxu0 0
      %2265 = vmatpush1.bf16.msra.mxu0 0
      %2266 = vmatprep.subr.bf16.mxu0 0
      %2267 = vmatpush1.bf16.msra.mxu0 0
      %2268 = vmatprep.subr.bf16.mxu0 0
      %2269 = vmatpush1.bf16.msra.mxu0 0
      %2270 = vmatprep.subr.bf16.mxu0 0
      %2271 = vmatpush1.bf16.msra.mxu0 0
      %2272 = vmatprep.subr.bf16.mxu0 0
      %2273 = vmatpush1.bf16.msra.mxu0 0
      %2274 = vmatprep.subr.bf16.mxu0 0
      %2275 = vmatpush1.bf16.msra.mxu0 0
      %2276 = vmatprep.subr.bf16.mxu0 0
      %2277 = vmatpush1.bf16.msra.mxu0 0
      %2278 = vmatprep.subr.bf16.mxu0 0
      %2279 = vmatpush1.bf16.msra.mxu0 0
      %2280 = vmatprep.mubr.bf16.mxu0 0
      %2281 = vmatmul.mubr.bf16.gmra.mrb[0].mxu0 %v2246
      %v2282 = vpop.f32.mrb[0].mxu0
      %v2283 = vadd.f32 %v2231, %v2282
      %v2284 = vpop.f32.mrb[0].mxu0
      %v2285 = vpop.f32.mrb[0].mxu0
      %v2286 = vadd.f32 %v2231, %v2285
      %v2287 = vpop.f32.mrb[0].mxu0
      %2288 = vdwg.mxu0
      %v2289 = vmul.f32 %v2283, 1.702
      %v2290 = vmul.f32 %v2286, 1.702
      %v2291 = vxor.u32 %v2289, 2147483648
      %v2292 = vxor.u32 %v2290, 2147483648
      %v2293 = vmul.f32 %v2291, 1.442695
      %v2294 = vpow.pop %v2293
      %v2295 = vmul.f32 %v2292, 1.442695
      %v2296 = vpow.pop %v2295
      %v2297 = vadd.f32 %v2294, 1.0
      %v2298 = vadd.f32 %v2296, 1.0
      %v2299 = vrcp.pop %v2297
      %v2300 = vmul.f32 1.0, %v2299
      %v2301 = vrcp.pop %v2298
      %v2302 = vmul.f32 1.0, %v2301
      %v2303 = vmul.f32 %v2283, %v2300
      %v2304 = vmul.f32 %v2286, %v2302
      %v2305 = vpack.c.bf16 %v2304, %v2303
      %v2306 = vld [vmem:[%s798] sm:$0xf]
      %v2307 = vld [vmem:[%s798 + $0x4] sm:$0xf]
      %v2308 = vld [vmem:[%s798 + $0x8] sm:$0xf]
      %v2309 = vld [vmem:[%s798 + $0xc] sm:$0xf]
      %v2310 = vld [vmem:[%s798 + $0x10] sm:$0xf]
      %v2311 = vld [vmem:[%s798 + $0x14] sm:$0xf]
      %v2312 = vld [vmem:[%s798 + $0x18] sm:$0xf]
      %v2313 = vld [vmem:[%s798 + $0x1c] sm:$0xf]
      %v2314 = vld [vmem:[%s798 + $0x20] sm:$0xf]
      %v2315 = vld [vmem:[%s798 + $0x24] sm:$0xf]
      %v2316 = vld [vmem:[%s798 + $0x28] sm:$0xf]
      %v2317 = vld [vmem:[%s798 + $0x2c] sm:$0xf]
      %v2318 = vld [vmem:[%s798 + $0x30] sm:$0xf]
      %v2319 = vld [vmem:[%s798 + $0x34] sm:$0xf]
      %v2320 = vld [vmem:[%s798 + $0x38] sm:$0xf]
      %v2321 = vld [vmem:[%s798 + $0x3c] sm:$0xf]
      %v2322 = vld [vmem:[%s805] sm:$0x1]
      %v2324 = vlaneseq
      %v2325 = vshrl.u32 %v2324, 7
      %v2326 = vsub.s32 0, %v2325
      %v2327 = vrot.slane %v2322, %v2326
      %v2345 = vunpack.c.l.b16 %v2306
      %v2346 = vunpack.c.l.b16 %v2307
      %v2347 = vunpack.c.l.b16 %v2308
      %v2348 = vunpack.c.l.b16 %v2309
      %v2349 = vunpack.c.l.b16 %v2310
      %v2350 = vunpack.c.l.b16 %v2311
      %v2351 = vunpack.c.l.b16 %v2312
      %v2352 = vunpack.c.l.b16 %v2313
      %v2353 = vunpack.c.l.b16 %v2314
      %v2354 = vunpack.c.l.b16 %v2315
      %v2355 = vunpack.c.l.b16 %v2316
      %v2356 = vunpack.c.l.b16 %v2317
      %v2357 = vunpack.c.l.b16 %v2318
      %v2358 = vunpack.c.l.b16 %v2319
      %v2359 = vunpack.c.l.b16 %v2320
      %v2360 = vunpack.c.l.b16 %v2321
      %v2361 = vpack.c.b16 %v2346, %v2345
      %v2362 = vpack.c.b16 %v2348, %v2347
      %v2363 = vpack.c.b16 %v2350, %v2349
      %v2364 = vpack.c.b16 %v2352, %v2351
      %v2365 = vpack.c.b16 %v2354, %v2353
      %v2366 = vpack.c.b16 %v2356, %v2355
      %v2367 = vpack.c.b16 %v2358, %v2357
      %v2368 = vpack.c.b16 %v2360, %v2359
      %2377 = vmatprep.subr.bf16.mxu0 0
      %2378 = vmatpush1.bf16.msra.mxu0 %v2361
      %2379 = vmatprep.subr.bf16.mxu0 0
      %2380 = vmatpush1.bf16.msra.mxu0 %v2362
      %2381 = vmatprep.subr.bf16.mxu0 0
      %2382 = vmatpush1.bf16.msra.mxu0 %v2363
      %2383 = vmatprep.subr.bf16.mxu0 0
      %2384 = vmatpush1.bf16.msra.mxu0 %v2364
      %2385 = vmatprep.subr.bf16.mxu0 0
      %2386 = vmatpush1.bf16.msra.mxu0 %v2365
      %2387 = vmatprep.subr.bf16.mxu0 0
      %2388 = vmatpush1.bf16.msra.mxu0 %v2366
      %2389 = vmatprep.subr.bf16.mxu0 0
      %2390 = vmatpush1.bf16.msra.mxu0 %v2367
      %2391 = vmatprep.subr.bf16.mxu0 0
      %2392 = vmatpush1.bf16.msra.mxu0 %v2368
      %2393 = vmatprep.subr.bf16.mxu0 0
      %2394 = vmatpush1.bf16.msra.mxu0 0
      %2395 = vmatprep.subr.bf16.mxu0 0
      %2396 = vmatpush1.bf16.msra.mxu0 0
      %2397 = vmatprep.subr.bf16.mxu0 0
      %2398 = vmatpush1.bf16.msra.mxu0 0
      %2399 = vmatprep.subr.bf16.mxu0 0
      %2400 = vmatpush1.bf16.msra.mxu0 0
      %2401 = vmatprep.subr.bf16.mxu0 0
      %2402 = vmatpush1.bf16.msra.mxu0 0
      %2403 = vmatprep.subr.bf16.mxu0 0
      %2404 = vmatpush1.bf16.msra.mxu0 0
      %2405 = vmatprep.subr.bf16.mxu0 0
      %2406 = vmatpush1.bf16.msra.mxu0 0
      %2407 = vmatprep.subr.bf16.mxu0 0
      %2408 = vmatpush1.bf16.msra.mxu0 0
      %2409 = vmatprep.mubr.bf16.mxu0 0
      %2410 = vmatmul.mubr.bf16.gmra.mrb[0].mxu0 %v2305
      %v2411 = vpop.f32.mrb[0].mxu0
      %v2412 = vadd.f32 %v2327, %v2411
      %v2413 = vpop.f32.mrb[0].mxu0
      %v2414 = vpop.f32.mrb[0].mxu0
      %v2415 = vadd.f32 %v2327, %v2414
      %v2416 = vpop.f32.mrb[0].mxu0
      %2417 = vdwg.mxu0
      %v2420 = vcombine.high %v2412, %v2412
      %v2422 = vunpack.c.l.s4 1983009808
      %v2423 = vunpack.c.0.s8 %v2422
      %v2424 = vlaneseq
      %v2425 = vshrl.u32 %v2424, 7
      %v2426 = vsub.s32 %v2423, %v2425
      %v2427 = vrot.slane %v2412, %v2426
      %v2429 = vunpack.c.l.s4 1983009808
      %v2430 = vunpack.c.0.s8 %v2429
      %v2431 = vlaneseq
      %v2432 = vshrl.u32 %v2431, 7
      %v2433 = vsub.s32 %v2430, %v2432
      %v2434 = vrot.slane %v2420, %v2433
      %v2435 = vcombine.high %v2427, %v2427
      %v2436 = vcombine.high %v2434, %v2434
      %v2438 = vunpack.c.l.s4 1983009808
      %v2439 = vunpack.c.0.s8 %v2438
      %v2440 = vlaneseq
      %v2441 = vshrl.u32 %v2440, 7
      %v2442 = vsub.s32 %v2439, %v2441
      %v2443 = vrot.slane %v2415, %v2442
      %v2444 = vcombine.high %v2443, %v2443
      %v2451 = vadd.f32 %v2182, %v2427
      %v2452 = vadd.f32 %v2183, %v2435
      %v2453 = vadd.f32 %v2184, %v2434
      %v2454 = vadd.f32 %v2185, %v2436
      %v2455 = vadd.f32 %v2186, %v2443
      %v2456 = vadd.f32 %v2187, %v2444
      %v2463 = vcombine.low %v2451, %v2452
      %v2465 = vunpack.c.l.s4 1983009808
      %v2466 = vunpack.c.0.s8 %v2465
      %v2467 = vlaneseq
      %v2468 = vshrl.u32 %v2467, 7
      %v2469 = vsub.s32 %v2466, %v2468
      %v2470 = vrot.slane %v2463, %v2469
      %v2472 = vunpack.c.l.s4 1983009808
      %v2473 = vunpack.c.0.s8 %v2472
      %v2474 = vlaneseq
      %v2475 = vshrl.u32 %v2474, 7
      %v2476 = vsub.s32 %v2473, %v2475
      %v2477 = vrot.slane %v2453, %v2476
      %v2478 = vcombine.low %v2470, %v2477
      %v2479 = vcombine.low %v2454, %v2455
      %v2481 = vunpack.c.l.s4 1983009808
      %v2482 = vunpack.c.0.s8 %v2481
      %v2483 = vlaneseq
      %v2484 = vshrl.u32 %v2483, 7
      %v2485 = vsub.s32 %v2482, %v2484
      %v2486 = vrot.slane %v2479, %v2485
      %v2488 = vunpack.c.l.s4 1983009808
      %v2489 = vunpack.c.0.s8 %v2488
      %v2490 = vlaneseq
      %v2491 = vshrl.u32 %v2490, 7
      %v2492 = vsub.s32 %v2489, %v2491
      %v2493 = vrot.slane %v2456, %v2492
      %v2494 = vcombine.low %v2486, %v2493
      %vm2497 = vcmask 259072
      %2498 = vst.msk [vmem:[#allocation2] sm:$0x3f] %vm2497, %v2478
      %2499 = vst.msk [vmem:[#allocation2 + $0x8] sm:$0x3f] %vm2497, %v2494
      %p2500 = scmp.eq.s32.totalorder %s31, 1
      // Predicated region
      $region85: #{combined_forward.1} parent=79 // pred_check
        %p2501 = pneg %p2500
      $region86: #{combined_forward.1} parent=79 // pred_check_branch
        %2503 = sbr.rel (%p2501) target = $region88
      $region87: #{combined_forward.1} parent=79 // pred_region
        %v2504 = vpack.c.bf16 %v2451, %v2451
        %v2505 = vpack.c.bf16 %v2454, %v2454
        %v2506 = vld [vmem:[%s810] sm:$0xf]
        %v2507 = vld [vmem:[%s810 + $0x4] sm:$0xf]
        %v2508 = vld [vmem:[%s810 + $0x8] sm:$0xf]
        %v2509 = vld [vmem:[%s810 + $0xc] sm:$0xf]
        %v2510 = vld [vmem:[%s813] sm:$0x1]
        %v2512 = vlaneseq
        %v2513 = vshrl.u32 %v2512, 7
        %v2514 = vsub.s32 0, %v2513
        %v2515 = vrot.slane %v2510, %v2514
        %v2519 = vunpack.c.l.b16 %v2504
        %v2520 = vunpack.c.l.b16 %v2505
        %v2521 = vrot.slane %v2519, 1
        %vm2522 = vcmask 1041409
        %v2523 = vsel %vm2522, %v2520, %v2521
        %v2524 = vpack.c.b16 %v2523, %v2523
        %v2529 = vunpack.c.l.b16 %v2506
        %v2530 = vunpack.c.l.b16 %v2507
        %v2531 = vunpack.c.l.b16 %v2508
        %v2532 = vunpack.c.l.b16 %v2509
        %v2533 = vpack.c.b16 %v2530, %v2529
        %v2534 = vpack.c.b16 %v2532, %v2531
        %v2538 = vsel %vm990, %v2524, 0
        %2540 = vmatprep.subr.bf16.mxu0 0
        %2541 = vmatpush1.bf16.msra.mxu0 %v2533
        %2542 = vmatprep.subr.bf16.mxu0 0
        %2543 = vmatpush1.bf16.msra.mxu0 %v2534
        %2544 = vmatprep.subr.bf16.mxu0 0
        %2545 = vmatpush1.bf16.msra.mxu0 0
        %2546 = vmatprep.subr.bf16.mxu0 0
        %2547 = vmatpush1.bf16.msra.mxu0 0
        %2548 = vmatprep.subr.bf16.mxu0 0
        %2549 = vmatpush1.bf16.msra.mxu0 0
        %2550 = vmatprep.subr.bf16.mxu0 0
        %2551 = vmatpush1.bf16.msra.mxu0 0
        %2552 = vmatprep.subr.bf16.mxu0 0
        %2553 = vmatpush1.bf16.msra.mxu0 0
        %2554 = vmatprep.subr.bf16.mxu0 0
        %2555 = vmatpush1.bf16.msra.mxu0 0
        %2556 = vmatprep.subr.bf16.mxu0 0
        %2557 = vmatpush1.bf16.msra.mxu0 0
        %2558 = vmatprep.subr.bf16.mxu0 0
        %2559 = vmatpush1.bf16.msra.mxu0 0
        %2560 = vmatprep.subr.bf16.mxu0 0
        %2561 = vmatpush1.bf16.msra.mxu0 0
        %2562 = vmatprep.subr.bf16.mxu0 0
        %2563 = vmatpush1.bf16.msra.mxu0 0
        %2564 = vmatprep.subr.bf16.mxu0 0
        %2565 = vmatpush1.bf16.msra.mxu0 0
        %2566 = vmatprep.subr.bf16.mxu0 0
        %2567 = vmatpush1.bf16.msra.mxu0 0
        %2568 = vmatprep.subr.bf16.mxu0 0
        %2569 = vmatpush1.bf16.msra.mxu0 0
        %2570 = vmatprep.subr.bf16.mxu0 0
        %2571 = vmatpush1.bf16.msra.mxu0 0
        %2572 = vmatprep.mubr.bf16.mxu0 0
        %2573 = vmatmul.mubr.bf16.gmra.mrb[0].mxu0 %v2538
        %v2574 = vpop.f32.mrb[0].mxu0
        %v2575 = vadd.f32 %v2515, %v2574
        %v2576 = vpop.f32.mrb[0].mxu0
        %v2577 = vpop.f32.mrb[0].mxu0
        %v2578 = vpop.f32.mrb[0].mxu0
        %2579 = vdwg.mxu0
        %2580 = vst [vmem:[%s817] sm:$0x3] %v2575
      $region88: #{combined_forward.1} parent=79 // pred_fallthru
        _
      %p2581 = scmp.lt.s32.totalorder %s30, 3
      %s2582 = scalar_select %p2581, %s30, 3
      %s2583 = smul.addr %s2582, 2
      %s2584 = scalar_lea.vmem %s15, %s2583
      // Predicated region
      $region89: #{combined_forward.1} parent=79 // pred_check
        %p2585 = pneg %p452
      $region90: #{combined_forward.1} parent=79 // pred_check_branch
        %2587 = sbr.rel (%p2585) target = $region92
      $region91: #{combined_forward.1} parent=79 // pred_region
        _
      $region92: #{combined_forward.1} parent=79 // pred_fallthru
        _
    $region80: #{combined_forward.1} parent=5 // pred_fallthru
      _
    %p2588 = scmp.le.s32.totalorder 2, %s21
    // Predicated region
    $region93: #{combined_forward.1} parent=5 // pred_check
      %p2589 = pneg %p2588
    $region94: #{combined_forward.1} parent=5 // pred_check_branch
      %2591 = sbr.rel (%p2589) target = $region96
    $region95: #{combined_forward.1} parent=5 // pred_region
      %s2592 = ssub.s32 %s21, 2
      // Predicated region
      $region97: #{combined_forward.1} parent=95 // pred_check
        %p2593 = pneg %p458
      $region98: #{combined_forward.1} parent=95 // pred_check_branch
        %2595 = sbr.rel (%p2593) target = $region100
      $region99: #{combined_forward.1} parent=95 // pred_region
        %p2596 = scmp.lt.s32.totalorder %s32, 3
        %s2597 = scalar_select %p2596, %s32, 3
        %s2598 = smul.addr %s2597, 2
        %s2599 = scalar_lea.vmem %s15, %s2598
      $region100: #{combined_forward.1} parent=95 // pred_fallthru
        _
    $region96: #{combined_forward.1} parent=5 // pred_fallthru
      _
  $region6: #{combined_forward.1} parent=0 // loop_footer
    %s25 = sadd.s32 1, %s21
  $region7: #{combined_forward.1} parent=0 // loop_footer_branch
    %20 = sbr.rel target = $region3
  $region8: #{combined_forward.1} parent=0 // loop_exit
    _

</llo_original>
